<compile_context>
chip_gen: v5e
topology: v5e:2x2
jax: 0.10.0
libtpu: 0.0.40
codegen_flags: <defaults>
</compile_context>

<pallas_src>
import functools

import jax
import jax.numpy as jnp
from jax import lax
from jax.experimental import pallas as pl
from jax.experimental.pallas import tpu as pltpu

_TB = 8   # batch rows per grid step (sublane-aligned)
_TI = 8   # f32 sublane tile for the i (reduction) axis


def _repulsion_kernel(x_ref, o_ref, xt_ref, *, strength, radius, n_valid):
    # x_ref : (TB, n_pad)  lane-dense coordinate rows for TB batch elements
    #                      (zero padded in both the batch and lane axes).
    # o_ref : (1, TB)      lane-dense per-row L2 norms of the summed offsets.
    # xt_ref: (n_pad, TB)  VMEM scratch: transposed block (sublane form of x).
    tb, n_pad = x_ref.shape
    n_rem = n_pad - n_valid                      # static python int

    # Accumulator count: enough ILP to fill the 4 VALU slots for small N,
    # scaled down so live accumulator vregs stay ~<=16 for larger N.
    if n_pad <= 512:
        nacc = 4
    elif n_pad <= 1024:
        nacc = 2
    else:
        nacc = 1
    chunk = _TI * nacc                           # n_pad (mult of 128) % chunk == 0
    num_it = n_pad // chunk
    unroll = True if num_it <= 16 else 8

    # One-time lane->sublane repack of the whole block (XLU vxpose; negligible
    # next to the O(N^2) VALU work).  Replaces the old lane-padded x_col input.
    xt_ref[...] = jnp.transpose(x_ref[...])

    lane = lax.broadcasted_iota(jnp.int32, (1, n_pad), 1)
    valid = lane < n_valid                       # mask for zero-padded j lanes
    lane_tb = lax.broadcasted_iota(jnp.int32, (1, tb), 1)
    out = jnp.zeros((1, tb), jnp.float32)

    for t in range(tb):                          # static unroll over batch rows
        x_row = x_ref[pl.ds(t, 1), :].astype(jnp.float32)       # (1, n_pad)
        # Hoisted sublane broadcast (broadcast_in_dim is not CSE'd in loops).
        x_row8 = jnp.broadcast_to(x_row, (_TI, n_pad))          # (8, n_pad)

        def body(it, accs, t=t):
            i0 = pl.multiple_of(it * chunk, chunk)
            return tuple(
                accs[a] + jnp.abs(
                    xt_ref[pl.ds(i0 + a * _TI, _TI), pl.ds(t, 1)] - x_row8)
                for a in range(nacc))

        accs = lax.fori_loop(
            0, num_it, body,
            tuple(jnp.zeros((_TI, n_pad), jnp.float32) for _ in range(nacc)),
            unroll=unroll)

        acc8 = accs[0]
        for a in range(1, nacc):
            acc8 = acc8 + accs[a]
        dist = jnp.sum(acc8, axis=0, keepdims=True)             # (1, n_pad)
        if n_rem:
            # Remove the zero-padded i rows' |0 - x_j| contribution.  Exact
            # only because the host pads with exact zeros (see wrapper).
            dist = dist - jnp.float32(n_rem) * jnp.abs(x_row)

        w = jnp.where((dist < jnp.float32(radius)) & valid,
                      jnp.float32(strength), jnp.float32(0.0))  # (1, n_pad)
        # S[j] = sum_i (x_i - x_j) * w_i = dot(x, w) - x_j * sum(w)
        wsum = jnp.sum(w, axis=1, keepdims=True)                # (1, 1)
        xw = jnp.sum(x_row * w, axis=1, keepdims=True)          # (1, 1)
        s = jnp.where(valid, xw - x_row * wsum, jnp.float32(0.0))
        # TODO(synk): forward-only; sqrt(0) gradient is undefined if this is
        # ever differentiated (matches the PyTorch module).
        norm_t = jnp.sqrt(jnp.sum(s * s, axis=1, keepdims=True))  # (1, 1)
        out = out + jnp.where(lane_tb == t, norm_t, jnp.float32(0.0))

    o_ref[...] = out


def repulsion_loss(x, strength=0.1, radius=2, *, tb=_TB):
    """Pallas TPU forward pass of RepulsionLoss for x of shape (B, N)."""
    B, N = x.shape
    # Lane axis padded to a multiple of 128 (clean vreg / transpose tiles);
    # batch axis padded to a multiple of the per-step row tile.  Padding MUST
    # be exact zeros: the kernel's n_rem correction and w/S lane masks rely
    # on it (padded batch rows then yield 0-norms and are sliced off below).
    n_pad = ((N + 127) // 128) * 128
    b_pad = ((B + tb - 1) // tb) * tb
    xf = jnp.pad(x.astype(jnp.float32), ((0, b_pad - B), (0, n_pad - N)))

    kernel = functools.partial(
        _repulsion_kernel, strength=float(strength), radius=float(radius),
        n_valid=N)
    norms = pl.pallas_call(
        kernel,
        out_shape=jax.ShapeDtypeStruct((b_pad // tb, 1, tb), jnp.float32),
        grid_spec=pltpu.PrefetchScalarGridSpec(
            num_scalar_prefetch=0,
            grid=(b_pad // tb,),
            in_specs=[pl.BlockSpec((tb, n_pad), lambda g: (g, 0))],
            out_specs=pl.BlockSpec((None, 1, tb), lambda g: (g, 0, 0)),
            scratch_shapes=[pltpu.VMEM((n_pad, tb), jnp.float32)],
        ),
        compiler_params=pltpu.CompilerParams(
            dimension_semantics=("parallel",)),
    )(xf)
    # Trivial O(B) mean kept outside the kernel (keeps the batch axis parallel).
    return jnp.mean(norms.reshape(-1)[:B])


def repulsion_loss_ref(x, strength=0.1, radius=2):
    # Pure-JAX reference mirroring the PyTorch forward, for verification.
    diff = x[:, :, None] - x[:, None, :]
    dist = jnp.sum(jnp.abs(diff), axis=1)
    w = (dist < radius).astype(jnp.float32) * strength
    s = jnp.sum(diff * w[:, :, None], axis=1)
    return jnp.mean(jnp.sqrt(jnp.sum(s * s, axis=-1)))


if __name__ == "__main__":
    key = jax.random.PRNGKey(0)
    k1, k2, k3, k4 = jax.random.split(key, 4)

    # Per-row scales keep every dist value far from the radius=2 threshold on
    # one side or the other (both w branches exercised, no razor-edge compares
    # that could flip under a different f32 accumulation order).
    x1 = jax.random.normal(k1, (4, 128), jnp.float32)
    x1 = x1 * jnp.array([0.001, 0.001, 1.0, 1.0], jnp.float32)[:, None]
    x2 = jax.random.normal(k2, (3, 100), jnp.float32)      # N % 128 != 0 path
    x2 = x2 * jnp.array([0.001, 1.0, 0.001], jnp.float32)[:, None]
    scale3 = jnp.where(jax.random.bernoulli(k4, 0.5, (20,)),
                       jnp.float32(0.001), jnp.float32(1.0))[:, None]
    x3 = jax.random.normal(k3, (20, 256), jnp.float32) * scale3  # multi-block grid

    for name, x in (("B4_N128", x1), ("B3_N100", x2), ("B20_N256", x3)):
        loss = jax.block_until_ready(repulsion_loss(x))
        ref = jax.block_until_ready(repulsion_loss_ref(x))
        assert jnp.allclose(loss, ref, rtol=1e-4, atol=1e-6), (name, float(loss), float(ref))
    print("KERNEL_OK")
</pallas_src>

<mosaic_0001>
module attributes {stable_mosaic.version = 11 : i64} {
  func.func @_repulsion_kernel(%arg0: i32, %arg1: memref<8x128xf32, #tpu.memory_space<vmem>>, %arg2: memref<1x1x8xf32, #tpu.memory_space<vmem>>, %arg3: memref<128x8xf32, #tpu.memory_space<vmem>>) attributes {dimension_semantics = [#tpu.dimension_semantics<parallel>], iteration_bounds = array<i64: 1>, scalar_prefetch = 0 : i64, scratch_operands = 1 : i64, tpu.core_type = #tpu.core_type<tc>, window_params = [{transform_indices = @transform_0, window_bounds = array<i64: 8, 128>}, {transform_indices = @transform_1, window_bounds = array<i64: 1, 1, 8>}]} {
    %c0 = arith.constant 0 : index
    %c0_0 = arith.constant 0 : index
    %0 = vector.load %arg1[%c0, %c0_0] : memref<8x128xf32, #tpu.memory_space<vmem>>, vector<8x128xf32>
    %1 = tpu.transpose %0, [1, 0] : vector<8x128xf32> -> vector<128x8xf32>
    %c0_1 = arith.constant 0 : index
    %c0_2 = arith.constant 0 : index
    %2 = vector.load %arg3[%c0_1, %c0_2] : memref<128x8xf32, #tpu.memory_space<vmem>>, vector<128x8xf32>
    tpu.vector_store %arg3[%c0_1, %c0_2], %1 {strides = array<i32>} : memref<128x8xf32, #tpu.memory_space<vmem>>, vector<128x8xf32>,
    %3 = tpu.iota {dimensions = array<i32: 1>} : vector<1x128xi32>
    %c128_i32 = arith.constant 128 : i32
    %4 = vector.broadcast %c128_i32 : i32 to vector<1x128xi32>
    %5 = arith.cmpi slt, %3, %4 : vector<1x128xi32>
    %6 = tpu.iota {dimensions = array<i32: 1>} : vector<1x8xi32>
    %cst = arith.constant 0.000000e+00 : f32
    %7 = vector.broadcast %cst : f32 to vector<1x8xf32>
    %c0_3 = arith.constant 0 : index
    %c0_4 = arith.constant 0 : index
    %8 = vector.load %arg1[%c0_3, %c0_4] : memref<8x128xf32, #tpu.memory_space<vmem>>, vector<1x128xf32>
    %9 = vector.shape_cast %8 : vector<1x128xf32> to vector<1x128xf32>
    %10 = vector.broadcast %9 : vector<1x128xf32> to vector<8x128xf32>
    %cst_5 = arith.constant 0.000000e+00 : f32
    %11 = vector.broadcast %cst_5 : f32 to vector<8x128xf32>
    %cst_6 = arith.constant 0.000000e+00 : f32
    %12 = vector.broadcast %cst_6 : f32 to vector<8x128xf32>
    %cst_7 = arith.constant 0.000000e+00 : f32
    %13 = vector.broadcast %cst_7 : f32 to vector<8x128xf32>
    %cst_8 = arith.constant 0.000000e+00 : f32
    %14 = vector.broadcast %cst_8 : f32 to vector<8x128xf32>
    %c0_i32 = arith.constant 0 : i32
    %c32_i32 = arith.constant 32 : i32
    %15 = arith.muli %c0_i32, %c32_i32 : i32
    %16 = tpu.assume_multiple %15, 32 : i32
    %c0_i32_9 = arith.constant 0 : i32
    %17 = arith.addi %16, %c0_i32_9 : i32
    %18 = arith.index_cast %17 : i32 to index
    %c0_10 = arith.constant 0 : index
    %19 = vector.load %arg3[%18, %c0_10] : memref<128x8xf32, #tpu.memory_space<vmem>>, vector<8x1xf32>
    %20 = vector.broadcast %19 : vector<8x1xf32> to vector<8x128xf32>
    %21 = arith.subf %20, %10 : vector<8x128xf32>
    %22 = math.absf %21 : vector<8x128xf32>
    %23 = arith.addf %11, %22 : vector<8x128xf32>
    %c8_i32 = arith.constant 8 : i32
    %24 = arith.addi %16, %c8_i32 : i32
    %25 = arith.index_cast %24 : i32 to index
    %c0_11 = arith.constant 0 : index
    %26 = vector.load %arg3[%25, %c0_11] : memref<128x8xf32, #tpu.memory_space<vmem>>, vector<8x1xf32>
    %27 = vector.broadcast %26 : vector<8x1xf32> to vector<8x128xf32>
    %28 = arith.subf %27, %10 : vector<8x128xf32>
    %29 = math.absf %28 : vector<8x128xf32>
    %30 = arith.addf %12, %29 : vector<8x128xf32>
    %c16_i32 = arith.constant 16 : i32
    %31 = arith.addi %16, %c16_i32 : i32
    %32 = arith.index_cast %31 : i32 to index
    %c0_12 = arith.constant 0 : index
    %33 = vector.load %arg3[%32, %c0_12] : memref<128x8xf32, #tpu.memory_space<vmem>>, vector<8x1xf32>
    %34 = vector.broadcast %33 : vector<8x1xf32> to vector<8x128xf32>
    %35 = arith.subf %34, %10 : vector<8x128xf32>
    %36 = math.absf %35 : vector<8x128xf32>
    %37 = arith.addf %13, %36 : vector<8x128xf32>
    %c24_i32 = arith.constant 24 : i32
    %38 = arith.addi %16, %c24_i32 : i32
    %39 = arith.index_cast %38 : i32 to index
    %c0_13 = arith.constant 0 : index
    %40 = vector.load %arg3[%39, %c0_13] : memref<128x8xf32, #tpu.memory_space<vmem>>, vector<8x1xf32>
    %41 = vector.broadcast %40 : vector<8x1xf32> to vector<8x128xf32>
    %42 = arith.subf %41, %10 : vector<8x128xf32>
    %43 = math.absf %42 : vector<8x128xf32>
    %44 = arith.addf %14, %43 : vector<8x128xf32>
    %c1_i32 = arith.constant 1 : i32
    %c32_i32_14 = arith.constant 32 : i32
    %45 = arith.muli %c1_i32, %c32_i32_14 : i32
    %46 = tpu.assume_multiple %45, 32 : i32
    %c0_i32_15 = arith.constant 0 : i32
    %47 = arith.addi %46, %c0_i32_15 : i32
    %48 = arith.index_cast %47 : i32 to index
    %c0_16 = arith.constant 0 : index
    %49 = vector.load %arg3[%48, %c0_16] : memref<128x8xf32, #tpu.memory_space<vmem>>, vector<8x1xf32>
    %50 = vector.broadcast %49 : vector<8x1xf32> to vector<8x128xf32>
    %51 = arith.subf %50, %10 : vector<8x128xf32>
    %52 = math.absf %51 : vector<8x128xf32>
    %53 = arith.addf %23, %52 : vector<8x128xf32>
    %c8_i32_17 = arith.constant 8 : i32
    %54 = arith.addi %46, %c8_i32_17 : i32
    %55 = arith.index_cast %54 : i32 to index
    %c0_18 = arith.constant 0 : index
    %56 = vector.load %arg3[%55, %c0_18] : memref<128x8xf32, #tpu.memory_space<vmem>>, vector<8x1xf32>
    %57 = vector.broadcast %56 : vector<8x1xf32> to vector<8x128xf32>
    %58 = arith.subf %57, %10 : vector<8x128xf32>
    %59 = math.absf %58 : vector<8x128xf32>
    %60 = arith.addf %30, %59 : vector<8x128xf32>
    %c16_i32_19 = arith.constant 16 : i32
    %61 = arith.addi %46, %c16_i32_19 : i32
    %62 = arith.index_cast %61 : i32 to index
    %c0_20 = arith.constant 0 : index
    %63 = vector.load %arg3[%62, %c0_20] : memref<128x8xf32, #tpu.memory_space<vmem>>, vector<8x1xf32>
    %64 = vector.broadcast %63 : vector<8x1xf32> to vector<8x128xf32>
    %65 = arith.subf %64, %10 : vector<8x128xf32>
    %66 = math.absf %65 : vector<8x128xf32>
    %67 = arith.addf %37, %66 : vector<8x128xf32>
    %c24_i32_21 = arith.constant 24 : i32
    %68 = arith.addi %46, %c24_i32_21 : i32
    %69 = arith.index_cast %68 : i32 to index
    %c0_22 = arith.constant 0 : index
    %70 = vector.load %arg3[%69, %c0_22] : memref<128x8xf32, #tpu.memory_space<vmem>>, vector<8x1xf32>
    %71 = vector.broadcast %70 : vector<8x1xf32> to vector<8x128xf32>
    %72 = arith.subf %71, %10 : vector<8x128xf32>
    %73 = math.absf %72 : vector<8x128xf32>
    %74 = arith.addf %44, %73 : vector<8x128xf32>
    %c2_i32 = arith.constant 2 : i32
    %c32_i32_23 = arith.constant 32 : i32
    %75 = arith.muli %c2_i32, %c32_i32_23 : i32
    %76 = tpu.assume_multiple %75, 32 : i32
    %c0_i32_24 = arith.constant 0 : i32
    %77 = arith.addi %76, %c0_i32_24 : i32
    %78 = arith.index_cast %77 : i32 to index
    %c0_25 = arith.constant 0 : index
    %79 = vector.load %arg3[%78, %c0_25] : memref<128x8xf32, #tpu.memory_space<vmem>>, vector<8x1xf32>
    %80 = vector.broadcast %79 : vector<8x1xf32> to vector<8x128xf32>
    %81 = arith.subf %80, %10 : vector<8x128xf32>
    %82 = math.absf %81 : vector<8x128xf32>
    %83 = arith.addf %53, %82 : vector<8x128xf32>
    %c8_i32_26 = arith.constant 8 : i32
    %84 = arith.addi %76, %c8_i32_26 : i32
    %85 = arith.index_cast %84 : i32 to index
    %c0_27 = arith.constant 0 : index
    %86 = vector.load %arg3[%85, %c0_27] : memref<128x8xf32, #tpu.memory_space<vmem>>, vector<8x1xf32>
    %87 = vector.broadcast %86 : vector<8x1xf32> to vector<8x128xf32>
    %88 = arith.subf %87, %10 : vector<8x128xf32>
    %89 = math.absf %88 : vector<8x128xf32>
    %90 = arith.addf %60, %89 : vector<8x128xf32>
    %c16_i32_28 = arith.constant 16 : i32
    %91 = arith.addi %76, %c16_i32_28 : i32
    %92 = arith.index_cast %91 : i32 to index
    %c0_29 = arith.constant 0 : index
    %93 = vector.load %arg3[%92, %c0_29] : memref<128x8xf32, #tpu.memory_space<vmem>>, vector<8x1xf32>
    %94 = vector.broadcast %93 : vector<8x1xf32> to vector<8x128xf32>
    %95 = arith.subf %94, %10 : vector<8x128xf32>
    %96 = math.absf %95 : vector<8x128xf32>
    %97 = arith.addf %67, %96 : vector<8x128xf32>
    %c24_i32_30 = arith.constant 24 : i32
    %98 = arith.addi %76, %c24_i32_30 : i32
    %99 = arith.index_cast %98 : i32 to index
    %c0_31 = arith.constant 0 : index
    %100 = vector.load %arg3[%99, %c0_31] : memref<128x8xf32, #tpu.memory_space<vmem>>, vector<8x1xf32>
    %101 = vector.broadcast %100 : vector<8x1xf32> to vector<8x128xf32>
    %102 = arith.subf %101, %10 : vector<8x128xf32>
    %103 = math.absf %102 : vector<8x128xf32>
    %104 = arith.addf %74, %103 : vector<8x128xf32>
    %c3_i32 = arith.constant 3 : i32
    %c32_i32_32 = arith.constant 32 : i32
    %105 = arith.muli %c3_i32, %c32_i32_32 : i32
    %106 = tpu.assume_multiple %105, 32 : i32
    %c0_i32_33 = arith.constant 0 : i32
    %107 = arith.addi %106, %c0_i32_33 : i32
    %108 = arith.index_cast %107 : i32 to index
    %c0_34 = arith.constant 0 : index
    %109 = vector.load %arg3[%108, %c0_34] : memref<128x8xf32, #tpu.memory_space<vmem>>, vector<8x1xf32>
    %110 = vector.broadcast %109 : vector<8x1xf32> to vector<8x128xf32>
    %111 = arith.subf %110, %10 : vector<8x128xf32>
    %112 = math.absf %111 : vector<8x128xf32>
    %113 = arith.addf %83, %112 : vector<8x128xf32>
    %c8_i32_35 = arith.constant 8 : i32
    %114 = arith.addi %106, %c8_i32_35 : i32
    %115 = arith.index_cast %114 : i32 to index
    %c0_36 = arith.constant 0 : index
    %116 = vector.load %arg3[%115, %c0_36] : memref<128x8xf32, #tpu.memory_space<vmem>>, vector<8x1xf32>
    %117 = vector.broadcast %116 : vector<8x1xf32> to vector<8x128xf32>
    %118 = arith.subf %117, %10 : vector<8x128xf32>
    %119 = math.absf %118 : vector<8x128xf32>
    %120 = arith.addf %90, %119 : vector<8x128xf32>
    %c16_i32_37 = arith.constant 16 : i32
    %121 = arith.addi %106, %c16_i32_37 : i32
    %122 = arith.index_cast %121 : i32 to index
    %c0_38 = arith.constant 0 : index
    %123 = vector.load %arg3[%122, %c0_38] : memref<128x8xf32, #tpu.memory_space<vmem>>, vector<8x1xf32>
    %124 = vector.broadcast %123 : vector<8x1xf32> to vector<8x128xf32>
    %125 = arith.subf %124, %10 : vector<8x128xf32>
    %126 = math.absf %125 : vector<8x128xf32>
    %127 = arith.addf %97, %126 : vector<8x128xf32>
    %c24_i32_39 = arith.constant 24 : i32
    %128 = arith.addi %106, %c24_i32_39 : i32
    %129 = arith.index_cast %128 : i32 to index
    %c0_40 = arith.constant 0 : index
    %130 = vector.load %arg3[%129, %c0_40] : memref<128x8xf32, #tpu.memory_space<vmem>>, vector<8x1xf32>
    %131 = vector.broadcast %130 : vector<8x1xf32> to vector<8x128xf32>
    %132 = arith.subf %131, %10 : vector<8x128xf32>
    %133 = math.absf %132 : vector<8x128xf32>
    %134 = arith.addf %104, %133 : vector<8x128xf32>
    %c4_i32 = arith.constant 4 : i32
    %135 = arith.addf %113, %120 : vector<8x128xf32>
    %136 = arith.addf %135, %127 : vector<8x128xf32>
    %137 = arith.addf %136, %134 : vector<8x128xf32>
    %cst_41 = arith.constant dense<0.000000e+00> : vector<128xf32>
    %138 = vector.multi_reduction <add>, %137, %cst_41 [0] : vector<8x128xf32> to vector<128xf32>
    %139 = vector.shape_cast %138 : vector<128xf32> to vector<1x128xf32>
    %cst_42 = arith.constant 2.000000e+00 : f32
    %140 = vector.broadcast %cst_42 : f32 to vector<1x128xf32>
    %141 = arith.cmpf olt, %139, %140 : vector<1x128xf32>
    %142 = arith.andi %141, %5 : vector<1x128xi1>
    %cst_43 = arith.constant 1.000000e-01 : f32
    %cst_44 = arith.constant 0.000000e+00 : f32
    %143 = vector.broadcast %cst_43 : f32 to vector<1x128xf32>
    %144 = vector.broadcast %cst_44 : f32 to vector<1x128xf32>
    %145 = arith.select %142, %143, %144 : vector<1x128xi1>, vector<1x128xf32>
    %cst_45 = arith.constant dense<0.000000e+00> : vector<1xf32>
    %146 = vector.multi_reduction <add>, %145, %cst_45 [1] : vector<1x128xf32> to vector<1xf32>
    %147 = vector.shape_cast %146 : vector<1xf32> to vector<1x1xf32>
    %148 = arith.mulf %8, %145 : vector<1x128xf32>
    %cst_46 = arith.constant dense<0.000000e+00> : vector<1xf32>
    %149 = vector.multi_reduction <add>, %148, %cst_46 [1] : vector<1x128xf32> to vector<1xf32>
    %150 = vector.shape_cast %149 : vector<1xf32> to vector<1x1xf32>
    %151 = vector.broadcast %147 : vector<1x1xf32> to vector<1x128xf32>
    %152 = arith.mulf %8, %151 : vector<1x128xf32>
    %153 = vector.broadcast %150 : vector<1x1xf32> to vector<1x128xf32>
    %154 = arith.subf %153, %152 : vector<1x128xf32>
    %cst_47 = arith.constant 0.000000e+00 : f32
    %155 = vector.broadcast %cst_47 : f32 to vector<1x128xf32>
    %156 = arith.select %5, %154, %155 : vector<1x128xi1>, vector<1x128xf32>
    %157 = arith.mulf %156, %156 : vector<1x128xf32>
    %cst_48 = arith.constant dense<0.000000e+00> : vector<1xf32>
    %158 = vector.multi_reduction <add>, %157, %cst_48 [1] : vector<1x128xf32> to vector<1xf32>
    %159 = vector.shape_cast %158 : vector<1xf32> to vector<1x1xf32>
    %160 = math.sqrt %159 : vector<1x1xf32>
    %c0_i32_49 = arith.constant 0 : i32
    %161 = vector.broadcast %c0_i32_49 : i32 to vector<1x8xi32>
    %162 = arith.cmpi eq, %6, %161 : vector<1x8xi32>
    %cst_50 = arith.constant 0.000000e+00 : f32
    %163 = vector.shape_cast %160 : vector<1x1xf32> to vector<1x1xf32>
    %164 = vector.broadcast %163 : vector<1x1xf32> to vector<1x8xf32>
    %165 = vector.broadcast %cst_50 : f32 to vector<1x8xf32>
    %166 = arith.select %162, %164, %165 : vector<1x8xi1>, vector<1x8xf32>
    %167 = arith.addf %7, %166 : vector<1x8xf32>
    %c1 = arith.constant 1 : index
    %c0_51 = arith.constant 0 : index
    %168 = vector.load %arg1[%c1, %c0_51] : memref<8x128xf32, #tpu.memory_space<vmem>>, vector<1x128xf32>
    %169 = vector.shape_cast %168 : vector<1x128xf32> to vector<1x128xf32>
    %170 = vector.broadcast %169 : vector<1x128xf32> to vector<8x128xf32>
    %cst_52 = arith.constant 0.000000e+00 : f32
    %171 = vector.broadcast %cst_52 : f32 to vector<8x128xf32>
    %cst_53 = arith.constant 0.000000e+00 : f32
    %172 = vector.broadcast %cst_53 : f32 to vector<8x128xf32>
    %cst_54 = arith.constant 0.000000e+00 : f32
    %173 = vector.broadcast %cst_54 : f32 to vector<8x128xf32>
    %cst_55 = arith.constant 0.000000e+00 : f32
    %174 = vector.broadcast %cst_55 : f32 to vector<8x128xf32>
    %c0_i32_56 = arith.constant 0 : i32
    %c32_i32_57 = arith.constant 32 : i32
    %175 = arith.muli %c0_i32_56, %c32_i32_57 : i32
    %176 = tpu.assume_multiple %175, 32 : i32
    %c0_i32_58 = arith.constant 0 : i32
    %177 = arith.addi %176, %c0_i32_58 : i32
    %178 = arith.index_cast %177 : i32 to index
    %c1_59 = arith.constant 1 : index
    %179 = vector.load %arg3[%178, %c1_59] : memref<128x8xf32, #tpu.memory_space<vmem>>, vector<8x1xf32>
    %180 = vector.broadcast %179 : vector<8x1xf32> to vector<8x128xf32>
    %181 = arith.subf %180, %170 : vector<8x128xf32>
    %182 = math.absf %181 : vector<8x128xf32>
    %183 = arith.addf %171, %182 : vector<8x128xf32>
    %c8_i32_60 = arith.constant 8 : i32
    %184 = arith.addi %176, %c8_i32_60 : i32
    %185 = arith.index_cast %184 : i32 to index
    %c1_61 = arith.constant 1 : index
    %186 = vector.load %arg3[%185, %c1_61] : memref<128x8xf32, #tpu.memory_space<vmem>>, vector<8x1xf32>
    %187 = vector.broadcast %186 : vector<8x1xf32> to vector<8x128xf32>
    %188 = arith.subf %187, %170 : vector<8x128xf32>
    %189 = math.absf %188 : vector<8x128xf32>
    %190 = arith.addf %172, %189 : vector<8x128xf32>
    %c16_i32_62 = arith.constant 16 : i32
    %191 = arith.addi %176, %c16_i32_62 : i32
    %192 = arith.index_cast %191 : i32 to index
    %c1_63 = arith.constant 1 : index
    %193 = vector.load %arg3[%192, %c1_63] : memref<128x8xf32, #tpu.memory_space<vmem>>, vector<8x1xf32>
    %194 = vector.broadcast %193 : vector<8x1xf32> to vector<8x128xf32>
    %195 = arith.subf %194, %170 : vector<8x128xf32>
    %196 = math.absf %195 : vector<8x128xf32>
    %197 = arith.addf %173, %196 : vector<8x128xf32>
    %c24_i32_64 = arith.constant 24 : i32
    %198 = arith.addi %176, %c24_i32_64 : i32
    %199 = arith.index_cast %198 : i32 to index
    %c1_65 = arith.constant 1 : index
    %200 = vector.load %arg3[%199, %c1_65] : memref<128x8xf32, #tpu.memory_space<vmem>>, vector<8x1xf32>
    %201 = vector.broadcast %200 : vector<8x1xf32> to vector<8x128xf32>
    %202 = arith.subf %201, %170 : vector<8x128xf32>
    %203 = math.absf %202 : vector<8x128xf32>
    %204 = arith.addf %174, %203 : vector<8x128xf32>
    %c1_i32_66 = arith.constant 1 : i32
    %c32_i32_67 = arith.constant 32 : i32
    %205 = arith.muli %c1_i32_66, %c32_i32_67 : i32
    %206 = tpu.assume_multiple %205, 32 : i32
    %c0_i32_68 = arith.constant 0 : i32
    %207 = arith.addi %206, %c0_i32_68 : i32
    %208 = arith.index_cast %207 : i32 to index
    %c1_69 = arith.constant 1 : index
    %209 = vector.load %arg3[%208, %c1_69] : memref<128x8xf32, #tpu.memory_space<vmem>>, vector<8x1xf32>
    %210 = vector.broadcast %209 : vector<8x1xf32> to vector<8x128xf32>
    %211 = arith.subf %210, %170 : vector<8x128xf32>
    %212 = math.absf %211 : vector<8x128xf32>
    %213 = arith.addf %183, %212 : vector<8x128xf32>
    %c8_i32_70 = arith.constant 8 : i32
    %214 = arith.addi %206, %c8_i32_70 : i32
    %215 = arith.index_cast %214 : i32 to index
    %c1_71 = arith.constant 1 : index
    %216 = vector.load %arg3[%215, %c1_71] : memref<128x8xf32, #tpu.memory_space<vmem>>, vector<8x1xf32>
    %217 = vector.broadcast %216 : vector<8x1xf32> to vector<8x128xf32>
    %218 = arith.subf %217, %170 : vector<8x128xf32>
    %219 = math.absf %218 : vector<8x128xf32>
    %220 = arith.addf %190, %219 : vector<8x128xf32>
    %c16_i32_72 = arith.constant 16 : i32
    %221 = arith.addi %206, %c16_i32_72 : i32
    %222 = arith.index_cast %221 : i32 to index
    %c1_73 = arith.constant 1 : index
    %223 = vector.load %arg3[%222, %c1_73] : memref<128x8xf32, #tpu.memory_space<vmem>>, vector<8x1xf32>
    %224 = vector.broadcast %223 : vector<8x1xf32> to vector<8x128xf32>
    %225 = arith.subf %224, %170 : vector<8x128xf32>
    %226 = math.absf %225 : vector<8x128xf32>
    %227 = arith.addf %197, %226 : vector<8x128xf32>
    %c24_i32_74 = arith.constant 24 : i32
    %228 = arith.addi %206, %c24_i32_74 : i32
    %229 = arith.index_cast %228 : i32 to index
    %c1_75 = arith.constant 1 : index
    %230 = vector.load %arg3[%229, %c1_75] : memref<128x8xf32, #tpu.memory_space<vmem>>, vector<8x1xf32>
    %231 = vector.broadcast %230 : vector<8x1xf32> to vector<8x128xf32>
    %232 = arith.subf %231, %170 : vector<8x128xf32>
    %233 = math.absf %232 : vector<8x128xf32>
    %234 = arith.addf %204, %233 : vector<8x128xf32>
    %c2_i32_76 = arith.constant 2 : i32
    %c32_i32_77 = arith.constant 32 : i32
    %235 = arith.muli %c2_i32_76, %c32_i32_77 : i32
    %236 = tpu.assume_multiple %235, 32 : i32
    %c0_i32_78 = arith.constant 0 : i32
    %237 = arith.addi %236, %c0_i32_78 : i32
    %238 = arith.index_cast %237 : i32 to index
    %c1_79 = arith.constant 1 : index
    %239 = vector.load %arg3[%238, %c1_79] : memref<128x8xf32, #tpu.memory_space<vmem>>, vector<8x1xf32>
    %240 = vector.broadcast %239 : vector<8x1xf32> to vector<8x128xf32>
    %241 = arith.subf %240, %170 : vector<8x128xf32>
    %242 = math.absf %241 : vector<8x128xf32>
    %243 = arith.addf %213, %242 : vector<8x128xf32>
    %c8_i32_80 = arith.constant 8 : i32
    %244 = arith.addi %236, %c8_i32_80 : i32
    %245 = arith.index_cast %244 : i32 to index
    %c1_81 = arith.constant 1 : index
    %246 = vector.load %arg3[%245, %c1_81] : memref<128x8xf32, #tpu.memory_space<vmem>>, vector<8x1xf32>
    %247 = vector.broadcast %246 : vector<8x1xf32> to vector<8x128xf32>
    %248 = arith.subf %247, %170 : vector<8x128xf32>
    %249 = math.absf %248 : vector<8x128xf32>
    %250 = arith.addf %220, %249 : vector<8x128xf32>
    %c16_i32_82 = arith.constant 16 : i32
    %251 = arith.addi %236, %c16_i32_82 : i32
    %252 = arith.index_cast %251 : i32 to index
    %c1_83 = arith.constant 1 : index
    %253 = vector.load %arg3[%252, %c1_83] : memref<128x8xf32, #tpu.memory_space<vmem>>, vector<8x1xf32>
    %254 = vector.broadcast %253 : vector<8x1xf32> to vector<8x128xf32>
    %255 = arith.subf %254, %170 : vector<8x128xf32>
    %256 = math.absf %255 : vector<8x128xf32>
    %257 = arith.addf %227, %256 : vector<8x128xf32>
    %c24_i32_84 = arith.constant 24 : i32
    %258 = arith.addi %236, %c24_i32_84 : i32
    %259 = arith.index_cast %258 : i32 to index
    %c1_85 = arith.constant 1 : index
    %260 = vector.load %arg3[%259, %c1_85] : memref<128x8xf32, #tpu.memory_space<vmem>>, vector<8x1xf32>
    %261 = vector.broadcast %260 : vector<8x1xf32> to vector<8x128xf32>
    %262 = arith.subf %261, %170 : vector<8x128xf32>
    %263 = math.absf %262 : vector<8x128xf32>
    %264 = arith.addf %234, %263 : vector<8x128xf32>
    %c3_i32_86 = arith.constant 3 : i32
    %c32_i32_87 = arith.constant 32 : i32
    %265 = arith.muli %c3_i32_86, %c32_i32_87 : i32
    %266 = tpu.assume_multiple %265, 32 : i32
    %c0_i32_88 = arith.constant 0 : i32
    %267 = arith.addi %266, %c0_i32_88 : i32
    %268 = arith.index_cast %267 : i32 to index
    %c1_89 = arith.constant 1 : index
    %269 = vector.load %arg3[%268, %c1_89] : memref<128x8xf32, #tpu.memory_space<vmem>>, vector<8x1xf32>
    %270 = vector.broadcast %269 : vector<8x1xf32> to vector<8x128xf32>
    %271 = arith.subf %270, %170 : vector<8x128xf32>
    %272 = math.absf %271 : vector<8x128xf32>
    %273 = arith.addf %243, %272 : vector<8x128xf32>
    %c8_i32_90 = arith.constant 8 : i32
    %274 = arith.addi %266, %c8_i32_90 : i32
    %275 = arith.index_cast %274 : i32 to index
    %c1_91 = arith.constant 1 : index
    %276 = vector.load %arg3[%275, %c1_91] : memref<128x8xf32, #tpu.memory_space<vmem>>, vector<8x1xf32>
    %277 = vector.broadcast %276 : vector<8x1xf32> to vector<8x128xf32>
    %278 = arith.subf %277, %170 : vector<8x128xf32>
    %279 = math.absf %278 : vector<8x128xf32>
    %280 = arith.addf %250, %279 : vector<8x128xf32>
    %c16_i32_92 = arith.constant 16 : i32
    %281 = arith.addi %266, %c16_i32_92 : i32
    %282 = arith.index_cast %281 : i32 to index
    %c1_93 = arith.constant 1 : index
    %283 = vector.load %arg3[%282, %c1_93] : memref<128x8xf32, #tpu.memory_space<vmem>>, vector<8x1xf32>
    %284 = vector.broadcast %283 : vector<8x1xf32> to vector<8x128xf32>
    %285 = arith.subf %284, %170 : vector<8x128xf32>
    %286 = math.absf %285 : vector<8x128xf32>
    %287 = arith.addf %257, %286 : vector<8x128xf32>
    %c24_i32_94 = arith.constant 24 : i32
    %288 = arith.addi %266, %c24_i32_94 : i32
    %289 = arith.index_cast %288 : i32 to index
    %c1_95 = arith.constant 1 : index
    %290 = vector.load %arg3[%289, %c1_95] : memref<128x8xf32, #tpu.memory_space<vmem>>, vector<8x1xf32>
    %291 = vector.broadcast %290 : vector<8x1xf32> to vector<8x128xf32>
    %292 = arith.subf %291, %170 : vector<8x128xf32>
    %293 = math.absf %292 : vector<8x128xf32>
    %294 = arith.addf %264, %293 : vector<8x128xf32>
    %c4_i32_96 = arith.constant 4 : i32
    %295 = arith.addf %273, %280 : vector<8x128xf32>
    %296 = arith.addf %295, %287 : vector<8x128xf32>
    %297 = arith.addf %296, %294 : vector<8x128xf32>
    %cst_97 = arith.constant dense<0.000000e+00> : vector<128xf32>
    %298 = vector.multi_reduction <add>, %297, %cst_97 [0] : vector<8x128xf32> to vector<128xf32>
    %299 = vector.shape_cast %298 : vector<128xf32> to vector<1x128xf32>
    %cst_98 = arith.constant 2.000000e+00 : f32
    %300 = vector.broadcast %cst_98 : f32 to vector<1x128xf32>
    %301 = arith.cmpf olt, %299, %300 : vector<1x128xf32>
    %302 = arith.andi %301, %5 : vector<1x128xi1>
    %cst_99 = arith.constant 1.000000e-01 : f32
    %cst_100 = arith.constant 0.000000e+00 : f32
    %303 = vector.broadcast %cst_99 : f32 to vector<1x128xf32>
    %304 = vector.broadcast %cst_100 : f32 to vector<1x128xf32>
    %305 = arith.select %302, %303, %304 : vector<1x128xi1>, vector<1x128xf32>
    %cst_101 = arith.constant dense<0.000000e+00> : vector<1xf32>
    %306 = vector.multi_reduction <add>, %305, %cst_101 [1] : vector<1x128xf32> to vector<1xf32>
    %307 = vector.shape_cast %306 : vector<1xf32> to vector<1x1xf32>
    %308 = arith.mulf %168, %305 : vector<1x128xf32>
    %cst_102 = arith.constant dense<0.000000e+00> : vector<1xf32>
    %309 = vector.multi_reduction <add>, %308, %cst_102 [1] : vector<1x128xf32> to vector<1xf32>
    %310 = vector.shape_cast %309 : vector<1xf32> to vector<1x1xf32>
    %311 = vector.broadcast %307 : vector<1x1xf32> to vector<1x128xf32>
    %312 = arith.mulf %168, %311 : vector<1x128xf32>
    %313 = vector.broadcast %310 : vector<1x1xf32> to vector<1x128xf32>
    %314 = arith.subf %313, %312 : vector<1x128xf32>
    %cst_103 = arith.constant 0.000000e+00 : f32
    %315 = vector.broadcast %cst_103 : f32 to vector<1x128xf32>
    %316 = arith.select %5, %314, %315 : vector<1x128xi1>, vector<1x128xf32>
    %317 = arith.mulf %316, %316 : vector<1x128xf32>
    %cst_104 = arith.constant dense<0.000000e+00> : vector<1xf32>
    %318 = vector.multi_reduction <add>, %317, %cst_104 [1] : vector<1x128xf32> to vector<1xf32>
    %319 = vector.shape_cast %318 : vector<1xf32> to vector<1x1xf32>
    %320 = math.sqrt %319 : vector<1x1xf32>
    %c1_i32_105 = arith.constant 1 : i32
    %321 = vector.broadcast %c1_i32_105 : i32 to vector<1x8xi32>
    %322 = arith.cmpi eq, %6, %321 : vector<1x8xi32>
    %cst_106 = arith.constant 0.000000e+00 : f32
    %323 = vector.shape_cast %320 : vector<1x1xf32> to vector<1x1xf32>
    %324 = vector.broadcast %323 : vector<1x1xf32> to vector<1x8xf32>
    %325 = vector.broadcast %cst_106 : f32 to vector<1x8xf32>
    %326 = arith.select %322, %324, %325 : vector<1x8xi1>, vector<1x8xf32>
    %327 = arith.addf %167, %326 : vector<1x8xf32>
    %c2 = arith.constant 2 : index
    %c0_107 = arith.constant 0 : index
    %328 = vector.load %arg1[%c2, %c0_107] : memref<8x128xf32, #tpu.memory_space<vmem>>, vector<1x128xf32>
    %329 = vector.shape_cast %328 : vector<1x128xf32> to vector<1x128xf32>
    %330 = vector.broadcast %329 : vector<1x128xf32> to vector<8x128xf32>
    %cst_108 = arith.constant 0.000000e+00 : f32
    %331 = vector.broadcast %cst_108 : f32 to vector<8x128xf32>
    %cst_109 = arith.constant 0.000000e+00 : f32
    %332 = vector.broadcast %cst_109 : f32 to vector<8x128xf32>
    %cst_110 = arith.constant 0.000000e+00 : f32
    %333 = vector.broadcast %cst_110 : f32 to vector<8x128xf32>
    %cst_111 = arith.constant 0.000000e+00 : f32
    %334 = vector.broadcast %cst_111 : f32 to vector<8x128xf32>
    %c0_i32_112 = arith.constant 0 : i32
    %c32_i32_113 = arith.constant 32 : i32
    %335 = arith.muli %c0_i32_112, %c32_i32_113 : i32
    %336 = tpu.assume_multiple %335, 32 : i32
    %c0_i32_114 = arith.constant 0 : i32
    %337 = arith.addi %336, %c0_i32_114 : i32
    %338 = arith.index_cast %337 : i32 to index
    %c2_115 = arith.constant 2 : index
    %339 = vector.load %arg3[%338, %c2_115] : memref<128x8xf32, #tpu.memory_space<vmem>>, vector<8x1xf32>
    %340 = vector.broadcast %339 : vector<8x1xf32> to vector<8x128xf32>
    %341 = arith.subf %340, %330 : vector<8x128xf32>
    %342 = math.absf %341 : vector<8x128xf32>
    %343 = arith.addf %331, %342 : vector<8x128xf32>
    %c8_i32_116 = arith.constant 8 : i32
    %344 = arith.addi %336, %c8_i32_116 : i32
    %345 = arith.index_cast %344 : i32 to index
    %c2_117 = arith.constant 2 : index
    %346 = vector.load %arg3[%345, %c2_117] : memref<128x8xf32, #tpu.memory_space<vmem>>, vector<8x1xf32>
    %347 = vector.broadcast %346 : vector<8x1xf32> to vector<8x128xf32>
    %348 = arith.subf %347, %330 : vector<8x128xf32>
    %349 = math.absf %348 : vector<8x128xf32>
    %350 = arith.addf %332, %349 : vector<8x128xf32>
    %c16_i32_118 = arith.constant 16 : i32
    %351 = arith.addi %336, %c16_i32_118 : i32
    %352 = arith.index_cast %351 : i32 to index
    %c2_119 = arith.constant 2 : index
    %353 = vector.load %arg3[%352, %c2_119] : memref<128x8xf32, #tpu.memory_space<vmem>>, vector<8x1xf32>
    %354 = vector.broadcast %353 : vector<8x1xf32> to vector<8x128xf32>
    %355 = arith.subf %354, %330 : vector<8x128xf32>
    %356 = math.absf %355 : vector<8x128xf32>
    %357 = arith.addf %333, %356 : vector<8x128xf32>
    %c24_i32_120 = arith.constant 24 : i32
    %358 = arith.addi %336, %c24_i32_120 : i32
    %359 = arith.index_cast %358 : i32 to index
    %c2_121 = arith.constant 2 : index
    %360 = vector.load %arg3[%359, %c2_121] : memref<128x8xf32, #tpu.memory_space<vmem>>, vector<8x1xf32>
    %361 = vector.broadcast %360 : vector<8x1xf32> to vector<8x128xf32>
    %362 = arith.subf %361, %330 : vector<8x128xf32>
    %363 = math.absf %362 : vector<8x128xf32>
    %364 = arith.addf %334, %363 : vector<8x128xf32>
    %c1_i32_122 = arith.constant 1 : i32
    %c32_i32_123 = arith.constant 32 : i32
    %365 = arith.muli %c1_i32_122, %c32_i32_123 : i32
    %366 = tpu.assume_multiple %365, 32 : i32
    %c0_i32_124 = arith.constant 0 : i32
    %367 = arith.addi %366, %c0_i32_124 : i32
    %368 = arith.index_cast %367 : i32 to index
    %c2_125 = arith.constant 2 : index
    %369 = vector.load %arg3[%368, %c2_125] : memref<128x8xf32, #tpu.memory_space<vmem>>, vector<8x1xf32>
    %370 = vector.broadcast %369 : vector<8x1xf32> to vector<8x128xf32>
    %371 = arith.subf %370, %330 : vector<8x128xf32>
    %372 = math.absf %371 : vector<8x128xf32>
    %373 = arith.addf %343, %372 : vector<8x128xf32>
    %c8_i32_126 = arith.constant 8 : i32
    %374 = arith.addi %366, %c8_i32_126 : i32
    %375 = arith.index_cast %374 : i32 to index
    %c2_127 = arith.constant 2 : index
    %376 = vector.load %arg3[%375, %c2_127] : memref<128x8xf32, #tpu.memory_space<vmem>>, vector<8x1xf32>
    %377 = vector.broadcast %376 : vector<8x1xf32> to vector<8x128xf32>
    %378 = arith.subf %377, %330 : vector<8x128xf32>
    %379 = math.absf %378 : vector<8x128xf32>
    %380 = arith.addf %350, %379 : vector<8x128xf32>
    %c16_i32_128 = arith.constant 16 : i32
    %381 = arith.addi %366, %c16_i32_128 : i32
    %382 = arith.index_cast %381 : i32 to index
    %c2_129 = arith.constant 2 : index
    %383 = vector.load %arg3[%382, %c2_129] : memref<128x8xf32, #tpu.memory_space<vmem>>, vector<8x1xf32>
    %384 = vector.broadcast %383 : vector<8x1xf32> to vector<8x128xf32>
    %385 = arith.subf %384, %330 : vector<8x128xf32>
    %386 = math.absf %385 : vector<8x128xf32>
    %387 = arith.addf %357, %386 : vector<8x128xf32>
    %c24_i32_130 = arith.constant 24 : i32
    %388 = arith.addi %366, %c24_i32_130 : i32
    %389 = arith.index_cast %388 : i32 to index
    %c2_131 = arith.constant 2 : index
    %390 = vector.load %arg3[%389, %c2_131] : memref<128x8xf32, #tpu.memory_space<vmem>>, vector<8x1xf32>
    %391 = vector.broadcast %390 : vector<8x1xf32> to vector<8x128xf32>
    %392 = arith.subf %391, %330 : vector<8x128xf32>
    %393 = math.absf %392 : vector<8x128xf32>
    %394 = arith.addf %364, %393 : vector<8x128xf32>
    %c2_i32_132 = arith.constant 2 : i32
    %c32_i32_133 = arith.constant 32 : i32
    %395 = arith.muli %c2_i32_132, %c32_i32_133 : i32
    %396 = tpu.assume_multiple %395, 32 : i32
    %c0_i32_134 = arith.constant 0 : i32
    %397 = arith.addi %396, %c0_i32_134 : i32
    %398 = arith.index_cast %397 : i32 to index
    %c2_135 = arith.constant 2 : index
    %399 = vector.load %arg3[%398, %c2_135] : memref<128x8xf32, #tpu.memory_space<vmem>>, vector<8x1xf32>
    %400 = vector.broadcast %399 : vector<8x1xf32> to vector<8x128xf32>
    %401 = arith.subf %400, %330 : vector<8x128xf32>
    %402 = math.absf %401 : vector<8x128xf32>
    %403 = arith.addf %373, %402 : vector<8x128xf32>
    %c8_i32_136 = arith.constant 8 : i32
    %404 = arith.addi %396, %c8_i32_136 : i32
    %405 = arith.index_cast %404 : i32 to index
    %c2_137 = arith.constant 2 : index
    %406 = vector.load %arg3[%405, %c2_137] : memref<128x8xf32, #tpu.memory_space<vmem>>, vector<8x1xf32>
    %407 = vector.broadcast %406 : vector<8x1xf32> to vector<8x128xf32>
    %408 = arith.subf %407, %330 : vector<8x128xf32>
    %409 = math.absf %408 : vector<8x128xf32>
    %410 = arith.addf %380, %409 : vector<8x128xf32>
    %c16_i32_138 = arith.constant 16 : i32
    %411 = arith.addi %396, %c16_i32_138 : i32
    %412 = arith.index_cast %411 : i32 to index
    %c2_139 = arith.constant 2 : index
    %413 = vector.load %arg3[%412, %c2_139] : memref<128x8xf32, #tpu.memory_space<vmem>>, vector<8x1xf32>
    %414 = vector.broadcast %413 : vector<8x1xf32> to vector<8x128xf32>
    %415 = arith.subf %414, %330 : vector<8x128xf32>
    %416 = math.absf %415 : vector<8x128xf32>
    %417 = arith.addf %387, %416 : vector<8x128xf32>
    %c24_i32_140 = arith.constant 24 : i32
    %418 = arith.addi %396, %c24_i32_140 : i32
    %419 = arith.index_cast %418 : i32 to index
    %c2_141 = arith.constant 2 : index
    %420 = vector.load %arg3[%419, %c2_141] : memref<128x8xf32, #tpu.memory_space<vmem>>, vector<8x1xf32>
    %421 = vector.broadcast %420 : vector<8x1xf32> to vector<8x128xf32>
    %422 = arith.subf %421, %330 : vector<8x128xf32>
    %423 = math.absf %422 : vector<8x128xf32>
    %424 = arith.addf %394, %423 : vector<8x128xf32>
    %c3_i32_142 = arith.constant 3 : i32
    %c32_i32_143 = arith.constant 32 : i32
    %425 = arith.muli %c3_i32_142, %c32_i32_143 : i32
    %426 = tpu.assume_multiple %425, 32 : i32
    %c0_i32_144 = arith.constant 0 : i32
    %427 = arith.addi %426, %c0_i32_144 : i32
    %428 = arith.index_cast %427 : i32 to index
    %c2_145 = arith.constant 2 : index
    %429 = vector.load %arg3[%428, %c2_145] : memref<128x8xf32, #tpu.memory_space<vmem>>, vector<8x1xf32>
    %430 = vector.broadcast %429 : vector<8x1xf32> to vector<8x128xf32>
    %431 = arith.subf %430, %330 : vector<8x128xf32>
    %432 = math.absf %431 : vector<8x128xf32>
    %433 = arith.addf %403, %432 : vector<8x128xf32>
    %c8_i32_146 = arith.constant 8 : i32
    %434 = arith.addi %426, %c8_i32_146 : i32
    %435 = arith.index_cast %434 : i32 to index
    %c2_147 = arith.constant 2 : index
    %436 = vector.load %arg3[%435, %c2_147] : memref<128x8xf32, #tpu.memory_space<vmem>>, vector<8x1xf32>
    %437 = vector.broadcast %436 : vector<8x1xf32> to vector<8x128xf32>
    %438 = arith.subf %437, %330 : vector<8x128xf32>
    %439 = math.absf %438 : vector<8x128xf32>
    %440 = arith.addf %410, %439 : vector<8x128xf32>
    %c16_i32_148 = arith.constant 16 : i32
    %441 = arith.addi %426, %c16_i32_148 : i32
    %442 = arith.index_cast %441 : i32 to index
    %c2_149 = arith.constant 2 : index
    %443 = vector.load %arg3[%442, %c2_149] : memref<128x8xf32, #tpu.memory_space<vmem>>, vector<8x1xf32>
    %444 = vector.broadcast %443 : vector<8x1xf32> to vector<8x128xf32>
    %445 = arith.subf %444, %330 : vector<8x128xf32>
    %446 = math.absf %445 : vector<8x128xf32>
    %447 = arith.addf %417, %446 : vector<8x128xf32>
    %c24_i32_150 = arith.constant 24 : i32
    %448 = arith.addi %426, %c24_i32_150 : i32
    %449 = arith.index_cast %448 : i32 to index
    %c2_151 = arith.constant 2 : index
    %450 = vector.load %arg3[%449, %c2_151] : memref<128x8xf32, #tpu.memory_space<vmem>>, vector<8x1xf32>
    %451 = vector.broadcast %450 : vector<8x1xf32> to vector<8x128xf32>
    %452 = arith.subf %451, %330 : vector<8x128xf32>
    %453 = math.absf %452 : vector<8x128xf32>
    %454 = arith.addf %424, %453 : vector<8x128xf32>
    %c4_i32_152 = arith.constant 4 : i32
    %455 = arith.addf %433, %440 : vector<8x128xf32>
    %456 = arith.addf %455, %447 : vector<8x128xf32>
    %457 = arith.addf %456, %454 : vector<8x128xf32>
    %cst_153 = arith.constant dense<0.000000e+00> : vector<128xf32>
    %458 = vector.multi_reduction <add>, %457, %cst_153 [0] : vector<8x128xf32> to vector<128xf32>
    %459 = vector.shape_cast %458 : vector<128xf32> to vector<1x128xf32>
    %cst_154 = arith.constant 2.000000e+00 : f32
    %460 = vector.broadcast %cst_154 : f32 to vector<1x128xf32>
    %461 = arith.cmpf olt, %459, %460 : vector<1x128xf32>
    %462 = arith.andi %461, %5 : vector<1x128xi1>
    %cst_155 = arith.constant 1.000000e-01 : f32
    %cst_156 = arith.constant 0.000000e+00 : f32
    %463 = vector.broadcast %cst_155 : f32 to vector<1x128xf32>
    %464 = vector.broadcast %cst_156 : f32 to vector<1x128xf32>
    %465 = arith.select %462, %463, %464 : vector<1x128xi1>, vector<1x128xf32>
    %cst_157 = arith.constant dense<0.000000e+00> : vector<1xf32>
    %466 = vector.multi_reduction <add>, %465, %cst_157 [1] : vector<1x128xf32> to vector<1xf32>
    %467 = vector.shape_cast %466 : vector<1xf32> to vector<1x1xf32>
    %468 = arith.mulf %328, %465 : vector<1x128xf32>
    %cst_158 = arith.constant dense<0.000000e+00> : vector<1xf32>
    %469 = vector.multi_reduction <add>, %468, %cst_158 [1] : vector<1x128xf32> to vector<1xf32>
    %470 = vector.shape_cast %469 : vector<1xf32> to vector<1x1xf32>
    %471 = vector.broadcast %467 : vector<1x1xf32> to vector<1x128xf32>
    %472 = arith.mulf %328, %471 : vector<1x128xf32>
    %473 = vector.broadcast %470 : vector<1x1xf32> to vector<1x128xf32>
    %474 = arith.subf %473, %472 : vector<1x128xf32>
    %cst_159 = arith.constant 0.000000e+00 : f32
    %475 = vector.broadcast %cst_159 : f32 to vector<1x128xf32>
    %476 = arith.select %5, %474, %475 : vector<1x128xi1>, vector<1x128xf32>
    %477 = arith.mulf %476, %476 : vector<1x128xf32>
    %cst_160 = arith.constant dense<0.000000e+00> : vector<1xf32>
    %478 = vector.multi_reduction <add>, %477, %cst_160 [1] : vector<1x128xf32> to vector<1xf32>
    %479 = vector.shape_cast %478 : vector<1xf32> to vector<1x1xf32>
    %480 = math.sqrt %479 : vector<1x1xf32>
    %c2_i32_161 = arith.constant 2 : i32
    %481 = vector.broadcast %c2_i32_161 : i32 to vector<1x8xi32>
    %482 = arith.cmpi eq, %6, %481 : vector<1x8xi32>
    %cst_162 = arith.constant 0.000000e+00 : f32
    %483 = vector.shape_cast %480 : vector<1x1xf32> to vector<1x1xf32>
    %484 = vector.broadcast %483 : vector<1x1xf32> to vector<1x8xf32>
    %485 = vector.broadcast %cst_162 : f32 to vector<1x8xf32>
    %486 = arith.select %482, %484, %485 : vector<1x8xi1>, vector<1x8xf32>
    %487 = arith.addf %327, %486 : vector<1x8xf32>
    %c3 = arith.constant 3 : index
    %c0_163 = arith.constant 0 : index
    %488 = vector.load %arg1[%c3, %c0_163] : memref<8x128xf32, #tpu.memory_space<vmem>>, vector<1x128xf32>
    %489 = vector.shape_cast %488 : vector<1x128xf32> to vector<1x128xf32>
    %490 = vector.broadcast %489 : vector<1x128xf32> to vector<8x128xf32>
    %cst_164 = arith.constant 0.000000e+00 : f32
    %491 = vector.broadcast %cst_164 : f32 to vector<8x128xf32>
    %cst_165 = arith.constant 0.000000e+00 : f32
    %492 = vector.broadcast %cst_165 : f32 to vector<8x128xf32>
    %cst_166 = arith.constant 0.000000e+00 : f32
    %493 = vector.broadcast %cst_166 : f32 to vector<8x128xf32>
    %cst_167 = arith.constant 0.000000e+00 : f32
    %494 = vector.broadcast %cst_167 : f32 to vector<8x128xf32>
    %c0_i32_168 = arith.constant 0 : i32
    %c32_i32_169 = arith.constant 32 : i32
    %495 = arith.muli %c0_i32_168, %c32_i32_169 : i32
    %496 = tpu.assume_multiple %495, 32 : i32
    %c0_i32_170 = arith.constant 0 : i32
    %497 = arith.addi %496, %c0_i32_170 : i32
    %498 = arith.index_cast %497 : i32 to index
    %c3_171 = arith.constant 3 : index
    %499 = vector.load %arg3[%498, %c3_171] : memref<128x8xf32, #tpu.memory_space<vmem>>, vector<8x1xf32>
    %500 = vector.broadcast %499 : vector<8x1xf32> to vector<8x128xf32>
    %501 = arith.subf %500, %490 : vector<8x128xf32>
    %502 = math.absf %501 : vector<8x128xf32>
    %503 = arith.addf %491, %502 : vector<8x128xf32>
    %c8_i32_172 = arith.constant 8 : i32
    %504 = arith.addi %496, %c8_i32_172 : i32
    %505 = arith.index_cast %504 : i32 to index
    %c3_173 = arith.constant 3 : index
    %506 = vector.load %arg3[%505, %c3_173] : memref<128x8xf32, #tpu.memory_space<vmem>>, vector<8x1xf32>
    %507 = vector.broadcast %506 : vector<8x1xf32> to vector<8x128xf32>
    %508 = arith.subf %507, %490 : vector<8x128xf32>
    %509 = math.absf %508 : vector<8x128xf32>
    %510 = arith.addf %492, %509 : vector<8x128xf32>
    %c16_i32_174 = arith.constant 16 : i32
    %511 = arith.addi %496, %c16_i32_174 : i32
    %512 = arith.index_cast %511 : i32 to index
    %c3_175 = arith.constant 3 : index
    %513 = vector.load %arg3[%512, %c3_175] : memref<128x8xf32, #tpu.memory_space<vmem>>, vector<8x1xf32>
    %514 = vector.broadcast %513 : vector<8x1xf32> to vector<8x128xf32>
    %515 = arith.subf %514, %490 : vector<8x128xf32>
    %516 = math.absf %515 : vector<8x128xf32>
    %517 = arith.addf %493, %516 : vector<8x128xf32>
    %c24_i32_176 = arith.constant 24 : i32
    %518 = arith.addi %496, %c24_i32_176 : i32
    %519 = arith.index_cast %518 : i32 to index
    %c3_177 = arith.constant 3 : index
    %520 = vector.load %arg3[%519, %c3_177] : memref<128x8xf32, #tpu.memory_space<vmem>>, vector<8x1xf32>
    %521 = vector.broadcast %520 : vector<8x1xf32> to vector<8x128xf32>
    %522 = arith.subf %521, %490 : vector<8x128xf32>
    %523 = math.absf %522 : vector<8x128xf32>
    %524 = arith.addf %494, %523 : vector<8x128xf32>
    %c1_i32_178 = arith.constant 1 : i32
    %c32_i32_179 = arith.constant 32 : i32
    %525 = arith.muli %c1_i32_178, %c32_i32_179 : i32
    %526 = tpu.assume_multiple %525, 32 : i32
    %c0_i32_180 = arith.constant 0 : i32
    %527 = arith.addi %526, %c0_i32_180 : i32
    %528 = arith.index_cast %527 : i32 to index
    %c3_181 = arith.constant 3 : index
    %529 = vector.load %arg3[%528, %c3_181] : memref<128x8xf32, #tpu.memory_space<vmem>>, vector<8x1xf32>
    %530 = vector.broadcast %529 : vector<8x1xf32> to vector<8x128xf32>
    %531 = arith.subf %530, %490 : vector<8x128xf32>
    %532 = math.absf %531 : vector<8x128xf32>
    %533 = arith.addf %503, %532 : vector<8x128xf32>
    %c8_i32_182 = arith.constant 8 : i32
    %534 = arith.addi %526, %c8_i32_182 : i32
    %535 = arith.index_cast %534 : i32 to index
    %c3_183 = arith.constant 3 : index
    %536 = vector.load %arg3[%535, %c3_183] : memref<128x8xf32, #tpu.memory_space<vmem>>, vector<8x1xf32>
    %537 = vector.broadcast %536 : vector<8x1xf32> to vector<8x128xf32>
    %538 = arith.subf %537, %490 : vector<8x128xf32>
    %539 = math.absf %538 : vector<8x128xf32>
    %540 = arith.addf %510, %539 : vector<8x128xf32>
    %c16_i32_184 = arith.constant 16 : i32
    %541 = arith.addi %526, %c16_i32_184 : i32
    %542 = arith.index_cast %541 : i32 to index
    %c3_185 = arith.constant 3 : index
    %543 = vector.load %arg3[%542, %c3_185] : memref<128x8xf32, #tpu.memory_space<vmem>>, vector<8x1xf32>
    %544 = vector.broadcast %543 : vector<8x1xf32> to vector<8x128xf32>
    %545 = arith.subf %544, %490 : vector<8x128xf32>
    %546 = math.absf %545 : vector<8x128xf32>
    %547 = arith.addf %517, %546 : vector<8x128xf32>
    %c24_i32_186 = arith.constant 24 : i32
    %548 = arith.addi %526, %c24_i32_186 : i32
    %549 = arith.index_cast %548 : i32 to index
    %c3_187 = arith.constant 3 : index
    %550 = vector.load %arg3[%549, %c3_187] : memref<128x8xf32, #tpu.memory_space<vmem>>, vector<8x1xf32>
    %551 = vector.broadcast %550 : vector<8x1xf32> to vector<8x128xf32>
    %552 = arith.subf %551, %490 : vector<8x128xf32>
    %553 = math.absf %552 : vector<8x128xf32>
    %554 = arith.addf %524, %553 : vector<8x128xf32>
    %c2_i32_188 = arith.constant 2 : i32
    %c32_i32_189 = arith.constant 32 : i32
    %555 = arith.muli %c2_i32_188, %c32_i32_189 : i32
    %556 = tpu.assume_multiple %555, 32 : i32
    %c0_i32_190 = arith.constant 0 : i32
    %557 = arith.addi %556, %c0_i32_190 : i32
    %558 = arith.index_cast %557 : i32 to index
    %c3_191 = arith.constant 3 : index
    %559 = vector.load %arg3[%558, %c3_191] : memref<128x8xf32, #tpu.memory_space<vmem>>, vector<8x1xf32>
    %560 = vector.broadcast %559 : vector<8x1xf32> to vector<8x128xf32>
    %561 = arith.subf %560, %490 : vector<8x128xf32>
    %562 = math.absf %561 : vector<8x128xf32>
    %563 = arith.addf %533, %562 : vector<8x128xf32>
    %c8_i32_192 = arith.constant 8 : i32
    %564 = arith.addi %556, %c8_i32_192 : i32
    %565 = arith.index_cast %564 : i32 to index
    %c3_193 = arith.constant 3 : index
    %566 = vector.load %arg3[%565, %c3_193] : memref<128x8xf32, #tpu.memory_space<vmem>>, vector<8x1xf32>
    %567 = vector.broadcast %566 : vector<8x1xf32> to vector<8x128xf32>
    %568 = arith.subf %567, %490 : vector<8x128xf32>
    %569 = math.absf %568 : vector<8x128xf32>
    %570 = arith.addf %540, %569 : vector<8x128xf32>
    %c16_i32_194 = arith.constant 16 : i32
    %571 = arith.addi %556, %c16_i32_194 : i32
    %572 = arith.index_cast %571 : i32 to index
    %c3_195 = arith.constant 3 : index
    %573 = vector.load %arg3[%572, %c3_195] : memref<128x8xf32, #tpu.memory_space<vmem>>, vector<8x1xf32>
    %574 = vector.broadcast %573 : vector<8x1xf32> to vector<8x128xf32>
    %575 = arith.subf %574, %490 : vector<8x128xf32>
    %576 = math.absf %575 : vector<8x128xf32>
    %577 = arith.addf %547, %576 : vector<8x128xf32>
    %c24_i32_196 = arith.constant 24 : i32
    %578 = arith.addi %556, %c24_i32_196 : i32
    %579 = arith.index_cast %578 : i32 to index
    %c3_197 = arith.constant 3 : index
    %580 = vector.load %arg3[%579, %c3_197] : memref<128x8xf32, #tpu.memory_space<vmem>>, vector<8x1xf32>
    %581 = vector.broadcast %580 : vector<8x1xf32> to vector<8x128xf32>
    %582 = arith.subf %581, %490 : vector<8x128xf32>
    %583 = math.absf %582 : vector<8x128xf32>
    %584 = arith.addf %554, %583 : vector<8x128xf32>
    %c3_i32_198 = arith.constant 3 : i32
    %c32_i32_199 = arith.constant 32 : i32
    %585 = arith.muli %c3_i32_198, %c32_i32_199 : i32
    %586 = tpu.assume_multiple %585, 32 : i32
    %c0_i32_200 = arith.constant 0 : i32
    %587 = arith.addi %586, %c0_i32_200 : i32
    %588 = arith.index_cast %587 : i32 to index
    %c3_201 = arith.constant 3 : index
    %589 = vector.load %arg3[%588, %c3_201] : memref<128x8xf32, #tpu.memory_space<vmem>>, vector<8x1xf32>
    %590 = vector.broadcast %589 : vector<8x1xf32> to vector<8x128xf32>
    %591 = arith.subf %590, %490 : vector<8x128xf32>
    %592 = math.absf %591 : vector<8x128xf32>
    %593 = arith.addf %563, %592 : vector<8x128xf32>
    %c8_i32_202 = arith.constant 8 : i32
    %594 = arith.addi %586, %c8_i32_202 : i32
    %595 = arith.index_cast %594 : i32 to index
    %c3_203 = arith.constant 3 : index
    %596 = vector.load %arg3[%595, %c3_203] : memref<128x8xf32, #tpu.memory_space<vmem>>, vector<8x1xf32>
    %597 = vector.broadcast %596 : vector<8x1xf32> to vector<8x128xf32>
    %598 = arith.subf %597, %490 : vector<8x128xf32>
    %599 = math.absf %598 : vector<8x128xf32>
    %600 = arith.addf %570, %599 : vector<8x128xf32>
    %c16_i32_204 = arith.constant 16 : i32
    %601 = arith.addi %586, %c16_i32_204 : i32
    %602 = arith.index_cast %601 : i32 to index
    %c3_205 = arith.constant 3 : index
    %603 = vector.load %arg3[%602, %c3_205] : memref<128x8xf32, #tpu.memory_space<vmem>>, vector<8x1xf32>
    %604 = vector.broadcast %603 : vector<8x1xf32> to vector<8x128xf32>
    %605 = arith.subf %604, %490 : vector<8x128xf32>
    %606 = math.absf %605 : vector<8x128xf32>
    %607 = arith.addf %577, %606 : vector<8x128xf32>
    %c24_i32_206 = arith.constant 24 : i32
    %608 = arith.addi %586, %c24_i32_206 : i32
    %609 = arith.index_cast %608 : i32 to index
    %c3_207 = arith.constant 3 : index
    %610 = vector.load %arg3[%609, %c3_207] : memref<128x8xf32, #tpu.memory_space<vmem>>, vector<8x1xf32>
    %611 = vector.broadcast %610 : vector<8x1xf32> to vector<8x128xf32>
    %612 = arith.subf %611, %490 : vector<8x128xf32>
    %613 = math.absf %612 : vector<8x128xf32>
    %614 = arith.addf %584, %613 : vector<8x128xf32>
    %c4_i32_208 = arith.constant 4 : i32
    %615 = arith.addf %593, %600 : vector<8x128xf32>
    %616 = arith.addf %615, %607 : vector<8x128xf32>
    %617 = arith.addf %616, %614 : vector<8x128xf32>
    %cst_209 = arith.constant dense<0.000000e+00> : vector<128xf32>
    %618 = vector.multi_reduction <add>, %617, %cst_209 [0] : vector<8x128xf32> to vector<128xf32>
    %619 = vector.shape_cast %618 : vector<128xf32> to vector<1x128xf32>
    %cst_210 = arith.constant 2.000000e+00 : f32
    %620 = vector.broadcast %cst_210 : f32 to vector<1x128xf32>
    %621 = arith.cmpf olt, %619, %620 : vector<1x128xf32>
    %622 = arith.andi %621, %5 : vector<1x128xi1>
    %cst_211 = arith.constant 1.000000e-01 : f32
    %cst_212 = arith.constant 0.000000e+00 : f32
    %623 = vector.broadcast %cst_211 : f32 to vector<1x128xf32>
    %624 = vector.broadcast %cst_212 : f32 to vector<1x128xf32>
    %625 = arith.select %622, %623, %624 : vector<1x128xi1>, vector<1x128xf32>
    %cst_213 = arith.constant dense<0.000000e+00> : vector<1xf32>
    %626 = vector.multi_reduction <add>, %625, %cst_213 [1] : vector<1x128xf32> to vector<1xf32>
    %627 = vector.shape_cast %626 : vector<1xf32> to vector<1x1xf32>
    %628 = arith.mulf %488, %625 : vector<1x128xf32>
    %cst_214 = arith.constant dense<0.000000e+00> : vector<1xf32>
    %629 = vector.multi_reduction <add>, %628, %cst_214 [1] : vector<1x128xf32> to vector<1xf32>
    %630 = vector.shape_cast %629 : vector<1xf32> to vector<1x1xf32>
    %631 = vector.broadcast %627 : vector<1x1xf32> to vector<1x128xf32>
    %632 = arith.mulf %488, %631 : vector<1x128xf32>
    %633 = vector.broadcast %630 : vector<1x1xf32> to vector<1x128xf32>
    %634 = arith.subf %633, %632 : vector<1x128xf32>
    %cst_215 = arith.constant 0.000000e+00 : f32
    %635 = vector.broadcast %cst_215 : f32 to vector<1x128xf32>
    %636 = arith.select %5, %634, %635 : vector<1x128xi1>, vector<1x128xf32>
    %637 = arith.mulf %636, %636 : vector<1x128xf32>
    %cst_216 = arith.constant dense<0.000000e+00> : vector<1xf32>
    %638 = vector.multi_reduction <add>, %637, %cst_216 [1] : vector<1x128xf32> to vector<1xf32>
    %639 = vector.shape_cast %638 : vector<1xf32> to vector<1x1xf32>
    %640 = math.sqrt %639 : vector<1x1xf32>
    %c3_i32_217 = arith.constant 3 : i32
    %641 = vector.broadcast %c3_i32_217 : i32 to vector<1x8xi32>
    %642 = arith.cmpi eq, %6, %641 : vector<1x8xi32>
    %cst_218 = arith.constant 0.000000e+00 : f32
    %643 = vector.shape_cast %640 : vector<1x1xf32> to vector<1x1xf32>
    %644 = vector.broadcast %643 : vector<1x1xf32> to vector<1x8xf32>
    %645 = vector.broadcast %cst_218 : f32 to vector<1x8xf32>
    %646 = arith.select %642, %644, %645 : vector<1x8xi1>, vector<1x8xf32>
    %647 = arith.addf %487, %646 : vector<1x8xf32>
    %c4 = arith.constant 4 : index
    %c0_219 = arith.constant 0 : index
    %648 = vector.load %arg1[%c4, %c0_219] : memref<8x128xf32, #tpu.memory_space<vmem>>, vector<1x128xf32>
    %649 = vector.shape_cast %648 : vector<1x128xf32> to vector<1x128xf32>
    %650 = vector.broadcast %649 : vector<1x128xf32> to vector<8x128xf32>
    %cst_220 = arith.constant 0.000000e+00 : f32
    %651 = vector.broadcast %cst_220 : f32 to vector<8x128xf32>
    %cst_221 = arith.constant 0.000000e+00 : f32
    %652 = vector.broadcast %cst_221 : f32 to vector<8x128xf32>
    %cst_222 = arith.constant 0.000000e+00 : f32
    %653 = vector.broadcast %cst_222 : f32 to vector<8x128xf32>
    %cst_223 = arith.constant 0.000000e+00 : f32
    %654 = vector.broadcast %cst_223 : f32 to vector<8x128xf32>
    %c0_i32_224 = arith.constant 0 : i32
    %c32_i32_225 = arith.constant 32 : i32
    %655 = arith.muli %c0_i32_224, %c32_i32_225 : i32
    %656 = tpu.assume_multiple %655, 32 : i32
    %c0_i32_226 = arith.constant 0 : i32
    %657 = arith.addi %656, %c0_i32_226 : i32
    %658 = arith.index_cast %657 : i32 to index
    %c4_227 = arith.constant 4 : index
    %659 = vector.load %arg3[%658, %c4_227] : memref<128x8xf32, #tpu.memory_space<vmem>>, vector<8x1xf32>
    %660 = vector.broadcast %659 : vector<8x1xf32> to vector<8x128xf32>
    %661 = arith.subf %660, %650 : vector<8x128xf32>
    %662 = math.absf %661 : vector<8x128xf32>
    %663 = arith.addf %651, %662 : vector<8x128xf32>
    %c8_i32_228 = arith.constant 8 : i32
    %664 = arith.addi %656, %c8_i32_228 : i32
    %665 = arith.index_cast %664 : i32 to index
    %c4_229 = arith.constant 4 : index
    %666 = vector.load %arg3[%665, %c4_229] : memref<128x8xf32, #tpu.memory_space<vmem>>, vector<8x1xf32>
    %667 = vector.broadcast %666 : vector<8x1xf32> to vector<8x128xf32>
    %668 = arith.subf %667, %650 : vector<8x128xf32>
    %669 = math.absf %668 : vector<8x128xf32>
    %670 = arith.addf %652, %669 : vector<8x128xf32>
    %c16_i32_230 = arith.constant 16 : i32
    %671 = arith.addi %656, %c16_i32_230 : i32
    %672 = arith.index_cast %671 : i32 to index
    %c4_231 = arith.constant 4 : index
    %673 = vector.load %arg3[%672, %c4_231] : memref<128x8xf32, #tpu.memory_space<vmem>>, vector<8x1xf32>
    %674 = vector.broadcast %673 : vector<8x1xf32> to vector<8x128xf32>
    %675 = arith.subf %674, %650 : vector<8x128xf32>
    %676 = math.absf %675 : vector<8x128xf32>
    %677 = arith.addf %653, %676 : vector<8x128xf32>
    %c24_i32_232 = arith.constant 24 : i32
    %678 = arith.addi %656, %c24_i32_232 : i32
    %679 = arith.index_cast %678 : i32 to index
    %c4_233 = arith.constant 4 : index
    %680 = vector.load %arg3[%679, %c4_233] : memref<128x8xf32, #tpu.memory_space<vmem>>, vector<8x1xf32>
    %681 = vector.broadcast %680 : vector<8x1xf32> to vector<8x128xf32>
    %682 = arith.subf %681, %650 : vector<8x128xf32>
    %683 = math.absf %682 : vector<8x128xf32>
    %684 = arith.addf %654, %683 : vector<8x128xf32>
    %c1_i32_234 = arith.constant 1 : i32
    %c32_i32_235 = arith.constant 32 : i32
    %685 = arith.muli %c1_i32_234, %c32_i32_235 : i32
    %686 = tpu.assume_multiple %685, 32 : i32
    %c0_i32_236 = arith.constant 0 : i32
    %687 = arith.addi %686, %c0_i32_236 : i32
    %688 = arith.index_cast %687 : i32 to index
    %c4_237 = arith.constant 4 : index
    %689 = vector.load %arg3[%688, %c4_237] : memref<128x8xf32, #tpu.memory_space<vmem>>, vector<8x1xf32>
    %690 = vector.broadcast %689 : vector<8x1xf32> to vector<8x128xf32>
    %691 = arith.subf %690, %650 : vector<8x128xf32>
    %692 = math.absf %691 : vector<8x128xf32>
    %693 = arith.addf %663, %692 : vector<8x128xf32>
    %c8_i32_238 = arith.constant 8 : i32
    %694 = arith.addi %686, %c8_i32_238 : i32
    %695 = arith.index_cast %694 : i32 to index
    %c4_239 = arith.constant 4 : index
    %696 = vector.load %arg3[%695, %c4_239] : memref<128x8xf32, #tpu.memory_space<vmem>>, vector<8x1xf32>
    %697 = vector.broadcast %696 : vector<8x1xf32> to vector<8x128xf32>
    %698 = arith.subf %697, %650 : vector<8x128xf32>
    %699 = math.absf %698 : vector<8x128xf32>
    %700 = arith.addf %670, %699 : vector<8x128xf32>
    %c16_i32_240 = arith.constant 16 : i32
    %701 = arith.addi %686, %c16_i32_240 : i32
    %702 = arith.index_cast %701 : i32 to index
    %c4_241 = arith.constant 4 : index
    %703 = vector.load %arg3[%702, %c4_241] : memref<128x8xf32, #tpu.memory_space<vmem>>, vector<8x1xf32>
    %704 = vector.broadcast %703 : vector<8x1xf32> to vector<8x128xf32>
    %705 = arith.subf %704, %650 : vector<8x128xf32>
    %706 = math.absf %705 : vector<8x128xf32>
    %707 = arith.addf %677, %706 : vector<8x128xf32>
    %c24_i32_242 = arith.constant 24 : i32
    %708 = arith.addi %686, %c24_i32_242 : i32
    %709 = arith.index_cast %708 : i32 to index
    %c4_243 = arith.constant 4 : index
    %710 = vector.load %arg3[%709, %c4_243] : memref<128x8xf32, #tpu.memory_space<vmem>>, vector<8x1xf32>
    %711 = vector.broadcast %710 : vector<8x1xf32> to vector<8x128xf32>
    %712 = arith.subf %711, %650 : vector<8x128xf32>
    %713 = math.absf %712 : vector<8x128xf32>
    %714 = arith.addf %684, %713 : vector<8x128xf32>
    %c2_i32_244 = arith.constant 2 : i32
    %c32_i32_245 = arith.constant 32 : i32
    %715 = arith.muli %c2_i32_244, %c32_i32_245 : i32
    %716 = tpu.assume_multiple %715, 32 : i32
    %c0_i32_246 = arith.constant 0 : i32
    %717 = arith.addi %716, %c0_i32_246 : i32
    %718 = arith.index_cast %717 : i32 to index
    %c4_247 = arith.constant 4 : index
    %719 = vector.load %arg3[%718, %c4_247] : memref<128x8xf32, #tpu.memory_space<vmem>>, vector<8x1xf32>
    %720 = vector.broadcast %719 : vector<8x1xf32> to vector<8x128xf32>
    %721 = arith.subf %720, %650 : vector<8x128xf32>
    %722 = math.absf %721 : vector<8x128xf32>
    %723 = arith.addf %693, %722 : vector<8x128xf32>
    %c8_i32_248 = arith.constant 8 : i32
    %724 = arith.addi %716, %c8_i32_248 : i32
    %725 = arith.index_cast %724 : i32 to index
    %c4_249 = arith.constant 4 : index
    %726 = vector.load %arg3[%725, %c4_249] : memref<128x8xf32, #tpu.memory_space<vmem>>, vector<8x1xf32>
    %727 = vector.broadcast %726 : vector<8x1xf32> to vector<8x128xf32>
    %728 = arith.subf %727, %650 : vector<8x128xf32>
    %729 = math.absf %728 : vector<8x128xf32>
    %730 = arith.addf %700, %729 : vector<8x128xf32>
    %c16_i32_250 = arith.constant 16 : i32
    %731 = arith.addi %716, %c16_i32_250 : i32
    %732 = arith.index_cast %731 : i32 to index
    %c4_251 = arith.constant 4 : index
    %733 = vector.load %arg3[%732, %c4_251] : memref<128x8xf32, #tpu.memory_space<vmem>>, vector<8x1xf32>
    %734 = vector.broadcast %733 : vector<8x1xf32> to vector<8x128xf32>
    %735 = arith.subf %734, %650 : vector<8x128xf32>
    %736 = math.absf %735 : vector<8x128xf32>
    %737 = arith.addf %707, %736 : vector<8x128xf32>
    %c24_i32_252 = arith.constant 24 : i32
    %738 = arith.addi %716, %c24_i32_252 : i32
    %739 = arith.index_cast %738 : i32 to index
    %c4_253 = arith.constant 4 : index
    %740 = vector.load %arg3[%739, %c4_253] : memref<128x8xf32, #tpu.memory_space<vmem>>, vector<8x1xf32>
    %741 = vector.broadcast %740 : vector<8x1xf32> to vector<8x128xf32>
    %742 = arith.subf %741, %650 : vector<8x128xf32>
    %743 = math.absf %742 : vector<8x128xf32>
    %744 = arith.addf %714, %743 : vector<8x128xf32>
    %c3_i32_254 = arith.constant 3 : i32
    %c32_i32_255 = arith.constant 32 : i32
    %745 = arith.muli %c3_i32_254, %c32_i32_255 : i32
    %746 = tpu.assume_multiple %745, 32 : i32
    %c0_i32_256 = arith.constant 0 : i32
    %747 = arith.addi %746, %c0_i32_256 : i32
    %748 = arith.index_cast %747 : i32 to index
    %c4_257 = arith.constant 4 : index
    %749 = vector.load %arg3[%748, %c4_257] : memref<128x8xf32, #tpu.memory_space<vmem>>, vector<8x1xf32>
    %750 = vector.broadcast %749 : vector<8x1xf32> to vector<8x128xf32>
    %751 = arith.subf %750, %650 : vector<8x128xf32>
    %752 = math.absf %751 : vector<8x128xf32>
    %753 = arith.addf %723, %752 : vector<8x128xf32>
    %c8_i32_258 = arith.constant 8 : i32
    %754 = arith.addi %746, %c8_i32_258 : i32
    %755 = arith.index_cast %754 : i32 to index
    %c4_259 = arith.constant 4 : index
    %756 = vector.load %arg3[%755, %c4_259] : memref<128x8xf32, #tpu.memory_space<vmem>>, vector<8x1xf32>
    %757 = vector.broadcast %756 : vector<8x1xf32> to vector<8x128xf32>
    %758 = arith.subf %757, %650 : vector<8x128xf32>
    %759 = math.absf %758 : vector<8x128xf32>
    %760 = arith.addf %730, %759 : vector<8x128xf32>
    %c16_i32_260 = arith.constant 16 : i32
    %761 = arith.addi %746, %c16_i32_260 : i32
    %762 = arith.index_cast %761 : i32 to index
    %c4_261 = arith.constant 4 : index
    %763 = vector.load %arg3[%762, %c4_261] : memref<128x8xf32, #tpu.memory_space<vmem>>, vector<8x1xf32>
    %764 = vector.broadcast %763 : vector<8x1xf32> to vector<8x128xf32>
    %765 = arith.subf %764, %650 : vector<8x128xf32>
    %766 = math.absf %765 : vector<8x128xf32>
    %767 = arith.addf %737, %766 : vector<8x128xf32>
    %c24_i32_262 = arith.constant 24 : i32
    %768 = arith.addi %746, %c24_i32_262 : i32
    %769 = arith.index_cast %768 : i32 to index
    %c4_263 = arith.constant 4 : index
    %770 = vector.load %arg3[%769, %c4_263] : memref<128x8xf32, #tpu.memory_space<vmem>>, vector<8x1xf32>
    %771 = vector.broadcast %770 : vector<8x1xf32> to vector<8x128xf32>
    %772 = arith.subf %771, %650 : vector<8x128xf32>
    %773 = math.absf %772 : vector<8x128xf32>
    %774 = arith.addf %744, %773 : vector<8x128xf32>
    %c4_i32_264 = arith.constant 4 : i32
    %775 = arith.addf %753, %760 : vector<8x128xf32>
    %776 = arith.addf %775, %767 : vector<8x128xf32>
    %777 = arith.addf %776, %774 : vector<8x128xf32>
    %cst_265 = arith.constant dense<0.000000e+00> : vector<128xf32>
    %778 = vector.multi_reduction <add>, %777, %cst_265 [0] : vector<8x128xf32> to vector<128xf32>
    %779 = vector.shape_cast %778 : vector<128xf32> to vector<1x128xf32>
    %cst_266 = arith.constant 2.000000e+00 : f32
    %780 = vector.broadcast %cst_266 : f32 to vector<1x128xf32>
    %781 = arith.cmpf olt, %779, %780 : vector<1x128xf32>
    %782 = arith.andi %781, %5 : vector<1x128xi1>
    %cst_267 = arith.constant 1.000000e-01 : f32
    %cst_268 = arith.constant 0.000000e+00 : f32
    %783 = vector.broadcast %cst_267 : f32 to vector<1x128xf32>
    %784 = vector.broadcast %cst_268 : f32 to vector<1x128xf32>
    %785 = arith.select %782, %783, %784 : vector<1x128xi1>, vector<1x128xf32>
    %cst_269 = arith.constant dense<0.000000e+00> : vector<1xf32>
    %786 = vector.multi_reduction <add>, %785, %cst_269 [1] : vector<1x128xf32> to vector<1xf32>
    %787 = vector.shape_cast %786 : vector<1xf32> to vector<1x1xf32>
    %788 = arith.mulf %648, %785 : vector<1x128xf32>
    %cst_270 = arith.constant dense<0.000000e+00> : vector<1xf32>
    %789 = vector.multi_reduction <add>, %788, %cst_270 [1] : vector<1x128xf32> to vector<1xf32>
    %790 = vector.shape_cast %789 : vector<1xf32> to vector<1x1xf32>
    %791 = vector.broadcast %787 : vector<1x1xf32> to vector<1x128xf32>
    %792 = arith.mulf %648, %791 : vector<1x128xf32>
    %793 = vector.broadcast %790 : vector<1x1xf32> to vector<1x128xf32>
    %794 = arith.subf %793, %792 : vector<1x128xf32>
    %cst_271 = arith.constant 0.000000e+00 : f32
    %795 = vector.broadcast %cst_271 : f32 to vector<1x128xf32>
    %796 = arith.select %5, %794, %795 : vector<1x128xi1>, vector<1x128xf32>
    %797 = arith.mulf %796, %796 : vector<1x128xf32>
    %cst_272 = arith.constant dense<0.000000e+00> : vector<1xf32>
    %798 = vector.multi_reduction <add>, %797, %cst_272 [1] : vector<1x128xf32> to vector<1xf32>
    %799 = vector.shape_cast %798 : vector<1xf32> to vector<1x1xf32>
    %800 = math.sqrt %799 : vector<1x1xf32>
    %c4_i32_273 = arith.constant 4 : i32
    %801 = vector.broadcast %c4_i32_273 : i32 to vector<1x8xi32>
    %802 = arith.cmpi eq, %6, %801 : vector<1x8xi32>
    %cst_274 = arith.constant 0.000000e+00 : f32
    %803 = vector.shape_cast %800 : vector<1x1xf32> to vector<1x1xf32>
    %804 = vector.broadcast %803 : vector<1x1xf32> to vector<1x8xf32>
    %805 = vector.broadcast %cst_274 : f32 to vector<1x8xf32>
    %806 = arith.select %802, %804, %805 : vector<1x8xi1>, vector<1x8xf32>
    %807 = arith.addf %647, %806 : vector<1x8xf32>
    %c5 = arith.constant 5 : index
    %c0_275 = arith.constant 0 : index
    %808 = vector.load %arg1[%c5, %c0_275] : memref<8x128xf32, #tpu.memory_space<vmem>>, vector<1x128xf32>
    %809 = vector.shape_cast %808 : vector<1x128xf32> to vector<1x128xf32>
    %810 = vector.broadcast %809 : vector<1x128xf32> to vector<8x128xf32>
    %cst_276 = arith.constant 0.000000e+00 : f32
    %811 = vector.broadcast %cst_276 : f32 to vector<8x128xf32>
    %cst_277 = arith.constant 0.000000e+00 : f32
    %812 = vector.broadcast %cst_277 : f32 to vector<8x128xf32>
    %cst_278 = arith.constant 0.000000e+00 : f32
    %813 = vector.broadcast %cst_278 : f32 to vector<8x128xf32>
    %cst_279 = arith.constant 0.000000e+00 : f32
    %814 = vector.broadcast %cst_279 : f32 to vector<8x128xf32>
    %c0_i32_280 = arith.constant 0 : i32
    %c32_i32_281 = arith.constant 32 : i32
    %815 = arith.muli %c0_i32_280, %c32_i32_281 : i32
    %816 = tpu.assume_multiple %815, 32 : i32
    %c0_i32_282 = arith.constant 0 : i32
    %817 = arith.addi %816, %c0_i32_282 : i32
    %818 = arith.index_cast %817 : i32 to index
    %c5_283 = arith.constant 5 : index
    %819 = vector.load %arg3[%818, %c5_283] : memref<128x8xf32, #tpu.memory_space<vmem>>, vector<8x1xf32>
    %820 = vector.broadcast %819 : vector<8x1xf32> to vector<8x128xf32>
    %821 = arith.subf %820, %810 : vector<8x128xf32>
    %822 = math.absf %821 : vector<8x128xf32>
    %823 = arith.addf %811, %822 : vector<8x128xf32>
    %c8_i32_284 = arith.constant 8 : i32
    %824 = arith.addi %816, %c8_i32_284 : i32
    %825 = arith.index_cast %824 : i32 to index
    %c5_285 = arith.constant 5 : index
    %826 = vector.load %arg3[%825, %c5_285] : memref<128x8xf32, #tpu.memory_space<vmem>>, vector<8x1xf32>
    %827 = vector.broadcast %826 : vector<8x1xf32> to vector<8x128xf32>
    %828 = arith.subf %827, %810 : vector<8x128xf32>
    %829 = math.absf %828 : vector<8x128xf32>
    %830 = arith.addf %812, %829 : vector<8x128xf32>
    %c16_i32_286 = arith.constant 16 : i32
    %831 = arith.addi %816, %c16_i32_286 : i32
    %832 = arith.index_cast %831 : i32 to index
    %c5_287 = arith.constant 5 : index
    %833 = vector.load %arg3[%832, %c5_287] : memref<128x8xf32, #tpu.memory_space<vmem>>, vector<8x1xf32>
    %834 = vector.broadcast %833 : vector<8x1xf32> to vector<8x128xf32>
    %835 = arith.subf %834, %810 : vector<8x128xf32>
    %836 = math.absf %835 : vector<8x128xf32>
    %837 = arith.addf %813, %836 : vector<8x128xf32>
    %c24_i32_288 = arith.constant 24 : i32
    %838 = arith.addi %816, %c24_i32_288 : i32
    %839 = arith.index_cast %838 : i32 to index
    %c5_289 = arith.constant 5 : index
    %840 = vector.load %arg3[%839, %c5_289] : memref<128x8xf32, #tpu.memory_space<vmem>>, vector<8x1xf32>
    %841 = vector.broadcast %840 : vector<8x1xf32> to vector<8x128xf32>
    %842 = arith.subf %841, %810 : vector<8x128xf32>
    %843 = math.absf %842 : vector<8x128xf32>
    %844 = arith.addf %814, %843 : vector<8x128xf32>
    %c1_i32_290 = arith.constant 1 : i32
    %c32_i32_291 = arith.constant 32 : i32
    %845 = arith.muli %c1_i32_290, %c32_i32_291 : i32
    %846 = tpu.assume_multiple %845, 32 : i32
    %c0_i32_292 = arith.constant 0 : i32
    %847 = arith.addi %846, %c0_i32_292 : i32
    %848 = arith.index_cast %847 : i32 to index
    %c5_293 = arith.constant 5 : index
    %849 = vector.load %arg3[%848, %c5_293] : memref<128x8xf32, #tpu.memory_space<vmem>>, vector<8x1xf32>
    %850 = vector.broadcast %849 : vector<8x1xf32> to vector<8x128xf32>
    %851 = arith.subf %850, %810 : vector<8x128xf32>
    %852 = math.absf %851 : vector<8x128xf32>
    %853 = arith.addf %823, %852 : vector<8x128xf32>
    %c8_i32_294 = arith.constant 8 : i32
    %854 = arith.addi %846, %c8_i32_294 : i32
    %855 = arith.index_cast %854 : i32 to index
    %c5_295 = arith.constant 5 : index
    %856 = vector.load %arg3[%855, %c5_295] : memref<128x8xf32, #tpu.memory_space<vmem>>, vector<8x1xf32>
    %857 = vector.broadcast %856 : vector<8x1xf32> to vector<8x128xf32>
    %858 = arith.subf %857, %810 : vector<8x128xf32>
    %859 = math.absf %858 : vector<8x128xf32>
    %860 = arith.addf %830, %859 : vector<8x128xf32>
    %c16_i32_296 = arith.constant 16 : i32
    %861 = arith.addi %846, %c16_i32_296 : i32
    %862 = arith.index_cast %861 : i32 to index
    %c5_297 = arith.constant 5 : index
    %863 = vector.load %arg3[%862, %c5_297] : memref<128x8xf32, #tpu.memory_space<vmem>>, vector<8x1xf32>
    %864 = vector.broadcast %863 : vector<8x1xf32> to vector<8x128xf32>
    %865 = arith.subf %864, %810 : vector<8x128xf32>
    %866 = math.absf %865 : vector<8x128xf32>
    %867 = arith.addf %837, %866 : vector<8x128xf32>
    %c24_i32_298 = arith.constant 24 : i32
    %868 = arith.addi %846, %c24_i32_298 : i32
    %869 = arith.index_cast %868 : i32 to index
    %c5_299 = arith.constant 5 : index
    %870 = vector.load %arg3[%869, %c5_299] : memref<128x8xf32, #tpu.memory_space<vmem>>, vector<8x1xf32>
    %871 = vector.broadcast %870 : vector<8x1xf32> to vector<8x128xf32>
    %872 = arith.subf %871, %810 : vector<8x128xf32>
    %873 = math.absf %872 : vector<8x128xf32>
    %874 = arith.addf %844, %873 : vector<8x128xf32>
    %c2_i32_300 = arith.constant 2 : i32
    %c32_i32_301 = arith.constant 32 : i32
    %875 = arith.muli %c2_i32_300, %c32_i32_301 : i32
    %876 = tpu.assume_multiple %875, 32 : i32
    %c0_i32_302 = arith.constant 0 : i32
    %877 = arith.addi %876, %c0_i32_302 : i32
    %878 = arith.index_cast %877 : i32 to index
    %c5_303 = arith.constant 5 : index
    %879 = vector.load %arg3[%878, %c5_303] : memref<128x8xf32, #tpu.memory_space<vmem>>, vector<8x1xf32>
    %880 = vector.broadcast %879 : vector<8x1xf32> to vector<8x128xf32>
    %881 = arith.subf %880, %810 : vector<8x128xf32>
    %882 = math.absf %881 : vector<8x128xf32>
    %883 = arith.addf %853, %882 : vector<8x128xf32>
    %c8_i32_304 = arith.constant 8 : i32
    %884 = arith.addi %876, %c8_i32_304 : i32
    %885 = arith.index_cast %884 : i32 to index
    %c5_305 = arith.constant 5 : index
    %886 = vector.load %arg3[%885, %c5_305] : memref<128x8xf32, #tpu.memory_space<vmem>>, vector<8x1xf32>
    %887 = vector.broadcast %886 : vector<8x1xf32> to vector<8x128xf32>
    %888 = arith.subf %887, %810 : vector<8x128xf32>
    %889 = math.absf %888 : vector<8x128xf32>
    %890 = arith.addf %860, %889 : vector<8x128xf32>
    %c16_i32_306 = arith.constant 16 : i32
    %891 = arith.addi %876, %c16_i32_306 : i32
    %892 = arith.index_cast %891 : i32 to index
    %c5_307 = arith.constant 5 : index
    %893 = vector.load %arg3[%892, %c5_307] : memref<128x8xf32, #tpu.memory_space<vmem>>, vector<8x1xf32>
    %894 = vector.broadcast %893 : vector<8x1xf32> to vector<8x128xf32>
    %895 = arith.subf %894, %810 : vector<8x128xf32>
    %896 = math.absf %895 : vector<8x128xf32>
    %897 = arith.addf %867, %896 : vector<8x128xf32>
    %c24_i32_308 = arith.constant 24 : i32
    %898 = arith.addi %876, %c24_i32_308 : i32
    %899 = arith.index_cast %898 : i32 to index
    %c5_309 = arith.constant 5 : index
    %900 = vector.load %arg3[%899, %c5_309] : memref<128x8xf32, #tpu.memory_space<vmem>>, vector<8x1xf32>
    %901 = vector.broadcast %900 : vector<8x1xf32> to vector<8x128xf32>
    %902 = arith.subf %901, %810 : vector<8x128xf32>
    %903 = math.absf %902 : vector<8x128xf32>
    %904 = arith.addf %874, %903 : vector<8x128xf32>
    %c3_i32_310 = arith.constant 3 : i32
    %c32_i32_311 = arith.constant 32 : i32
    %905 = arith.muli %c3_i32_310, %c32_i32_311 : i32
    %906 = tpu.assume_multiple %905, 32 : i32
    %c0_i32_312 = arith.constant 0 : i32
    %907 = arith.addi %906, %c0_i32_312 : i32
    %908 = arith.index_cast %907 : i32 to index
    %c5_313 = arith.constant 5 : index
    %909 = vector.load %arg3[%908, %c5_313] : memref<128x8xf32, #tpu.memory_space<vmem>>, vector<8x1xf32>
    %910 = vector.broadcast %909 : vector<8x1xf32> to vector<8x128xf32>
    %911 = arith.subf %910, %810 : vector<8x128xf32>
    %912 = math.absf %911 : vector<8x128xf32>
    %913 = arith.addf %883, %912 : vector<8x128xf32>
    %c8_i32_314 = arith.constant 8 : i32
    %914 = arith.addi %906, %c8_i32_314 : i32
    %915 = arith.index_cast %914 : i32 to index
    %c5_315 = arith.constant 5 : index
    %916 = vector.load %arg3[%915, %c5_315] : memref<128x8xf32, #tpu.memory_space<vmem>>, vector<8x1xf32>
    %917 = vector.broadcast %916 : vector<8x1xf32> to vector<8x128xf32>
    %918 = arith.subf %917, %810 : vector<8x128xf32>
    %919 = math.absf %918 : vector<8x128xf32>
    %920 = arith.addf %890, %919 : vector<8x128xf32>
    %c16_i32_316 = arith.constant 16 : i32
    %921 = arith.addi %906, %c16_i32_316 : i32
    %922 = arith.index_cast %921 : i32 to index
    %c5_317 = arith.constant 5 : index
    %923 = vector.load %arg3[%922, %c5_317] : memref<128x8xf32, #tpu.memory_space<vmem>>, vector<8x1xf32>
    %924 = vector.broadcast %923 : vector<8x1xf32> to vector<8x128xf32>
    %925 = arith.subf %924, %810 : vector<8x128xf32>
    %926 = math.absf %925 : vector<8x128xf32>
    %927 = arith.addf %897, %926 : vector<8x128xf32>
    %c24_i32_318 = arith.constant 24 : i32
    %928 = arith.addi %906, %c24_i32_318 : i32
    %929 = arith.index_cast %928 : i32 to index
    %c5_319 = arith.constant 5 : index
    %930 = vector.load %arg3[%929, %c5_319] : memref<128x8xf32, #tpu.memory_space<vmem>>, vector<8x1xf32>
    %931 = vector.broadcast %930 : vector<8x1xf32> to vector<8x128xf32>
    %932 = arith.subf %931, %810 : vector<8x128xf32>
    %933 = math.absf %932 : vector<8x128xf32>
    %934 = arith.addf %904, %933 : vector<8x128xf32>
    %c4_i32_320 = arith.constant 4 : i32
    %935 = arith.addf %913, %920 : vector<8x128xf32>
    %936 = arith.addf %935, %927 : vector<8x128xf32>
    %937 = arith.addf %936, %934 : vector<8x128xf32>
    %cst_321 = arith.constant dense<0.000000e+00> : vector<128xf32>
    %938 = vector.multi_reduction <add>, %937, %cst_321 [0] : vector<8x128xf32> to vector<128xf32>
    %939 = vector.shape_cast %938 : vector<128xf32> to vector<1x128xf32>
    %cst_322 = arith.constant 2.000000e+00 : f32
    %940 = vector.broadcast %cst_322 : f32 to vector<1x128xf32>
    %941 = arith.cmpf olt, %939, %940 : vector<1x128xf32>
    %942 = arith.andi %941, %5 : vector<1x128xi1>
    %cst_323 = arith.constant 1.000000e-01 : f32
    %cst_324 = arith.constant 0.000000e+00 : f32
    %943 = vector.broadcast %cst_323 : f32 to vector<1x128xf32>
    %944 = vector.broadcast %cst_324 : f32 to vector<1x128xf32>
    %945 = arith.select %942, %943, %944 : vector<1x128xi1>, vector<1x128xf32>
    %cst_325 = arith.constant dense<0.000000e+00> : vector<1xf32>
    %946 = vector.multi_reduction <add>, %945, %cst_325 [1] : vector<1x128xf32> to vector<1xf32>
    %947 = vector.shape_cast %946 : vector<1xf32> to vector<1x1xf32>
    %948 = arith.mulf %808, %945 : vector<1x128xf32>
    %cst_326 = arith.constant dense<0.000000e+00> : vector<1xf32>
    %949 = vector.multi_reduction <add>, %948, %cst_326 [1] : vector<1x128xf32> to vector<1xf32>
    %950 = vector.shape_cast %949 : vector<1xf32> to vector<1x1xf32>
    %951 = vector.broadcast %947 : vector<1x1xf32> to vector<1x128xf32>
    %952 = arith.mulf %808, %951 : vector<1x128xf32>
    %953 = vector.broadcast %950 : vector<1x1xf32> to vector<1x128xf32>
    %954 = arith.subf %953, %952 : vector<1x128xf32>
    %cst_327 = arith.constant 0.000000e+00 : f32
    %955 = vector.broadcast %cst_327 : f32 to vector<1x128xf32>
    %956 = arith.select %5, %954, %955 : vector<1x128xi1>, vector<1x128xf32>
    %957 = arith.mulf %956, %956 : vector<1x128xf32>
    %cst_328 = arith.constant dense<0.000000e+00> : vector<1xf32>
    %958 = vector.multi_reduction <add>, %957, %cst_328 [1] : vector<1x128xf32> to vector<1xf32>
    %959 = vector.shape_cast %958 : vector<1xf32> to vector<1x1xf32>
    %960 = math.sqrt %959 : vector<1x1xf32>
    %c5_i32 = arith.constant 5 : i32
    %961 = vector.broadcast %c5_i32 : i32 to vector<1x8xi32>
    %962 = arith.cmpi eq, %6, %961 : vector<1x8xi32>
    %cst_329 = arith.constant 0.000000e+00 : f32
    %963 = vector.shape_cast %960 : vector<1x1xf32> to vector<1x1xf32>
    %964 = vector.broadcast %963 : vector<1x1xf32> to vector<1x8xf32>
    %965 = vector.broadcast %cst_329 : f32 to vector<1x8xf32>
    %966 = arith.select %962, %964, %965 : vector<1x8xi1>, vector<1x8xf32>
    %967 = arith.addf %807, %966 : vector<1x8xf32>
    %c6 = arith.constant 6 : index
    %c0_330 = arith.constant 0 : index
    %968 = vector.load %arg1[%c6, %c0_330] : memref<8x128xf32, #tpu.memory_space<vmem>>, vector<1x128xf32>
    %969 = vector.shape_cast %968 : vector<1x128xf32> to vector<1x128xf32>
    %970 = vector.broadcast %969 : vector<1x128xf32> to vector<8x128xf32>
    %cst_331 = arith.constant 0.000000e+00 : f32
    %971 = vector.broadcast %cst_331 : f32 to vector<8x128xf32>
    %cst_332 = arith.constant 0.000000e+00 : f32
    %972 = vector.broadcast %cst_332 : f32 to vector<8x128xf32>
    %cst_333 = arith.constant 0.000000e+00 : f32
    %973 = vector.broadcast %cst_333 : f32 to vector<8x128xf32>
    %cst_334 = arith.constant 0.000000e+00 : f32
    %974 = vector.broadcast %cst_334 : f32 to vector<8x128xf32>
    %c0_i32_335 = arith.constant 0 : i32
    %c32_i32_336 = arith.constant 32 : i32
    %975 = arith.muli %c0_i32_335, %c32_i32_336 : i32
    %976 = tpu.assume_multiple %975, 32 : i32
    %c0_i32_337 = arith.constant 0 : i32
    %977 = arith.addi %976, %c0_i32_337 : i32
    %978 = arith.index_cast %977 : i32 to index
    %c6_338 = arith.constant 6 : index
    %979 = vector.load %arg3[%978, %c6_338] : memref<128x8xf32, #tpu.memory_space<vmem>>, vector<8x1xf32>
    %980 = vector.broadcast %979 : vector<8x1xf32> to vector<8x128xf32>
    %981 = arith.subf %980, %970 : vector<8x128xf32>
    %982 = math.absf %981 : vector<8x128xf32>
    %983 = arith.addf %971, %982 : vector<8x128xf32>
    %c8_i32_339 = arith.constant 8 : i32
    %984 = arith.addi %976, %c8_i32_339 : i32
    %985 = arith.index_cast %984 : i32 to index
    %c6_340 = arith.constant 6 : index
    %986 = vector.load %arg3[%985, %c6_340] : memref<128x8xf32, #tpu.memory_space<vmem>>, vector<8x1xf32>
    %987 = vector.broadcast %986 : vector<8x1xf32> to vector<8x128xf32>
    %988 = arith.subf %987, %970 : vector<8x128xf32>
    %989 = math.absf %988 : vector<8x128xf32>
    %990 = arith.addf %972, %989 : vector<8x128xf32>
    %c16_i32_341 = arith.constant 16 : i32
    %991 = arith.addi %976, %c16_i32_341 : i32
    %992 = arith.index_cast %991 : i32 to index
    %c6_342 = arith.constant 6 : index
    %993 = vector.load %arg3[%992, %c6_342] : memref<128x8xf32, #tpu.memory_space<vmem>>, vector<8x1xf32>
    %994 = vector.broadcast %993 : vector<8x1xf32> to vector<8x128xf32>
    %995 = arith.subf %994, %970 : vector<8x128xf32>
    %996 = math.absf %995 : vector<8x128xf32>
    %997 = arith.addf %973, %996 : vector<8x128xf32>
    %c24_i32_343 = arith.constant 24 : i32
    %998 = arith.addi %976, %c24_i32_343 : i32
    %999 = arith.index_cast %998 : i32 to index
    %c6_344 = arith.constant 6 : index
    %1000 = vector.load %arg3[%999, %c6_344] : memref<128x8xf32, #tpu.memory_space<vmem>>, vector<8x1xf32>
    %1001 = vector.broadcast %1000 : vector<8x1xf32> to vector<8x128xf32>
    %1002 = arith.subf %1001, %970 : vector<8x128xf32>
    %1003 = math.absf %1002 : vector<8x128xf32>
    %1004 = arith.addf %974, %1003 : vector<8x128xf32>
    %c1_i32_345 = arith.constant 1 : i32
    %c32_i32_346 = arith.constant 32 : i32
    %1005 = arith.muli %c1_i32_345, %c32_i32_346 : i32
    %1006 = tpu.assume_multiple %1005, 32 : i32
    %c0_i32_347 = arith.constant 0 : i32
    %1007 = arith.addi %1006, %c0_i32_347 : i32
    %1008 = arith.index_cast %1007 : i32 to index
    %c6_348 = arith.constant 6 : index
    %1009 = vector.load %arg3[%1008, %c6_348] : memref<128x8xf32, #tpu.memory_space<vmem>>, vector<8x1xf32>
    %1010 = vector.broadcast %1009 : vector<8x1xf32> to vector<8x128xf32>
    %1011 = arith.subf %1010, %970 : vector<8x128xf32>
    %1012 = math.absf %1011 : vector<8x128xf32>
    %1013 = arith.addf %983, %1012 : vector<8x128xf32>
    %c8_i32_349 = arith.constant 8 : i32
    %1014 = arith.addi %1006, %c8_i32_349 : i32
    %1015 = arith.index_cast %1014 : i32 to index
    %c6_350 = arith.constant 6 : index
    %1016 = vector.load %arg3[%1015, %c6_350] : memref<128x8xf32, #tpu.memory_space<vmem>>, vector<8x1xf32>
    %1017 = vector.broadcast %1016 : vector<8x1xf32> to vector<8x128xf32>
    %1018 = arith.subf %1017, %970 : vector<8x128xf32>
    %1019 = math.absf %1018 : vector<8x128xf32>
    %1020 = arith.addf %990, %1019 : vector<8x128xf32>
    %c16_i32_351 = arith.constant 16 : i32
    %1021 = arith.addi %1006, %c16_i32_351 : i32
    %1022 = arith.index_cast %1021 : i32 to index
    %c6_352 = arith.constant 6 : index
    %1023 = vector.load %arg3[%1022, %c6_352] : memref<128x8xf32, #tpu.memory_space<vmem>>, vector<8x1xf32>
    %1024 = vector.broadcast %1023 : vector<8x1xf32> to vector<8x128xf32>
    %1025 = arith.subf %1024, %970 : vector<8x128xf32>
    %1026 = math.absf %1025 : vector<8x128xf32>
    %1027 = arith.addf %997, %1026 : vector<8x128xf32>
    %c24_i32_353 = arith.constant 24 : i32
    %1028 = arith.addi %1006, %c24_i32_353 : i32
    %1029 = arith.index_cast %1028 : i32 to index
    %c6_354 = arith.constant 6 : index
    %1030 = vector.load %arg3[%1029, %c6_354] : memref<128x8xf32, #tpu.memory_space<vmem>>, vector<8x1xf32>
    %1031 = vector.broadcast %1030 : vector<8x1xf32> to vector<8x128xf32>
    %1032 = arith.subf %1031, %970 : vector<8x128xf32>
    %1033 = math.absf %1032 : vector<8x128xf32>
    %1034 = arith.addf %1004, %1033 : vector<8x128xf32>
    %c2_i32_355 = arith.constant 2 : i32
    %c32_i32_356 = arith.constant 32 : i32
    %1035 = arith.muli %c2_i32_355, %c32_i32_356 : i32
    %1036 = tpu.assume_multiple %1035, 32 : i32
    %c0_i32_357 = arith.constant 0 : i32
    %1037 = arith.addi %1036, %c0_i32_357 : i32
    %1038 = arith.index_cast %1037 : i32 to index
    %c6_358 = arith.constant 6 : index
    %1039 = vector.load %arg3[%1038, %c6_358] : memref<128x8xf32, #tpu.memory_space<vmem>>, vector<8x1xf32>
    %1040 = vector.broadcast %1039 : vector<8x1xf32> to vector<8x128xf32>
    %1041 = arith.subf %1040, %970 : vector<8x128xf32>
    %1042 = math.absf %1041 : vector<8x128xf32>
    %1043 = arith.addf %1013, %1042 : vector<8x128xf32>
    %c8_i32_359 = arith.constant 8 : i32
    %1044 = arith.addi %1036, %c8_i32_359 : i32
    %1045 = arith.index_cast %1044 : i32 to index
    %c6_360 = arith.constant 6 : index
    %1046 = vector.load %arg3[%1045, %c6_360] : memref<128x8xf32, #tpu.memory_space<vmem>>, vector<8x1xf32>
    %1047 = vector.broadcast %1046 : vector<8x1xf32> to vector<8x128xf32>
    %1048 = arith.subf %1047, %970 : vector<8x128xf32>
    %1049 = math.absf %1048 : vector<8x128xf32>
    %1050 = arith.addf %1020, %1049 : vector<8x128xf32>
    %c16_i32_361 = arith.constant 16 : i32
    %1051 = arith.addi %1036, %c16_i32_361 : i32
    %1052 = arith.index_cast %1051 : i32 to index
    %c6_362 = arith.constant 6 : index
    %1053 = vector.load %arg3[%1052, %c6_362] : memref<128x8xf32, #tpu.memory_space<vmem>>, vector<8x1xf32>
    %1054 = vector.broadcast %1053 : vector<8x1xf32> to vector<8x128xf32>
    %1055 = arith.subf %1054, %970 : vector<8x128xf32>
    %1056 = math.absf %1055 : vector<8x128xf32>
    %1057 = arith.addf %1027, %1056 : vector<8x128xf32>
    %c24_i32_363 = arith.constant 24 : i32
    %1058 = arith.addi %1036, %c24_i32_363 : i32
    %1059 = arith.index_cast %1058 : i32 to index
    %c6_364 = arith.constant 6 : index
    %1060 = vector.load %arg3[%1059, %c6_364] : memref<128x8xf32, #tpu.memory_space<vmem>>, vector<8x1xf32>
    %1061 = vector.broadcast %1060 : vector<8x1xf32> to vector<8x128xf32>
    %1062 = arith.subf %1061, %970 : vector<8x128xf32>
    %1063 = math.absf %1062 : vector<8x128xf32>
    %1064 = arith.addf %1034, %1063 : vector<8x128xf32>
    %c3_i32_365 = arith.constant 3 : i32
    %c32_i32_366 = arith.constant 32 : i32
    %1065 = arith.muli %c3_i32_365, %c32_i32_366 : i32
    %1066 = tpu.assume_multiple %1065, 32 : i32
    %c0_i32_367 = arith.constant 0 : i32
    %1067 = arith.addi %1066, %c0_i32_367 : i32
    %1068 = arith.index_cast %1067 : i32 to index
    %c6_368 = arith.constant 6 : index
    %1069 = vector.load %arg3[%1068, %c6_368] : memref<128x8xf32, #tpu.memory_space<vmem>>, vector<8x1xf32>
    %1070 = vector.broadcast %1069 : vector<8x1xf32> to vector<8x128xf32>
    %1071 = arith.subf %1070, %970 : vector<8x128xf32>
    %1072 = math.absf %1071 : vector<8x128xf32>
    %1073 = arith.addf %1043, %1072 : vector<8x128xf32>
    %c8_i32_369 = arith.constant 8 : i32
    %1074 = arith.addi %1066, %c8_i32_369 : i32
    %1075 = arith.index_cast %1074 : i32 to index
    %c6_370 = arith.constant 6 : index
    %1076 = vector.load %arg3[%1075, %c6_370] : memref<128x8xf32, #tpu.memory_space<vmem>>, vector<8x1xf32>
    %1077 = vector.broadcast %1076 : vector<8x1xf32> to vector<8x128xf32>
    %1078 = arith.subf %1077, %970 : vector<8x128xf32>
    %1079 = math.absf %1078 : vector<8x128xf32>
    %1080 = arith.addf %1050, %1079 : vector<8x128xf32>
    %c16_i32_371 = arith.constant 16 : i32
    %1081 = arith.addi %1066, %c16_i32_371 : i32
    %1082 = arith.index_cast %1081 : i32 to index
    %c6_372 = arith.constant 6 : index
    %1083 = vector.load %arg3[%1082, %c6_372] : memref<128x8xf32, #tpu.memory_space<vmem>>, vector<8x1xf32>
    %1084 = vector.broadcast %1083 : vector<8x1xf32> to vector<8x128xf32>
    %1085 = arith.subf %1084, %970 : vector<8x128xf32>
    %1086 = math.absf %1085 : vector<8x128xf32>
    %1087 = arith.addf %1057, %1086 : vector<8x128xf32>
    %c24_i32_373 = arith.constant 24 : i32
    %1088 = arith.addi %1066, %c24_i32_373 : i32
    %1089 = arith.index_cast %1088 : i32 to index
    %c6_374 = arith.constant 6 : index
    %1090 = vector.load %arg3[%1089, %c6_374] : memref<128x8xf32, #tpu.memory_space<vmem>>, vector<8x1xf32>
    %1091 = vector.broadcast %1090 : vector<8x1xf32> to vector<8x128xf32>
    %1092 = arith.subf %1091, %970 : vector<8x128xf32>
    %1093 = math.absf %1092 : vector<8x128xf32>
    %1094 = arith.addf %1064, %1093 : vector<8x128xf32>
    %c4_i32_375 = arith.constant 4 : i32
    %1095 = arith.addf %1073, %1080 : vector<8x128xf32>
    %1096 = arith.addf %1095, %1087 : vector<8x128xf32>
    %1097 = arith.addf %1096, %1094 : vector<8x128xf32>
    %cst_376 = arith.constant dense<0.000000e+00> : vector<128xf32>
    %1098 = vector.multi_reduction <add>, %1097, %cst_376 [0] : vector<8x128xf32> to vector<128xf32>
    %1099 = vector.shape_cast %1098 : vector<128xf32> to vector<1x128xf32>
    %cst_377 = arith.constant 2.000000e+00 : f32
    %1100 = vector.broadcast %cst_377 : f32 to vector<1x128xf32>
    %1101 = arith.cmpf olt, %1099, %1100 : vector<1x128xf32>
    %1102 = arith.andi %1101, %5 : vector<1x128xi1>
    %cst_378 = arith.constant 1.000000e-01 : f32
    %cst_379 = arith.constant 0.000000e+00 : f32
    %1103 = vector.broadcast %cst_378 : f32 to vector<1x128xf32>
    %1104 = vector.broadcast %cst_379 : f32 to vector<1x128xf32>
    %1105 = arith.select %1102, %1103, %1104 : vector<1x128xi1>, vector<1x128xf32>
    %cst_380 = arith.constant dense<0.000000e+00> : vector<1xf32>
    %1106 = vector.multi_reduction <add>, %1105, %cst_380 [1] : vector<1x128xf32> to vector<1xf32>
    %1107 = vector.shape_cast %1106 : vector<1xf32> to vector<1x1xf32>
    %1108 = arith.mulf %968, %1105 : vector<1x128xf32>
    %cst_381 = arith.constant dense<0.000000e+00> : vector<1xf32>
    %1109 = vector.multi_reduction <add>, %1108, %cst_381 [1] : vector<1x128xf32> to vector<1xf32>
    %1110 = vector.shape_cast %1109 : vector<1xf32> to vector<1x1xf32>
    %1111 = vector.broadcast %1107 : vector<1x1xf32> to vector<1x128xf32>
    %1112 = arith.mulf %968, %1111 : vector<1x128xf32>
    %1113 = vector.broadcast %1110 : vector<1x1xf32> to vector<1x128xf32>
    %1114 = arith.subf %1113, %1112 : vector<1x128xf32>
    %cst_382 = arith.constant 0.000000e+00 : f32
    %1115 = vector.broadcast %cst_382 : f32 to vector<1x128xf32>
    %1116 = arith.select %5, %1114, %1115 : vector<1x128xi1>, vector<1x128xf32>
    %1117 = arith.mulf %1116, %1116 : vector<1x128xf32>
    %cst_383 = arith.constant dense<0.000000e+00> : vector<1xf32>
    %1118 = vector.multi_reduction <add>, %1117, %cst_383 [1] : vector<1x128xf32> to vector<1xf32>
    %1119 = vector.shape_cast %1118 : vector<1xf32> to vector<1x1xf32>
    %1120 = math.sqrt %1119 : vector<1x1xf32>
    %c6_i32 = arith.constant 6 : i32
    %1121 = vector.broadcast %c6_i32 : i32 to vector<1x8xi32>
    %1122 = arith.cmpi eq, %6, %1121 : vector<1x8xi32>
    %cst_384 = arith.constant 0.000000e+00 : f32
    %1123 = vector.shape_cast %1120 : vector<1x1xf32> to vector<1x1xf32>
    %1124 = vector.broadcast %1123 : vector<1x1xf32> to vector<1x8xf32>
    %1125 = vector.broadcast %cst_384 : f32 to vector<1x8xf32>
    %1126 = arith.select %1122, %1124, %1125 : vector<1x8xi1>, vector<1x8xf32>
    %1127 = arith.addf %967, %1126 : vector<1x8xf32>
    %c7 = arith.constant 7 : index
    %c0_385 = arith.constant 0 : index
    %1128 = vector.load %arg1[%c7, %c0_385] : memref<8x128xf32, #tpu.memory_space<vmem>>, vector<1x128xf32>
    %1129 = vector.shape_cast %1128 : vector<1x128xf32> to vector<1x128xf32>
    %1130 = vector.broadcast %1129 : vector<1x128xf32> to vector<8x128xf32>
    %cst_386 = arith.constant 0.000000e+00 : f32
    %1131 = vector.broadcast %cst_386 : f32 to vector<8x128xf32>
    %cst_387 = arith.constant 0.000000e+00 : f32
    %1132 = vector.broadcast %cst_387 : f32 to vector<8x128xf32>
    %cst_388 = arith.constant 0.000000e+00 : f32
    %1133 = vector.broadcast %cst_388 : f32 to vector<8x128xf32>
    %cst_389 = arith.constant 0.000000e+00 : f32
    %1134 = vector.broadcast %cst_389 : f32 to vector<8x128xf32>
    %c0_i32_390 = arith.constant 0 : i32
    %c32_i32_391 = arith.constant 32 : i32
    %1135 = arith.muli %c0_i32_390, %c32_i32_391 : i32
    %1136 = tpu.assume_multiple %1135, 32 : i32
    %c0_i32_392 = arith.constant 0 : i32
    %1137 = arith.addi %1136, %c0_i32_392 : i32
    %1138 = arith.index_cast %1137 : i32 to index
    %c7_393 = arith.constant 7 : index
    %1139 = vector.load %arg3[%1138, %c7_393] : memref<128x8xf32, #tpu.memory_space<vmem>>, vector<8x1xf32>
    %1140 = vector.broadcast %1139 : vector<8x1xf32> to vector<8x128xf32>
    %1141 = arith.subf %1140, %1130 : vector<8x128xf32>
    %1142 = math.absf %1141 : vector<8x128xf32>
    %1143 = arith.addf %1131, %1142 : vector<8x128xf32>
    %c8_i32_394 = arith.constant 8 : i32
    %1144 = arith.addi %1136, %c8_i32_394 : i32
    %1145 = arith.index_cast %1144 : i32 to index
    %c7_395 = arith.constant 7 : index
    %1146 = vector.load %arg3[%1145, %c7_395] : memref<128x8xf32, #tpu.memory_space<vmem>>, vector<8x1xf32>
    %1147 = vector.broadcast %1146 : vector<8x1xf32> to vector<8x128xf32>
    %1148 = arith.subf %1147, %1130 : vector<8x128xf32>
    %1149 = math.absf %1148 : vector<8x128xf32>
    %1150 = arith.addf %1132, %1149 : vector<8x128xf32>
    %c16_i32_396 = arith.constant 16 : i32
    %1151 = arith.addi %1136, %c16_i32_396 : i32
    %1152 = arith.index_cast %1151 : i32 to index
    %c7_397 = arith.constant 7 : index
    %1153 = vector.load %arg3[%1152, %c7_397] : memref<128x8xf32, #tpu.memory_space<vmem>>, vector<8x1xf32>
    %1154 = vector.broadcast %1153 : vector<8x1xf32> to vector<8x128xf32>
    %1155 = arith.subf %1154, %1130 : vector<8x128xf32>
    %1156 = math.absf %1155 : vector<8x128xf32>
    %1157 = arith.addf %1133, %1156 : vector<8x128xf32>
    %c24_i32_398 = arith.constant 24 : i32
    %1158 = arith.addi %1136, %c24_i32_398 : i32
    %1159 = arith.index_cast %1158 : i32 to index
    %c7_399 = arith.constant 7 : index
    %1160 = vector.load %arg3[%1159, %c7_399] : memref<128x8xf32, #tpu.memory_space<vmem>>, vector<8x1xf32>
    %1161 = vector.broadcast %1160 : vector<8x1xf32> to vector<8x128xf32>
    %1162 = arith.subf %1161, %1130 : vector<8x128xf32>
    %1163 = math.absf %1162 : vector<8x128xf32>
    %1164 = arith.addf %1134, %1163 : vector<8x128xf32>
    %c1_i32_400 = arith.constant 1 : i32
    %c32_i32_401 = arith.constant 32 : i32
    %1165 = arith.muli %c1_i32_400, %c32_i32_401 : i32
    %1166 = tpu.assume_multiple %1165, 32 : i32
    %c0_i32_402 = arith.constant 0 : i32
    %1167 = arith.addi %1166, %c0_i32_402 : i32
    %1168 = arith.index_cast %1167 : i32 to index
    %c7_403 = arith.constant 7 : index
    %1169 = vector.load %arg3[%1168, %c7_403] : memref<128x8xf32, #tpu.memory_space<vmem>>, vector<8x1xf32>
    %1170 = vector.broadcast %1169 : vector<8x1xf32> to vector<8x128xf32>
    %1171 = arith.subf %1170, %1130 : vector<8x128xf32>
    %1172 = math.absf %1171 : vector<8x128xf32>
    %1173 = arith.addf %1143, %1172 : vector<8x128xf32>
    %c8_i32_404 = arith.constant 8 : i32
    %1174 = arith.addi %1166, %c8_i32_404 : i32
    %1175 = arith.index_cast %1174 : i32 to index
    %c7_405 = arith.constant 7 : index
    %1176 = vector.load %arg3[%1175, %c7_405] : memref<128x8xf32, #tpu.memory_space<vmem>>, vector<8x1xf32>
    %1177 = vector.broadcast %1176 : vector<8x1xf32> to vector<8x128xf32>
    %1178 = arith.subf %1177, %1130 : vector<8x128xf32>
    %1179 = math.absf %1178 : vector<8x128xf32>
    %1180 = arith.addf %1150, %1179 : vector<8x128xf32>
    %c16_i32_406 = arith.constant 16 : i32
    %1181 = arith.addi %1166, %c16_i32_406 : i32
    %1182 = arith.index_cast %1181 : i32 to index
    %c7_407 = arith.constant 7 : index
    %1183 = vector.load %arg3[%1182, %c7_407] : memref<128x8xf32, #tpu.memory_space<vmem>>, vector<8x1xf32>
    %1184 = vector.broadcast %1183 : vector<8x1xf32> to vector<8x128xf32>
    %1185 = arith.subf %1184, %1130 : vector<8x128xf32>
    %1186 = math.absf %1185 : vector<8x128xf32>
    %1187 = arith.addf %1157, %1186 : vector<8x128xf32>
    %c24_i32_408 = arith.constant 24 : i32
    %1188 = arith.addi %1166, %c24_i32_408 : i32
    %1189 = arith.index_cast %1188 : i32 to index
    %c7_409 = arith.constant 7 : index
    %1190 = vector.load %arg3[%1189, %c7_409] : memref<128x8xf32, #tpu.memory_space<vmem>>, vector<8x1xf32>
    %1191 = vector.broadcast %1190 : vector<8x1xf32> to vector<8x128xf32>
    %1192 = arith.subf %1191, %1130 : vector<8x128xf32>
    %1193 = math.absf %1192 : vector<8x128xf32>
    %1194 = arith.addf %1164, %1193 : vector<8x128xf32>
    %c2_i32_410 = arith.constant 2 : i32
    %c32_i32_411 = arith.constant 32 : i32
    %1195 = arith.muli %c2_i32_410, %c32_i32_411 : i32
    %1196 = tpu.assume_multiple %1195, 32 : i32
    %c0_i32_412 = arith.constant 0 : i32
    %1197 = arith.addi %1196, %c0_i32_412 : i32
    %1198 = arith.index_cast %1197 : i32 to index
    %c7_413 = arith.constant 7 : index
    %1199 = vector.load %arg3[%1198, %c7_413] : memref<128x8xf32, #tpu.memory_space<vmem>>, vector<8x1xf32>
    %1200 = vector.broadcast %1199 : vector<8x1xf32> to vector<8x128xf32>
    %1201 = arith.subf %1200, %1130 : vector<8x128xf32>
    %1202 = math.absf %1201 : vector<8x128xf32>
    %1203 = arith.addf %1173, %1202 : vector<8x128xf32>
    %c8_i32_414 = arith.constant 8 : i32
    %1204 = arith.addi %1196, %c8_i32_414 : i32
    %1205 = arith.index_cast %1204 : i32 to index
    %c7_415 = arith.constant 7 : index
    %1206 = vector.load %arg3[%1205, %c7_415] : memref<128x8xf32, #tpu.memory_space<vmem>>, vector<8x1xf32>
    %1207 = vector.broadcast %1206 : vector<8x1xf32> to vector<8x128xf32>
    %1208 = arith.subf %1207, %1130 : vector<8x128xf32>
    %1209 = math.absf %1208 : vector<8x128xf32>
    %1210 = arith.addf %1180, %1209 : vector<8x128xf32>
    %c16_i32_416 = arith.constant 16 : i32
    %1211 = arith.addi %1196, %c16_i32_416 : i32
    %1212 = arith.index_cast %1211 : i32 to index
    %c7_417 = arith.constant 7 : index
    %1213 = vector.load %arg3[%1212, %c7_417] : memref<128x8xf32, #tpu.memory_space<vmem>>, vector<8x1xf32>
    %1214 = vector.broadcast %1213 : vector<8x1xf32> to vector<8x128xf32>
    %1215 = arith.subf %1214, %1130 : vector<8x128xf32>
    %1216 = math.absf %1215 : vector<8x128xf32>
    %1217 = arith.addf %1187, %1216 : vector<8x128xf32>
    %c24_i32_418 = arith.constant 24 : i32
    %1218 = arith.addi %1196, %c24_i32_418 : i32
    %1219 = arith.index_cast %1218 : i32 to index
    %c7_419 = arith.constant 7 : index
    %1220 = vector.load %arg3[%1219, %c7_419] : memref<128x8xf32, #tpu.memory_space<vmem>>, vector<8x1xf32>
    %1221 = vector.broadcast %1220 : vector<8x1xf32> to vector<8x128xf32>
    %1222 = arith.subf %1221, %1130 : vector<8x128xf32>
    %1223 = math.absf %1222 : vector<8x128xf32>
    %1224 = arith.addf %1194, %1223 : vector<8x128xf32>
    %c3_i32_420 = arith.constant 3 : i32
    %c32_i32_421 = arith.constant 32 : i32
    %1225 = arith.muli %c3_i32_420, %c32_i32_421 : i32
    %1226 = tpu.assume_multiple %1225, 32 : i32
    %c0_i32_422 = arith.constant 0 : i32
    %1227 = arith.addi %1226, %c0_i32_422 : i32
    %1228 = arith.index_cast %1227 : i32 to index
    %c7_423 = arith.constant 7 : index
    %1229 = vector.load %arg3[%1228, %c7_423] : memref<128x8xf32, #tpu.memory_space<vmem>>, vector<8x1xf32>
    %1230 = vector.broadcast %1229 : vector<8x1xf32> to vector<8x128xf32>
    %1231 = arith.subf %1230, %1130 : vector<8x128xf32>
    %1232 = math.absf %1231 : vector<8x128xf32>
    %1233 = arith.addf %1203, %1232 : vector<8x128xf32>
    %c8_i32_424 = arith.constant 8 : i32
    %1234 = arith.addi %1226, %c8_i32_424 : i32
    %1235 = arith.index_cast %1234 : i32 to index
    %c7_425 = arith.constant 7 : index
    %1236 = vector.load %arg3[%1235, %c7_425] : memref<128x8xf32, #tpu.memory_space<vmem>>, vector<8x1xf32>
    %1237 = vector.broadcast %1236 : vector<8x1xf32> to vector<8x128xf32>
    %1238 = arith.subf %1237, %1130 : vector<8x128xf32>
    %1239 = math.absf %1238 : vector<8x128xf32>
    %1240 = arith.addf %1210, %1239 : vector<8x128xf32>
    %c16_i32_426 = arith.constant 16 : i32
    %1241 = arith.addi %1226, %c16_i32_426 : i32
    %1242 = arith.index_cast %1241 : i32 to index
    %c7_427 = arith.constant 7 : index
    %1243 = vector.load %arg3[%1242, %c7_427] : memref<128x8xf32, #tpu.memory_space<vmem>>, vector<8x1xf32>
    %1244 = vector.broadcast %1243 : vector<8x1xf32> to vector<8x128xf32>
    %1245 = arith.subf %1244, %1130 : vector<8x128xf32>
    %1246 = math.absf %1245 : vector<8x128xf32>
    %1247 = arith.addf %1217, %1246 : vector<8x128xf32>
    %c24_i32_428 = arith.constant 24 : i32
    %1248 = arith.addi %1226, %c24_i32_428 : i32
    %1249 = arith.index_cast %1248 : i32 to index
    %c7_429 = arith.constant 7 : index
    %1250 = vector.load %arg3[%1249, %c7_429] : memref<128x8xf32, #tpu.memory_space<vmem>>, vector<8x1xf32>
    %1251 = vector.broadcast %1250 : vector<8x1xf32> to vector<8x128xf32>
    %1252 = arith.subf %1251, %1130 : vector<8x128xf32>
    %1253 = math.absf %1252 : vector<8x128xf32>
    %1254 = arith.addf %1224, %1253 : vector<8x128xf32>
    %c4_i32_430 = arith.constant 4 : i32
    %1255 = arith.addf %1233, %1240 : vector<8x128xf32>
    %1256 = arith.addf %1255, %1247 : vector<8x128xf32>
    %1257 = arith.addf %1256, %1254 : vector<8x128xf32>
    %cst_431 = arith.constant dense<0.000000e+00> : vector<128xf32>
    %1258 = vector.multi_reduction <add>, %1257, %cst_431 [0] : vector<8x128xf32> to vector<128xf32>
    %1259 = vector.shape_cast %1258 : vector<128xf32> to vector<1x128xf32>
    %cst_432 = arith.constant 2.000000e+00 : f32
    %1260 = vector.broadcast %cst_432 : f32 to vector<1x128xf32>
    %1261 = arith.cmpf olt, %1259, %1260 : vector<1x128xf32>
    %1262 = arith.andi %1261, %5 : vector<1x128xi1>
    %cst_433 = arith.constant 1.000000e-01 : f32
    %cst_434 = arith.constant 0.000000e+00 : f32
    %1263 = vector.broadcast %cst_433 : f32 to vector<1x128xf32>
    %1264 = vector.broadcast %cst_434 : f32 to vector<1x128xf32>
    %1265 = arith.select %1262, %1263, %1264 : vector<1x128xi1>, vector<1x128xf32>
    %cst_435 = arith.constant dense<0.000000e+00> : vector<1xf32>
    %1266 = vector.multi_reduction <add>, %1265, %cst_435 [1] : vector<1x128xf32> to vector<1xf32>
    %1267 = vector.shape_cast %1266 : vector<1xf32> to vector<1x1xf32>
    %1268 = arith.mulf %1128, %1265 : vector<1x128xf32>
    %cst_436 = arith.constant dense<0.000000e+00> : vector<1xf32>
    %1269 = vector.multi_reduction <add>, %1268, %cst_436 [1] : vector<1x128xf32> to vector<1xf32>
    %1270 = vector.shape_cast %1269 : vector<1xf32> to vector<1x1xf32>
    %1271 = vector.broadcast %1267 : vector<1x1xf32> to vector<1x128xf32>
    %1272 = arith.mulf %1128, %1271 : vector<1x128xf32>
    %1273 = vector.broadcast %1270 : vector<1x1xf32> to vector<1x128xf32>
    %1274 = arith.subf %1273, %1272 : vector<1x128xf32>
    %cst_437 = arith.constant 0.000000e+00 : f32
    %1275 = vector.broadcast %cst_437 : f32 to vector<1x128xf32>
    %1276 = arith.select %5, %1274, %1275 : vector<1x128xi1>, vector<1x128xf32>
    %1277 = arith.mulf %1276, %1276 : vector<1x128xf32>
    %cst_438 = arith.constant dense<0.000000e+00> : vector<1xf32>
    %1278 = vector.multi_reduction <add>, %1277, %cst_438 [1] : vector<1x128xf32> to vector<1xf32>
    %1279 = vector.shape_cast %1278 : vector<1xf32> to vector<1x1xf32>
    %1280 = math.sqrt %1279 : vector<1x1xf32>
    %c7_i32 = arith.constant 7 : i32
    %1281 = vector.broadcast %c7_i32 : i32 to vector<1x8xi32>
    %1282 = arith.cmpi eq, %6, %1281 : vector<1x8xi32>
    %cst_439 = arith.constant 0.000000e+00 : f32
    %1283 = vector.shape_cast %1280 : vector<1x1xf32> to vector<1x1xf32>
    %1284 = vector.broadcast %1283 : vector<1x1xf32> to vector<1x8xf32>
    %1285 = vector.broadcast %cst_439 : f32 to vector<1x8xf32>
    %1286 = arith.select %1282, %1284, %1285 : vector<1x8xi1>, vector<1x8xf32>
    %1287 = arith.addf %1127, %1286 : vector<1x8xf32>
    %c0_440 = arith.constant 0 : index
    %c0_441 = arith.constant 0 : index
    %c0_442 = arith.constant 0 : index
    %1288 = vector.load %arg2[%c0_440, %c0_441, %c0_442] : memref<1x1x8xf32, #tpu.memory_space<vmem>>, vector<1x1x8xf32>
    %1289 = vector.shape_cast %1288 : vector<1x1x8xf32> to vector<1x8xf32>
    %1290 = vector.shape_cast %1287 : vector<1x8xf32> to vector<1x1x8xf32>
    tpu.vector_store %arg2[%c0_440, %c0_441, %c0_442], %1290 {strides = array<i32>} : memref<1x1x8xf32, #tpu.memory_space<vmem>>, vector<1x1x8xf32>,
    return
  }
  func.func @transform_0(%arg0: i32) -> (i32, i32) {
    %c0_i32 = arith.constant 0 : i32
    %c0_i32_0 = arith.constant 0 : i32
    return %arg0, %c0_i32 : i32, i32
  }
  func.func @transform_1(%arg0: i32) -> (i32, i32, i32) {
    %c0_i32 = arith.constant 0 : i32
    %c0_i32_0 = arith.constant 0 : i32
    %c0_i32_1 = arith.constant 0 : i32
    return %arg0, %c0_i32, %c0_i32_0 : i32, i32, i32
  }
}

</mosaic_0001>

<llo_original>
// kernel: tpu_custom_call.1
$region0: #{tpu_custom_call.1}
  #allocation0 [shape = 'u32[]', space=smem, size = 0x4, offset = 0x4, fixed_abs, tag = 'smem constant byte address 0x4 - core index']
  #allocation1 [shape = 'u32[72,128]{1,0:T(1,128)}', space=vmem, size = 0x9000, scoped, tag = 'internal scratch']
  #allocation2 [shape = 'f32[128,8]{1,0:T(8,128)}', space=vmem, size = 0x10000, scoped, tag = 'scratch operand']
  %s0 = inlined_call_operand.hbm [shape: f32[8,128], index: 0, kind: input, shape index: {}]
  %s1 = inlined_call_operand.hbm [shape: f32[1,1,8], index: 1, kind: output, shape index: {}]
  %s2 = sld [smem:[#allocation0]]
  $region18: #{tpu_custom_call.1} parent=0
    _
  %s4 = ssub.s32 1, %s2
  %s5 = scalar_select 0, %s4, %s2
  $region1: #{tpu_custom_call.1} parent=0
    #allocation3 [shape = 'u8[4096]{0}', space=vmem, size = 0x1000, scoped, tag = 'input window, operand 0, single buffered']
    #allocation4 [shape = 's32[1]{0}', space=sflag, size = 0x4, scoped, tag = 'scoped memory for tpu_custom_call.1']
    #allocation5 [shape = 's32[1]{0}', space=sflag, size = 0x4, scoped, tag = 'scoped memory for tpu_custom_call.1']
    #allocation6 [shape = 'u8[512]{0}', space=vmem, size = 0x400, scoped, tag = 'output window, operand 0, single buffered']
    %6 = vsyncpa [#allocation4], 0
    %7 = vsyncpa [#allocation5], 0
    // Predicated region
    $region2: #{tpu_custom_call.1} parent=1 // pred_check
      _
    $region3: #{tpu_custom_call.1} parent=1 // pred_check_branch
      %9 = sbr.rel (0) target = $region5
    $region4: #{tpu_custom_call.1} parent=1 // pred_region
      %11 = vsyncadd [#allocation4], 0
      %s13 = sshll.u32 %s0, 4
      %s14 = int_to_ptr.hbm [resolvable:$true] %s13
      %s15 = sshll.u32 [#allocation3], 4
      %s16 = int_to_ptr.vmem [resolvable:$true] %s15
      %18 = dma.hbm_to_vmem [thread:$0]  %s14, 128, %s16, [#allocation4]
    $region5: #{tpu_custom_call.1} parent=1 // pred_fallthru
      _
    // Predicated region
    $region6: #{tpu_custom_call.1} parent=1 // pred_check
      _
    $region7: #{tpu_custom_call.1} parent=1 // pred_check_branch
      %20 = sbr.rel (0) target = $region9
    $region8: #{tpu_custom_call.1} parent=1 // pred_region
      %22 = dma.done [#allocation4], 128
    $region9: #{tpu_custom_call.1} parent=1 // pred_fallthru
      _
    %v23 = vld [vmem:[#allocation3] sm:$0xff]
    %24 = vxpose.xlu0.b32.start [1/16] %v23, 128
    %25 = vxpose.xlu0.b32.cont [2/16] 0.0, 128
    %26 = vxpose.xlu0.b32.cont [3/16] 0.0, 128
    %27 = vxpose.xlu0.b32.cont [4/16] 0.0, 128
    %28 = vxpose.xlu0.b32.cont [5/16] 0.0, 128
    %29 = vxpose.xlu0.b32.cont [6/16] 0.0, 128
    %30 = vxpose.xlu0.b32.cont [7/16] 0.0, 128
    %31 = vxpose.xlu0.b32.cont [8/16] 0.0, 128
    %32 = vxpose.xlu0.b32.cont [9/16] 0.0, 128
    %33 = vxpose.xlu0.b32.cont [10/16] 0.0, 128
    %34 = vxpose.xlu0.b32.cont [11/16] 0.0, 128
    %35 = vxpose.xlu0.b32.cont [12/16] 0.0, 128
    %36 = vxpose.xlu0.b32.cont [13/16] 0.0, 128
    %37 = vxpose.xlu0.b32.cont [14/16] 0.0, 128
    %38 = vxpose.xlu0.b32.cont [15/16] 0.0, 128
    %39 = vxpose.xlu0.b32.end [16/16] 0.0, 128
    %v40 = vpop.trf.xlu0
    %v41 = vpop.trf.xlu0
    %v42 = vpop.trf.xlu0
    %v43 = vpop.trf.xlu0
    %v44 = vpop.trf.xlu0
    %v45 = vpop.trf.xlu0
    %v46 = vpop.trf.xlu0
    %v47 = vpop.trf.xlu0
    %v48 = vpop.trf.xlu0
    %v49 = vpop.trf.xlu0
    %v50 = vpop.trf.xlu0
    %v51 = vpop.trf.xlu0
    %v52 = vpop.trf.xlu0
    %v53 = vpop.trf.xlu0
    %v54 = vpop.trf.xlu0
    %v55 = vpop.trf.xlu0
    %vm56 = vcmask 64512
    %57 = vst.msk [vmem:[#allocation2] sm:$0xff] %vm56, %v40
    %58 = vst.msk [vmem:[#allocation2 + $0x8] sm:$0xff] %vm56, %v41
    %59 = vst.msk [vmem:[#allocation2 + $0x10] sm:$0xff] %vm56, %v42
    %60 = vst.msk [vmem:[#allocation2 + $0x18] sm:$0xff] %vm56, %v43
    %61 = vst.msk [vmem:[#allocation2 + $0x20] sm:$0xff] %vm56, %v44
    %62 = vst.msk [vmem:[#allocation2 + $0x28] sm:$0xff] %vm56, %v45
    %63 = vst.msk [vmem:[#allocation2 + $0x30] sm:$0xff] %vm56, %v46
    %64 = vst.msk [vmem:[#allocation2 + $0x38] sm:$0xff] %vm56, %v47
    %65 = vst.msk [vmem:[#allocation2 + $0x40] sm:$0xff] %vm56, %v48
    %66 = vst.msk [vmem:[#allocation2 + $0x48] sm:$0xff] %vm56, %v49
    %67 = vst.msk [vmem:[#allocation2 + $0x50] sm:$0xff] %vm56, %v50
    %68 = vst.msk [vmem:[#allocation2 + $0x58] sm:$0xff] %vm56, %v51
    %69 = vst.msk [vmem:[#allocation2 + $0x60] sm:$0xff] %vm56, %v52
    %70 = vst.msk [vmem:[#allocation2 + $0x68] sm:$0xff] %vm56, %v53
    %71 = vst.msk [vmem:[#allocation2 + $0x70] sm:$0xff] %vm56, %v54
    %72 = vst.msk [vmem:[#allocation2 + $0x78] sm:$0xff] %vm56, %v55
    %v73 = vlaneseq
    %v74 = vand.u32 %v73, 127
    %vm75 = vcmp.lt.s32.totalorder %v74, 128
    %v76 = vld [vmem:[#allocation3] sm:$0x1]
    %v77 = vperm.slane %v76, 0
    %v78 = vld [vmem:[#allocation2] sm:$0xff]
    %80 = vset.pattern.permute.xlu0 0
    %81 = vperm.xlu0 %80, %v78
    %v82 = vpop.permute.xlu0 %81
    %v84 = vsub.f32 %v82, %v77
    %v85 = vand.u32 2147483647, %v84
    %v86 = vadd.f32 %v85, 0.0
    %s87 = sadd.s32 0, 8
    %s88 = scalar_lea.vmem [#allocation2], %s87
    %v89 = vld [vmem:[%s88] sm:$0xff]
    %91 = vset.pattern.permute.xlu0 0
    %92 = vperm.xlu0 %91, %v89
    %v93 = vpop.permute.xlu0 %92
    %v95 = vsub.f32 %v93, %v77
    %v96 = vand.u32 2147483647, %v95
    %v97 = vadd.f32 %v96, 0.0
    %s98 = sadd.s32 0, 16
    %s99 = scalar_lea.vmem [#allocation2], %s98
    %v100 = vld [vmem:[%s99] sm:$0xff]
    %102 = vset.pattern.permute.xlu0 0
    %103 = vperm.xlu0 %102, %v100
    %v104 = vpop.permute.xlu0 %103
    %v106 = vsub.f32 %v104, %v77
    %v107 = vand.u32 2147483647, %v106
    %v108 = vadd.f32 %v107, 0.0
    %s109 = sadd.s32 0, 24
    %s110 = scalar_lea.vmem [#allocation2], %s109
    %v111 = vld [vmem:[%s110] sm:$0xff]
    %113 = vset.pattern.permute.xlu0 0
    %114 = vperm.xlu0 %113, %v111
    %v115 = vpop.permute.xlu0 %114
    %v117 = vsub.f32 %v115, %v77
    %v118 = vand.u32 2147483647, %v117
    %v119 = vadd.f32 %v118, 0.0
    %s120 = scalar_lea.vmem [#allocation2], 32
    %v121 = vld [vmem:[%s120] sm:$0xff]
    %123 = vset.pattern.permute.xlu0 0
    %124 = vperm.xlu0 %123, %v121
    %v125 = vpop.permute.xlu0 %124
    %v127 = vsub.f32 %v125, %v77
    %v128 = vand.u32 2147483647, %v127
    %v129 = vadd.f32 %v86, %v128
    %s130 = sadd.s32 32, 8
    %s131 = scalar_lea.vmem [#allocation2], %s130
    %v132 = vld [vmem:[%s131] sm:$0xff]
    %134 = vset.pattern.permute.xlu0 0
    %135 = vperm.xlu0 %134, %v132
    %v136 = vpop.permute.xlu0 %135
    %v138 = vsub.f32 %v136, %v77
    %v139 = vand.u32 2147483647, %v138
    %v140 = vadd.f32 %v97, %v139
    %s141 = sadd.s32 32, 16
    %s142 = scalar_lea.vmem [#allocation2], %s141
    %v143 = vld [vmem:[%s142] sm:$0xff]
    %145 = vset.pattern.permute.xlu0 0
    %146 = vperm.xlu0 %145, %v143
    %v147 = vpop.permute.xlu0 %146
    %v149 = vsub.f32 %v147, %v77
    %v150 = vand.u32 2147483647, %v149
    %v151 = vadd.f32 %v108, %v150
    %s152 = sadd.s32 32, 24
    %s153 = scalar_lea.vmem [#allocation2], %s152
    %v154 = vld [vmem:[%s153] sm:$0xff]
    %156 = vset.pattern.permute.xlu0 0
    %157 = vperm.xlu0 %156, %v154
    %v158 = vpop.permute.xlu0 %157
    %v160 = vsub.f32 %v158, %v77
    %v161 = vand.u32 2147483647, %v160
    %v162 = vadd.f32 %v119, %v161
    %s163 = scalar_lea.vmem [#allocation2], 64
    %v164 = vld [vmem:[%s163] sm:$0xff]
    %166 = vset.pattern.permute.xlu0 0
    %167 = vperm.xlu0 %166, %v164
    %v168 = vpop.permute.xlu0 %167
    %v170 = vsub.f32 %v168, %v77
    %v171 = vand.u32 2147483647, %v170
    %v172 = vadd.f32 %v129, %v171
    %s173 = sadd.s32 64, 8
    %s174 = scalar_lea.vmem [#allocation2], %s173
    %v175 = vld [vmem:[%s174] sm:$0xff]
    %177 = vset.pattern.permute.xlu0 0
    %178 = vperm.xlu0 %177, %v175
    %v179 = vpop.permute.xlu0 %178
    %v181 = vsub.f32 %v179, %v77
    %v182 = vand.u32 2147483647, %v181
    %v183 = vadd.f32 %v140, %v182
    %s184 = sadd.s32 64, 16
    %s185 = scalar_lea.vmem [#allocation2], %s184
    %v186 = vld [vmem:[%s185] sm:$0xff]
    %188 = vset.pattern.permute.xlu0 0
    %189 = vperm.xlu0 %188, %v186
    %v190 = vpop.permute.xlu0 %189
    %v192 = vsub.f32 %v190, %v77
    %v193 = vand.u32 2147483647, %v192
    %v194 = vadd.f32 %v151, %v193
    %s195 = sadd.s32 64, 24
    %s196 = scalar_lea.vmem [#allocation2], %s195
    %v197 = vld [vmem:[%s196] sm:$0xff]
    %199 = vset.pattern.permute.xlu0 0
    %200 = vperm.xlu0 %199, %v197
    %v201 = vpop.permute.xlu0 %200
    %v203 = vsub.f32 %v201, %v77
    %v204 = vand.u32 2147483647, %v203
    %v205 = vadd.f32 %v162, %v204
    %s206 = scalar_lea.vmem [#allocation2], 96
    %v207 = vld [vmem:[%s206] sm:$0xff]
    %209 = vset.pattern.permute.xlu0 0
    %210 = vperm.xlu0 %209, %v207
    %v211 = vpop.permute.xlu0 %210
    %v213 = vsub.f32 %v211, %v77
    %v214 = vand.u32 2147483647, %v213
    %v215 = vadd.f32 %v172, %v214
    %s216 = sadd.s32 96, 8
    %s217 = scalar_lea.vmem [#allocation2], %s216
    %v218 = vld [vmem:[%s217] sm:$0xff]
    %220 = vset.pattern.permute.xlu0 0
    %221 = vperm.xlu0 %220, %v218
    %v222 = vpop.permute.xlu0 %221
    %v224 = vsub.f32 %v222, %v77
    %v225 = vand.u32 2147483647, %v224
    %v226 = vadd.f32 %v183, %v225
    %s227 = sadd.s32 96, 16
    %s228 = scalar_lea.vmem [#allocation2], %s227
    %v229 = vld [vmem:[%s228] sm:$0xff]
    %231 = vset.pattern.permute.xlu0 0
    %232 = vperm.xlu0 %231, %v229
    %v233 = vpop.permute.xlu0 %232
    %v235 = vsub.f32 %v233, %v77
    %v236 = vand.u32 2147483647, %v235
    %v237 = vadd.f32 %v194, %v236
    %s238 = sadd.s32 96, 24
    %s239 = scalar_lea.vmem [#allocation2], %s238
    %v240 = vld [vmem:[%s239] sm:$0xff]
    %242 = vset.pattern.permute.xlu0 0
    %243 = vperm.xlu0 %242, %v240
    %v244 = vpop.permute.xlu0 %243
    %v246 = vsub.f32 %v244, %v77
    %v247 = vand.u32 2147483647, %v246
    %v248 = vadd.f32 %v205, %v247
    %v249 = vadd.f32 %v215, %v226
    %v250 = vadd.f32 %v249, %v237
    %v251 = vadd.f32 %v250, %v248
    %v252 = vrot.slane %v251, 4
    %v253 = vadd.f32 %v251, %v252
    %v254 = vrot.slane %v253, 2
    %v255 = vadd.f32 %v253, %v254
    %v256 = vrot.slane %v255, 1
    %v257 = vadd.f32 %v255, %v256
    %vm258 = vcmp.lt.f32.partialorder %v257, 2.0
    %vm259 = vmand %vm258, %vm75
    %v260 = vsel %vm259, 0.1, 0.0
    %261 = vadd.xlane.f32.xlu0 %v260
    %v262 = vpop.xlane.xlu0 %261
    %v263 = vmul.f32 %v76, %v260
    %vm264 = vcmask 1040384
    %v265 = vsel %vm264, %v263, 0.0
    %266 = vadd.xlane.f32.xlu0 %v265
    %v267 = vpop.xlane.xlu0 %266
    %v268 = vmul.f32 %v76, %v262
    %v269 = vsub.f32 %v267, %v268
    %v270 = vsel %vm75, %v269, 0.0
    %v271 = vmul.f32 %v270, %v270
    %v272 = vsel %vm264, %v271, 0.0
    %273 = vadd.xlane.f32.xlu0 %v272
    %v274 = vpop.xlane.xlu0 %273
    %v275 = vrsqrt.pop %v274
    %v276 = vmul.f32 %v275, %v274
    %v277 = vmul.f32 %v276, %v275
    %v278 = vmul.f32 0.5, %v277
    %v279 = vsub.f32 1.5, %v278
    %v280 = vmul.f32 %v275, %v279
    %v281 = vmul.f32 %v274, %v280
    %vm282 = vcmp.eq.f32.partialorder %v274, inf
    %v283 = vsel %vm282, %v274, %v281
    %vm284 = vcmp.eq.f32.partialorder %v274, 0.0
    %v285 = vand.u32 %v274, 2147483648
    %v286 = vsel %vm284, %v285, %v283
    %vm287 = vcmp.eq.s32.totalorder %v74, 0
    %v288 = vsel %vm287, %v286, 0.0
    %v289 = vadd.f32 %v288, 0.0
    %v290 = vld [vmem:[#allocation3 + $0x1] sm:$0x1]
    %v291 = vperm.slane %v290, 0
    %292 = vset.pattern.permute.xlu0 1
    %293 = vperm.xlu0 %292, %v78
    %v294 = vpop.permute.xlu0 %293
    %v296 = vsub.f32 %v294, %v291
    %v297 = vand.u32 2147483647, %v296
    %v298 = vadd.f32 %v297, 0.0
    %299 = vset.pattern.permute.xlu0 1
    %300 = vperm.xlu0 %299, %v89
    %v301 = vpop.permute.xlu0 %300
    %v303 = vsub.f32 %v301, %v291
    %v304 = vand.u32 2147483647, %v303
    %v305 = vadd.f32 %v304, 0.0
    %306 = vset.pattern.permute.xlu0 1
    %307 = vperm.xlu0 %306, %v100
    %v308 = vpop.permute.xlu0 %307
    %v310 = vsub.f32 %v308, %v291
    %v311 = vand.u32 2147483647, %v310
    %v312 = vadd.f32 %v311, 0.0
    %313 = vset.pattern.permute.xlu0 1
    %314 = vperm.xlu0 %313, %v111
    %v315 = vpop.permute.xlu0 %314
    %v317 = vsub.f32 %v315, %v291
    %v318 = vand.u32 2147483647, %v317
    %v319 = vadd.f32 %v318, 0.0
    %320 = vset.pattern.permute.xlu0 1
    %321 = vperm.xlu0 %320, %v121
    %v322 = vpop.permute.xlu0 %321
    %v324 = vsub.f32 %v322, %v291
    %v325 = vand.u32 2147483647, %v324
    %v326 = vadd.f32 %v298, %v325
    %327 = vset.pattern.permute.xlu0 1
    %328 = vperm.xlu0 %327, %v132
    %v329 = vpop.permute.xlu0 %328
    %v331 = vsub.f32 %v329, %v291
    %v332 = vand.u32 2147483647, %v331
    %v333 = vadd.f32 %v305, %v332
    %334 = vset.pattern.permute.xlu0 1
    %335 = vperm.xlu0 %334, %v143
    %v336 = vpop.permute.xlu0 %335
    %v338 = vsub.f32 %v336, %v291
    %v339 = vand.u32 2147483647, %v338
    %v340 = vadd.f32 %v312, %v339
    %341 = vset.pattern.permute.xlu0 1
    %342 = vperm.xlu0 %341, %v154
    %v343 = vpop.permute.xlu0 %342
    %v345 = vsub.f32 %v343, %v291
    %v346 = vand.u32 2147483647, %v345
    %v347 = vadd.f32 %v319, %v346
    %348 = vset.pattern.permute.xlu0 1
    %349 = vperm.xlu0 %348, %v164
    %v350 = vpop.permute.xlu0 %349
    %v352 = vsub.f32 %v350, %v291
    %v353 = vand.u32 2147483647, %v352
    %v354 = vadd.f32 %v326, %v353
    %355 = vset.pattern.permute.xlu0 1
    %356 = vperm.xlu0 %355, %v175
    %v357 = vpop.permute.xlu0 %356
    %v359 = vsub.f32 %v357, %v291
    %v360 = vand.u32 2147483647, %v359
    %v361 = vadd.f32 %v333, %v360
    %362 = vset.pattern.permute.xlu0 1
    %363 = vperm.xlu0 %362, %v186
    %v364 = vpop.permute.xlu0 %363
    %v366 = vsub.f32 %v364, %v291
    %v367 = vand.u32 2147483647, %v366
    %v368 = vadd.f32 %v340, %v367
    %369 = vset.pattern.permute.xlu0 1
    %370 = vperm.xlu0 %369, %v197
    %v371 = vpop.permute.xlu0 %370
    %v373 = vsub.f32 %v371, %v291
    %v374 = vand.u32 2147483647, %v373
    %v375 = vadd.f32 %v347, %v374
    %376 = vset.pattern.permute.xlu0 1
    %377 = vperm.xlu0 %376, %v207
    %v378 = vpop.permute.xlu0 %377
    %v380 = vsub.f32 %v378, %v291
    %v381 = vand.u32 2147483647, %v380
    %v382 = vadd.f32 %v354, %v381
    %383 = vset.pattern.permute.xlu0 1
    %384 = vperm.xlu0 %383, %v218
    %v385 = vpop.permute.xlu0 %384
    %v387 = vsub.f32 %v385, %v291
    %v388 = vand.u32 2147483647, %v387
    %v389 = vadd.f32 %v361, %v388
    %390 = vset.pattern.permute.xlu0 1
    %391 = vperm.xlu0 %390, %v229
    %v392 = vpop.permute.xlu0 %391
    %v394 = vsub.f32 %v392, %v291
    %v395 = vand.u32 2147483647, %v394
    %v396 = vadd.f32 %v368, %v395
    %397 = vset.pattern.permute.xlu0 1
    %398 = vperm.xlu0 %397, %v240
    %v399 = vpop.permute.xlu0 %398
    %v401 = vsub.f32 %v399, %v291
    %v402 = vand.u32 2147483647, %v401
    %v403 = vadd.f32 %v375, %v402
    %v404 = vadd.f32 %v382, %v389
    %v405 = vadd.f32 %v404, %v396
    %v406 = vadd.f32 %v405, %v403
    %v407 = vrot.slane %v406, 4
    %v408 = vadd.f32 %v406, %v407
    %v409 = vrot.slane %v408, 2
    %v410 = vadd.f32 %v408, %v409
    %v411 = vrot.slane %v410, 1
    %v412 = vadd.f32 %v410, %v411
    %vm413 = vcmp.lt.f32.partialorder %v412, 2.0
    %vm414 = vmand %vm413, %vm75
    %v415 = vsel %vm414, 0.1, 0.0
    %416 = vadd.xlane.f32.xlu0 %v415
    %v417 = vpop.xlane.xlu0 %416
    %v418 = vmul.f32 %v290, %v415
    %v419 = vsel %vm264, %v418, 0.0
    %420 = vadd.xlane.f32.xlu0 %v419
    %v421 = vpop.xlane.xlu0 %420
    %v422 = vmul.f32 %v290, %v417
    %v423 = vsub.f32 %v421, %v422
    %v424 = vsel %vm75, %v423, 0.0
    %v425 = vmul.f32 %v424, %v424
    %v426 = vsel %vm264, %v425, 0.0
    %427 = vadd.xlane.f32.xlu0 %v426
    %v428 = vpop.xlane.xlu0 %427
    %v429 = vrsqrt.pop %v428
    %v430 = vmul.f32 %v429, %v428
    %v431 = vmul.f32 %v430, %v429
    %v432 = vmul.f32 0.5, %v431
    %v433 = vsub.f32 1.5, %v432
    %v434 = vmul.f32 %v429, %v433
    %v435 = vmul.f32 %v428, %v434
    %vm436 = vcmp.eq.f32.partialorder %v428, inf
    %v437 = vsel %vm436, %v428, %v435
    %vm438 = vcmp.eq.f32.partialorder %v428, 0.0
    %v439 = vand.u32 %v428, 2147483648
    %v440 = vsel %vm438, %v439, %v437
    %vm441 = vcmp.eq.s32.totalorder %v74, 1
    %v442 = vsel %vm441, %v440, 0.0
    %v443 = vadd.f32 %v289, %v442
    %v444 = vld [vmem:[#allocation3 + $0x2] sm:$0x1]
    %v445 = vperm.slane %v444, 0
    %446 = vset.pattern.permute.xlu0 2
    %447 = vperm.xlu0 %446, %v78
    %v448 = vpop.permute.xlu0 %447
    %v450 = vsub.f32 %v448, %v445
    %v451 = vand.u32 2147483647, %v450
    %v452 = vadd.f32 %v451, 0.0
    %453 = vset.pattern.permute.xlu0 2
    %454 = vperm.xlu0 %453, %v89
    %v455 = vpop.permute.xlu0 %454
    %v457 = vsub.f32 %v455, %v445
    %v458 = vand.u32 2147483647, %v457
    %v459 = vadd.f32 %v458, 0.0
    %460 = vset.pattern.permute.xlu0 2
    %461 = vperm.xlu0 %460, %v100
    %v462 = vpop.permute.xlu0 %461
    %v464 = vsub.f32 %v462, %v445
    %v465 = vand.u32 2147483647, %v464
    %v466 = vadd.f32 %v465, 0.0
    %467 = vset.pattern.permute.xlu0 2
    %468 = vperm.xlu0 %467, %v111
    %v469 = vpop.permute.xlu0 %468
    %v471 = vsub.f32 %v469, %v445
    %v472 = vand.u32 2147483647, %v471
    %v473 = vadd.f32 %v472, 0.0
    %474 = vset.pattern.permute.xlu0 2
    %475 = vperm.xlu0 %474, %v121
    %v476 = vpop.permute.xlu0 %475
    %v478 = vsub.f32 %v476, %v445
    %v479 = vand.u32 2147483647, %v478
    %v480 = vadd.f32 %v452, %v479
    %481 = vset.pattern.permute.xlu0 2
    %482 = vperm.xlu0 %481, %v132
    %v483 = vpop.permute.xlu0 %482
    %v485 = vsub.f32 %v483, %v445
    %v486 = vand.u32 2147483647, %v485
    %v487 = vadd.f32 %v459, %v486
    %488 = vset.pattern.permute.xlu0 2
    %489 = vperm.xlu0 %488, %v143
    %v490 = vpop.permute.xlu0 %489
    %v492 = vsub.f32 %v490, %v445
    %v493 = vand.u32 2147483647, %v492
    %v494 = vadd.f32 %v466, %v493
    %495 = vset.pattern.permute.xlu0 2
    %496 = vperm.xlu0 %495, %v154
    %v497 = vpop.permute.xlu0 %496
    %v499 = vsub.f32 %v497, %v445
    %v500 = vand.u32 2147483647, %v499
    %v501 = vadd.f32 %v473, %v500
    %502 = vset.pattern.permute.xlu0 2
    %503 = vperm.xlu0 %502, %v164
    %v504 = vpop.permute.xlu0 %503
    %v506 = vsub.f32 %v504, %v445
    %v507 = vand.u32 2147483647, %v506
    %v508 = vadd.f32 %v480, %v507
    %509 = vset.pattern.permute.xlu0 2
    %510 = vperm.xlu0 %509, %v175
    %v511 = vpop.permute.xlu0 %510
    %v513 = vsub.f32 %v511, %v445
    %v514 = vand.u32 2147483647, %v513
    %v515 = vadd.f32 %v487, %v514
    %516 = vset.pattern.permute.xlu0 2
    %517 = vperm.xlu0 %516, %v186
    %v518 = vpop.permute.xlu0 %517
    %v520 = vsub.f32 %v518, %v445
    %v521 = vand.u32 2147483647, %v520
    %v522 = vadd.f32 %v494, %v521
    %523 = vset.pattern.permute.xlu0 2
    %524 = vperm.xlu0 %523, %v197
    %v525 = vpop.permute.xlu0 %524
    %v527 = vsub.f32 %v525, %v445
    %v528 = vand.u32 2147483647, %v527
    %v529 = vadd.f32 %v501, %v528
    %530 = vset.pattern.permute.xlu0 2
    %531 = vperm.xlu0 %530, %v207
    %v532 = vpop.permute.xlu0 %531
    %v534 = vsub.f32 %v532, %v445
    %v535 = vand.u32 2147483647, %v534
    %v536 = vadd.f32 %v508, %v535
    %537 = vset.pattern.permute.xlu0 2
    %538 = vperm.xlu0 %537, %v218
    %v539 = vpop.permute.xlu0 %538
    %v541 = vsub.f32 %v539, %v445
    %v542 = vand.u32 2147483647, %v541
    %v543 = vadd.f32 %v515, %v542
    %544 = vset.pattern.permute.xlu0 2
    %545 = vperm.xlu0 %544, %v229
    %v546 = vpop.permute.xlu0 %545
    %v548 = vsub.f32 %v546, %v445
    %v549 = vand.u32 2147483647, %v548
    %v550 = vadd.f32 %v522, %v549
    %551 = vset.pattern.permute.xlu0 2
    %552 = vperm.xlu0 %551, %v240
    %v553 = vpop.permute.xlu0 %552
    %v555 = vsub.f32 %v553, %v445
    %v556 = vand.u32 2147483647, %v555
    %v557 = vadd.f32 %v529, %v556
    %v558 = vadd.f32 %v536, %v543
    %v559 = vadd.f32 %v558, %v550
    %v560 = vadd.f32 %v559, %v557
    %v561 = vrot.slane %v560, 4
    %v562 = vadd.f32 %v560, %v561
    %v563 = vrot.slane %v562, 2
    %v564 = vadd.f32 %v562, %v563
    %v565 = vrot.slane %v564, 1
    %v566 = vadd.f32 %v564, %v565
    %vm567 = vcmp.lt.f32.partialorder %v566, 2.0
    %vm568 = vmand %vm567, %vm75
    %v569 = vsel %vm568, 0.1, 0.0
    %570 = vadd.xlane.f32.xlu0 %v569
    %v571 = vpop.xlane.xlu0 %570
    %v572 = vmul.f32 %v444, %v569
    %v573 = vsel %vm264, %v572, 0.0
    %574 = vadd.xlane.f32.xlu0 %v573
    %v575 = vpop.xlane.xlu0 %574
    %v576 = vmul.f32 %v444, %v571
    %v577 = vsub.f32 %v575, %v576
    %v578 = vsel %vm75, %v577, 0.0
    %v579 = vmul.f32 %v578, %v578
    %v580 = vsel %vm264, %v579, 0.0
    %581 = vadd.xlane.f32.xlu0 %v580
    %v582 = vpop.xlane.xlu0 %581
    %v583 = vrsqrt.pop %v582
    %v584 = vmul.f32 %v583, %v582
    %v585 = vmul.f32 %v584, %v583
    %v586 = vmul.f32 0.5, %v585
    %v587 = vsub.f32 1.5, %v586
    %v588 = vmul.f32 %v583, %v587
    %v589 = vmul.f32 %v582, %v588
    %vm590 = vcmp.eq.f32.partialorder %v582, inf
    %v591 = vsel %vm590, %v582, %v589
    %vm592 = vcmp.eq.f32.partialorder %v582, 0.0
    %v593 = vand.u32 %v582, 2147483648
    %v594 = vsel %vm592, %v593, %v591
    %vm595 = vcmp.eq.s32.totalorder %v74, 2
    %v596 = vsel %vm595, %v594, 0.0
    %v597 = vadd.f32 %v443, %v596
    %v598 = vld [vmem:[#allocation3 + $0x3] sm:$0x1]
    %v599 = vperm.slane %v598, 0
    %600 = vset.pattern.permute.xlu0 3
    %601 = vperm.xlu0 %600, %v78
    %v602 = vpop.permute.xlu0 %601
    %v604 = vsub.f32 %v602, %v599
    %v605 = vand.u32 2147483647, %v604
    %v606 = vadd.f32 %v605, 0.0
    %607 = vset.pattern.permute.xlu0 3
    %608 = vperm.xlu0 %607, %v89
    %v609 = vpop.permute.xlu0 %608
    %v611 = vsub.f32 %v609, %v599
    %v612 = vand.u32 2147483647, %v611
    %v613 = vadd.f32 %v612, 0.0
    %614 = vset.pattern.permute.xlu0 3
    %615 = vperm.xlu0 %614, %v100
    %v616 = vpop.permute.xlu0 %615
    %v618 = vsub.f32 %v616, %v599
    %v619 = vand.u32 2147483647, %v618
    %v620 = vadd.f32 %v619, 0.0
    %621 = vset.pattern.permute.xlu0 3
    %622 = vperm.xlu0 %621, %v111
    %v623 = vpop.permute.xlu0 %622
    %v625 = vsub.f32 %v623, %v599
    %v626 = vand.u32 2147483647, %v625
    %v627 = vadd.f32 %v626, 0.0
    %628 = vset.pattern.permute.xlu0 3
    %629 = vperm.xlu0 %628, %v121
    %v630 = vpop.permute.xlu0 %629
    %v632 = vsub.f32 %v630, %v599
    %v633 = vand.u32 2147483647, %v632
    %v634 = vadd.f32 %v606, %v633
    %635 = vset.pattern.permute.xlu0 3
    %636 = vperm.xlu0 %635, %v132
    %v637 = vpop.permute.xlu0 %636
    %v639 = vsub.f32 %v637, %v599
    %v640 = vand.u32 2147483647, %v639
    %v641 = vadd.f32 %v613, %v640
    %642 = vset.pattern.permute.xlu0 3
    %643 = vperm.xlu0 %642, %v143
    %v644 = vpop.permute.xlu0 %643
    %v646 = vsub.f32 %v644, %v599
    %v647 = vand.u32 2147483647, %v646
    %v648 = vadd.f32 %v620, %v647
    %649 = vset.pattern.permute.xlu0 3
    %650 = vperm.xlu0 %649, %v154
    %v651 = vpop.permute.xlu0 %650
    %v653 = vsub.f32 %v651, %v599
    %v654 = vand.u32 2147483647, %v653
    %v655 = vadd.f32 %v627, %v654
    %656 = vset.pattern.permute.xlu0 3
    %657 = vperm.xlu0 %656, %v164
    %v658 = vpop.permute.xlu0 %657
    %v660 = vsub.f32 %v658, %v599
    %v661 = vand.u32 2147483647, %v660
    %v662 = vadd.f32 %v634, %v661
    %663 = vset.pattern.permute.xlu0 3
    %664 = vperm.xlu0 %663, %v175
    %v665 = vpop.permute.xlu0 %664
    %v667 = vsub.f32 %v665, %v599
    %v668 = vand.u32 2147483647, %v667
    %v669 = vadd.f32 %v641, %v668
    %670 = vset.pattern.permute.xlu0 3
    %671 = vperm.xlu0 %670, %v186
    %v672 = vpop.permute.xlu0 %671
    %v674 = vsub.f32 %v672, %v599
    %v675 = vand.u32 2147483647, %v674
    %v676 = vadd.f32 %v648, %v675
    %677 = vset.pattern.permute.xlu0 3
    %678 = vperm.xlu0 %677, %v197
    %v679 = vpop.permute.xlu0 %678
    %v681 = vsub.f32 %v679, %v599
    %v682 = vand.u32 2147483647, %v681
    %v683 = vadd.f32 %v655, %v682
    %684 = vset.pattern.permute.xlu0 3
    %685 = vperm.xlu0 %684, %v207
    %v686 = vpop.permute.xlu0 %685
    %v688 = vsub.f32 %v686, %v599
    %v689 = vand.u32 2147483647, %v688
    %v690 = vadd.f32 %v662, %v689
    %691 = vset.pattern.permute.xlu0 3
    %692 = vperm.xlu0 %691, %v218
    %v693 = vpop.permute.xlu0 %692
    %v695 = vsub.f32 %v693, %v599
    %v696 = vand.u32 2147483647, %v695
    %v697 = vadd.f32 %v669, %v696
    %698 = vset.pattern.permute.xlu0 3
    %699 = vperm.xlu0 %698, %v229
    %v700 = vpop.permute.xlu0 %699
    %v702 = vsub.f32 %v700, %v599
    %v703 = vand.u32 2147483647, %v702
    %v704 = vadd.f32 %v676, %v703
    %705 = vset.pattern.permute.xlu0 3
    %706 = vperm.xlu0 %705, %v240
    %v707 = vpop.permute.xlu0 %706
    %v709 = vsub.f32 %v707, %v599
    %v710 = vand.u32 2147483647, %v709
    %v711 = vadd.f32 %v683, %v710
    %v712 = vadd.f32 %v690, %v697
    %v713 = vadd.f32 %v712, %v704
    %v714 = vadd.f32 %v713, %v711
    %v715 = vrot.slane %v714, 4
    %v716 = vadd.f32 %v714, %v715
    %v717 = vrot.slane %v716, 2
    %v718 = vadd.f32 %v716, %v717
    %v719 = vrot.slane %v718, 1
    %v720 = vadd.f32 %v718, %v719
    %vm721 = vcmp.lt.f32.partialorder %v720, 2.0
    %vm722 = vmand %vm721, %vm75
    %v723 = vsel %vm722, 0.1, 0.0
    %724 = vadd.xlane.f32.xlu0 %v723
    %v725 = vpop.xlane.xlu0 %724
    %v726 = vmul.f32 %v598, %v723
    %v727 = vsel %vm264, %v726, 0.0
    %728 = vadd.xlane.f32.xlu0 %v727
    %v729 = vpop.xlane.xlu0 %728
    %v730 = vmul.f32 %v598, %v725
    %v731 = vsub.f32 %v729, %v730
    %v732 = vsel %vm75, %v731, 0.0
    %v733 = vmul.f32 %v732, %v732
    %v734 = vsel %vm264, %v733, 0.0
    %735 = vadd.xlane.f32.xlu0 %v734
    %v736 = vpop.xlane.xlu0 %735
    %v737 = vrsqrt.pop %v736
    %v738 = vmul.f32 %v737, %v736
    %v739 = vmul.f32 %v738, %v737
    %v740 = vmul.f32 0.5, %v739
    %v741 = vsub.f32 1.5, %v740
    %v742 = vmul.f32 %v737, %v741
    %v743 = vmul.f32 %v736, %v742
    %vm744 = vcmp.eq.f32.partialorder %v736, inf
    %v745 = vsel %vm744, %v736, %v743
    %vm746 = vcmp.eq.f32.partialorder %v736, 0.0
    %v747 = vand.u32 %v736, 2147483648
    %v748 = vsel %vm746, %v747, %v745
    %vm749 = vcmp.eq.s32.totalorder %v74, 3
    %v750 = vsel %vm749, %v748, 0.0
    %v751 = vadd.f32 %v597, %v750
    %v752 = vld [vmem:[#allocation3 + $0x4] sm:$0x1]
    %v753 = vperm.slane %v752, 0
    %754 = vset.pattern.permute.xlu0 4
    %755 = vperm.xlu0 %754, %v78
    %v756 = vpop.permute.xlu0 %755
    %v758 = vsub.f32 %v756, %v753
    %v759 = vand.u32 2147483647, %v758
    %v760 = vadd.f32 %v759, 0.0
    %761 = vset.pattern.permute.xlu0 4
    %762 = vperm.xlu0 %761, %v89
    %v763 = vpop.permute.xlu0 %762
    %v765 = vsub.f32 %v763, %v753
    %v766 = vand.u32 2147483647, %v765
    %v767 = vadd.f32 %v766, 0.0
    %768 = vset.pattern.permute.xlu0 4
    %769 = vperm.xlu0 %768, %v100
    %v770 = vpop.permute.xlu0 %769
    %v772 = vsub.f32 %v770, %v753
    %v773 = vand.u32 2147483647, %v772
    %v774 = vadd.f32 %v773, 0.0
    %775 = vset.pattern.permute.xlu0 4
    %776 = vperm.xlu0 %775, %v111
    %v777 = vpop.permute.xlu0 %776
    %v779 = vsub.f32 %v777, %v753
    %v780 = vand.u32 2147483647, %v779
    %v781 = vadd.f32 %v780, 0.0
    %782 = vset.pattern.permute.xlu0 4
    %783 = vperm.xlu0 %782, %v121
    %v784 = vpop.permute.xlu0 %783
    %v786 = vsub.f32 %v784, %v753
    %v787 = vand.u32 2147483647, %v786
    %v788 = vadd.f32 %v760, %v787
    %789 = vset.pattern.permute.xlu0 4
    %790 = vperm.xlu0 %789, %v132
    %v791 = vpop.permute.xlu0 %790
    %v793 = vsub.f32 %v791, %v753
    %v794 = vand.u32 2147483647, %v793
    %v795 = vadd.f32 %v767, %v794
    %796 = vset.pattern.permute.xlu0 4
    %797 = vperm.xlu0 %796, %v143
    %v798 = vpop.permute.xlu0 %797
    %v800 = vsub.f32 %v798, %v753
    %v801 = vand.u32 2147483647, %v800
    %v802 = vadd.f32 %v774, %v801
    %803 = vset.pattern.permute.xlu0 4
    %804 = vperm.xlu0 %803, %v154
    %v805 = vpop.permute.xlu0 %804
    %v807 = vsub.f32 %v805, %v753
    %v808 = vand.u32 2147483647, %v807
    %v809 = vadd.f32 %v781, %v808
    %810 = vset.pattern.permute.xlu0 4
    %811 = vperm.xlu0 %810, %v164
    %v812 = vpop.permute.xlu0 %811
    %v814 = vsub.f32 %v812, %v753
    %v815 = vand.u32 2147483647, %v814
    %v816 = vadd.f32 %v788, %v815
    %817 = vset.pattern.permute.xlu0 4
    %818 = vperm.xlu0 %817, %v175
    %v819 = vpop.permute.xlu0 %818
    %v821 = vsub.f32 %v819, %v753
    %v822 = vand.u32 2147483647, %v821
    %v823 = vadd.f32 %v795, %v822
    %824 = vset.pattern.permute.xlu0 4
    %825 = vperm.xlu0 %824, %v186
    %v826 = vpop.permute.xlu0 %825
    %v828 = vsub.f32 %v826, %v753
    %v829 = vand.u32 2147483647, %v828
    %v830 = vadd.f32 %v802, %v829
    %831 = vset.pattern.permute.xlu0 4
    %832 = vperm.xlu0 %831, %v197
    %v833 = vpop.permute.xlu0 %832
    %v835 = vsub.f32 %v833, %v753
    %v836 = vand.u32 2147483647, %v835
    %v837 = vadd.f32 %v809, %v836
    %838 = vset.pattern.permute.xlu0 4
    %839 = vperm.xlu0 %838, %v207
    %v840 = vpop.permute.xlu0 %839
    %v842 = vsub.f32 %v840, %v753
    %v843 = vand.u32 2147483647, %v842
    %v844 = vadd.f32 %v816, %v843
    %845 = vset.pattern.permute.xlu0 4
    %846 = vperm.xlu0 %845, %v218
    %v847 = vpop.permute.xlu0 %846
    %v849 = vsub.f32 %v847, %v753
    %v850 = vand.u32 2147483647, %v849
    %v851 = vadd.f32 %v823, %v850
    %852 = vset.pattern.permute.xlu0 4
    %853 = vperm.xlu0 %852, %v229
    %v854 = vpop.permute.xlu0 %853
    %v856 = vsub.f32 %v854, %v753
    %v857 = vand.u32 2147483647, %v856
    %v858 = vadd.f32 %v830, %v857
    %859 = vset.pattern.permute.xlu0 4
    %860 = vperm.xlu0 %859, %v240
    %v861 = vpop.permute.xlu0 %860
    %v863 = vsub.f32 %v861, %v753
    %v864 = vand.u32 2147483647, %v863
    %v865 = vadd.f32 %v837, %v864
    %v866 = vadd.f32 %v844, %v851
    %v867 = vadd.f32 %v866, %v858
    %v868 = vadd.f32 %v867, %v865
    %v869 = vrot.slane %v868, 4
    %v870 = vadd.f32 %v868, %v869
    %v871 = vrot.slane %v870, 2
    %v872 = vadd.f32 %v870, %v871
    %v873 = vrot.slane %v872, 1
    %v874 = vadd.f32 %v872, %v873
    %vm875 = vcmp.lt.f32.partialorder %v874, 2.0
    %vm876 = vmand %vm875, %vm75
    %v877 = vsel %vm876, 0.1, 0.0
    %878 = vadd.xlane.f32.xlu0 %v877
    %v879 = vpop.xlane.xlu0 %878
    %v880 = vmul.f32 %v752, %v877
    %v881 = vsel %vm264, %v880, 0.0
    %882 = vadd.xlane.f32.xlu0 %v881
    %v883 = vpop.xlane.xlu0 %882
    %v884 = vmul.f32 %v752, %v879
    %v885 = vsub.f32 %v883, %v884
    %v886 = vsel %vm75, %v885, 0.0
    %v887 = vmul.f32 %v886, %v886
    %v888 = vsel %vm264, %v887, 0.0
    %889 = vadd.xlane.f32.xlu0 %v888
    %v890 = vpop.xlane.xlu0 %889
    %v891 = vrsqrt.pop %v890
    %v892 = vmul.f32 %v891, %v890
    %v893 = vmul.f32 %v892, %v891
    %v894 = vmul.f32 0.5, %v893
    %v895 = vsub.f32 1.5, %v894
    %v896 = vmul.f32 %v891, %v895
    %v897 = vmul.f32 %v890, %v896
    %vm898 = vcmp.eq.f32.partialorder %v890, inf
    %v899 = vsel %vm898, %v890, %v897
    %vm900 = vcmp.eq.f32.partialorder %v890, 0.0
    %v901 = vand.u32 %v890, 2147483648
    %v902 = vsel %vm900, %v901, %v899
    %vm903 = vcmp.eq.s32.totalorder %v74, 4
    %v904 = vsel %vm903, %v902, 0.0
    %v905 = vadd.f32 %v751, %v904
    %v906 = vld [vmem:[#allocation3 + $0x5] sm:$0x1]
    %v907 = vperm.slane %v906, 0
    %908 = vset.pattern.permute.xlu0 5
    %909 = vperm.xlu0 %908, %v78
    %v910 = vpop.permute.xlu0 %909
    %v912 = vsub.f32 %v910, %v907
    %v913 = vand.u32 2147483647, %v912
    %v914 = vadd.f32 %v913, 0.0
    %915 = vset.pattern.permute.xlu0 5
    %916 = vperm.xlu0 %915, %v89
    %v917 = vpop.permute.xlu0 %916
    %v919 = vsub.f32 %v917, %v907
    %v920 = vand.u32 2147483647, %v919
    %v921 = vadd.f32 %v920, 0.0
    %922 = vset.pattern.permute.xlu0 5
    %923 = vperm.xlu0 %922, %v100
    %v924 = vpop.permute.xlu0 %923
    %v926 = vsub.f32 %v924, %v907
    %v927 = vand.u32 2147483647, %v926
    %v928 = vadd.f32 %v927, 0.0
    %929 = vset.pattern.permute.xlu0 5
    %930 = vperm.xlu0 %929, %v111
    %v931 = vpop.permute.xlu0 %930
    %v933 = vsub.f32 %v931, %v907
    %v934 = vand.u32 2147483647, %v933
    %v935 = vadd.f32 %v934, 0.0
    %936 = vset.pattern.permute.xlu0 5
    %937 = vperm.xlu0 %936, %v121
    %v938 = vpop.permute.xlu0 %937
    %v940 = vsub.f32 %v938, %v907
    %v941 = vand.u32 2147483647, %v940
    %v942 = vadd.f32 %v914, %v941
    %943 = vset.pattern.permute.xlu0 5
    %944 = vperm.xlu0 %943, %v132
    %v945 = vpop.permute.xlu0 %944
    %v947 = vsub.f32 %v945, %v907
    %v948 = vand.u32 2147483647, %v947
    %v949 = vadd.f32 %v921, %v948
    %950 = vset.pattern.permute.xlu0 5
    %951 = vperm.xlu0 %950, %v143
    %v952 = vpop.permute.xlu0 %951
    %v954 = vsub.f32 %v952, %v907
    %v955 = vand.u32 2147483647, %v954
    %v956 = vadd.f32 %v928, %v955
    %957 = vset.pattern.permute.xlu0 5
    %958 = vperm.xlu0 %957, %v154
    %v959 = vpop.permute.xlu0 %958
    %v961 = vsub.f32 %v959, %v907
    %v962 = vand.u32 2147483647, %v961
    %v963 = vadd.f32 %v935, %v962
    %964 = vset.pattern.permute.xlu0 5
    %965 = vperm.xlu0 %964, %v164
    %v966 = vpop.permute.xlu0 %965
    %v968 = vsub.f32 %v966, %v907
    %v969 = vand.u32 2147483647, %v968
    %v970 = vadd.f32 %v942, %v969
    %971 = vset.pattern.permute.xlu0 5
    %972 = vperm.xlu0 %971, %v175
    %v973 = vpop.permute.xlu0 %972
    %v975 = vsub.f32 %v973, %v907
    %v976 = vand.u32 2147483647, %v975
    %v977 = vadd.f32 %v949, %v976
    %978 = vset.pattern.permute.xlu0 5
    %979 = vperm.xlu0 %978, %v186
    %v980 = vpop.permute.xlu0 %979
    %v982 = vsub.f32 %v980, %v907
    %v983 = vand.u32 2147483647, %v982
    %v984 = vadd.f32 %v956, %v983
    %985 = vset.pattern.permute.xlu0 5
    %986 = vperm.xlu0 %985, %v197
    %v987 = vpop.permute.xlu0 %986
    %v989 = vsub.f32 %v987, %v907
    %v990 = vand.u32 2147483647, %v989
    %v991 = vadd.f32 %v963, %v990
    %992 = vset.pattern.permute.xlu0 5
    %993 = vperm.xlu0 %992, %v207
    %v994 = vpop.permute.xlu0 %993
    %v996 = vsub.f32 %v994, %v907
    %v997 = vand.u32 2147483647, %v996
    %v998 = vadd.f32 %v970, %v997
    %999 = vset.pattern.permute.xlu0 5
    %1000 = vperm.xlu0 %999, %v218
    %v1001 = vpop.permute.xlu0 %1000
    %v1003 = vsub.f32 %v1001, %v907
    %v1004 = vand.u32 2147483647, %v1003
    %v1005 = vadd.f32 %v977, %v1004
    %1006 = vset.pattern.permute.xlu0 5
    %1007 = vperm.xlu0 %1006, %v229
    %v1008 = vpop.permute.xlu0 %1007
    %v1010 = vsub.f32 %v1008, %v907
    %v1011 = vand.u32 2147483647, %v1010
    %v1012 = vadd.f32 %v984, %v1011
    %1013 = vset.pattern.permute.xlu0 5
    %1014 = vperm.xlu0 %1013, %v240
    %v1015 = vpop.permute.xlu0 %1014
    %v1017 = vsub.f32 %v1015, %v907
    %v1018 = vand.u32 2147483647, %v1017
    %v1019 = vadd.f32 %v991, %v1018
    %v1020 = vadd.f32 %v998, %v1005
    %v1021 = vadd.f32 %v1020, %v1012
    %v1022 = vadd.f32 %v1021, %v1019
    %v1023 = vrot.slane %v1022, 4
    %v1024 = vadd.f32 %v1022, %v1023
    %v1025 = vrot.slane %v1024, 2
    %v1026 = vadd.f32 %v1024, %v1025
    %v1027 = vrot.slane %v1026, 1
    %v1028 = vadd.f32 %v1026, %v1027
    %vm1029 = vcmp.lt.f32.partialorder %v1028, 2.0
    %vm1030 = vmand %vm1029, %vm75
    %v1031 = vsel %vm1030, 0.1, 0.0
    %1032 = vadd.xlane.f32.xlu0 %v1031
    %v1033 = vpop.xlane.xlu0 %1032
    %v1034 = vmul.f32 %v906, %v1031
    %v1035 = vsel %vm264, %v1034, 0.0
    %1036 = vadd.xlane.f32.xlu0 %v1035
    %v1037 = vpop.xlane.xlu0 %1036
    %v1038 = vmul.f32 %v906, %v1033
    %v1039 = vsub.f32 %v1037, %v1038
    %v1040 = vsel %vm75, %v1039, 0.0
    %v1041 = vmul.f32 %v1040, %v1040
    %v1042 = vsel %vm264, %v1041, 0.0
    %1043 = vadd.xlane.f32.xlu0 %v1042
    %v1044 = vpop.xlane.xlu0 %1043
    %v1045 = vrsqrt.pop %v1044
    %v1046 = vmul.f32 %v1045, %v1044
    %v1047 = vmul.f32 %v1046, %v1045
    %v1048 = vmul.f32 0.5, %v1047
    %v1049 = vsub.f32 1.5, %v1048
    %v1050 = vmul.f32 %v1045, %v1049
    %v1051 = vmul.f32 %v1044, %v1050
    %vm1052 = vcmp.eq.f32.partialorder %v1044, inf
    %v1053 = vsel %vm1052, %v1044, %v1051
    %vm1054 = vcmp.eq.f32.partialorder %v1044, 0.0
    %v1055 = vand.u32 %v1044, 2147483648
    %v1056 = vsel %vm1054, %v1055, %v1053
    %vm1057 = vcmp.eq.s32.totalorder %v74, 5
    %v1058 = vsel %vm1057, %v1056, 0.0
    %v1059 = vadd.f32 %v905, %v1058
    %v1060 = vld [vmem:[#allocation3 + $0x6] sm:$0x1]
    %v1061 = vperm.slane %v1060, 0
    %1062 = vset.pattern.permute.xlu0 6
    %1063 = vperm.xlu0 %1062, %v78
    %v1064 = vpop.permute.xlu0 %1063
    %v1066 = vsub.f32 %v1064, %v1061
    %v1067 = vand.u32 2147483647, %v1066
    %v1068 = vadd.f32 %v1067, 0.0
    %1069 = vset.pattern.permute.xlu0 6
    %1070 = vperm.xlu0 %1069, %v89
    %v1071 = vpop.permute.xlu0 %1070
    %v1073 = vsub.f32 %v1071, %v1061
    %v1074 = vand.u32 2147483647, %v1073
    %v1075 = vadd.f32 %v1074, 0.0
    %1076 = vset.pattern.permute.xlu0 6
    %1077 = vperm.xlu0 %1076, %v100
    %v1078 = vpop.permute.xlu0 %1077
    %v1080 = vsub.f32 %v1078, %v1061
    %v1081 = vand.u32 2147483647, %v1080
    %v1082 = vadd.f32 %v1081, 0.0
    %1083 = vset.pattern.permute.xlu0 6
    %1084 = vperm.xlu0 %1083, %v111
    %v1085 = vpop.permute.xlu0 %1084
    %v1087 = vsub.f32 %v1085, %v1061
    %v1088 = vand.u32 2147483647, %v1087
    %v1089 = vadd.f32 %v1088, 0.0
    %1090 = vset.pattern.permute.xlu0 6
    %1091 = vperm.xlu0 %1090, %v121
    %v1092 = vpop.permute.xlu0 %1091
    %v1094 = vsub.f32 %v1092, %v1061
    %v1095 = vand.u32 2147483647, %v1094
    %v1096 = vadd.f32 %v1068, %v1095
    %1097 = vset.pattern.permute.xlu0 6
    %1098 = vperm.xlu0 %1097, %v132
    %v1099 = vpop.permute.xlu0 %1098
    %v1101 = vsub.f32 %v1099, %v1061
    %v1102 = vand.u32 2147483647, %v1101
    %v1103 = vadd.f32 %v1075, %v1102
    %1104 = vset.pattern.permute.xlu0 6
    %1105 = vperm.xlu0 %1104, %v143
    %v1106 = vpop.permute.xlu0 %1105
    %v1108 = vsub.f32 %v1106, %v1061
    %v1109 = vand.u32 2147483647, %v1108
    %v1110 = vadd.f32 %v1082, %v1109
    %1111 = vset.pattern.permute.xlu0 6
    %1112 = vperm.xlu0 %1111, %v154
    %v1113 = vpop.permute.xlu0 %1112
    %v1115 = vsub.f32 %v1113, %v1061
    %v1116 = vand.u32 2147483647, %v1115
    %v1117 = vadd.f32 %v1089, %v1116
    %1118 = vset.pattern.permute.xlu0 6
    %1119 = vperm.xlu0 %1118, %v164
    %v1120 = vpop.permute.xlu0 %1119
    %v1122 = vsub.f32 %v1120, %v1061
    %v1123 = vand.u32 2147483647, %v1122
    %v1124 = vadd.f32 %v1096, %v1123
    %1125 = vset.pattern.permute.xlu0 6
    %1126 = vperm.xlu0 %1125, %v175
    %v1127 = vpop.permute.xlu0 %1126
    %v1129 = vsub.f32 %v1127, %v1061
    %v1130 = vand.u32 2147483647, %v1129
    %v1131 = vadd.f32 %v1103, %v1130
    %1132 = vset.pattern.permute.xlu0 6
    %1133 = vperm.xlu0 %1132, %v186
    %v1134 = vpop.permute.xlu0 %1133
    %v1136 = vsub.f32 %v1134, %v1061
    %v1137 = vand.u32 2147483647, %v1136
    %v1138 = vadd.f32 %v1110, %v1137
    %1139 = vset.pattern.permute.xlu0 6
    %1140 = vperm.xlu0 %1139, %v197
    %v1141 = vpop.permute.xlu0 %1140
    %v1143 = vsub.f32 %v1141, %v1061
    %v1144 = vand.u32 2147483647, %v1143
    %v1145 = vadd.f32 %v1117, %v1144
    %1146 = vset.pattern.permute.xlu0 6
    %1147 = vperm.xlu0 %1146, %v207
    %v1148 = vpop.permute.xlu0 %1147
    %v1150 = vsub.f32 %v1148, %v1061
    %v1151 = vand.u32 2147483647, %v1150
    %v1152 = vadd.f32 %v1124, %v1151
    %1153 = vset.pattern.permute.xlu0 6
    %1154 = vperm.xlu0 %1153, %v218
    %v1155 = vpop.permute.xlu0 %1154
    %v1157 = vsub.f32 %v1155, %v1061
    %v1158 = vand.u32 2147483647, %v1157
    %v1159 = vadd.f32 %v1131, %v1158
    %1160 = vset.pattern.permute.xlu0 6
    %1161 = vperm.xlu0 %1160, %v229
    %v1162 = vpop.permute.xlu0 %1161
    %v1164 = vsub.f32 %v1162, %v1061
    %v1165 = vand.u32 2147483647, %v1164
    %v1166 = vadd.f32 %v1138, %v1165
    %1167 = vset.pattern.permute.xlu0 6
    %1168 = vperm.xlu0 %1167, %v240
    %v1169 = vpop.permute.xlu0 %1168
    %v1171 = vsub.f32 %v1169, %v1061
    %v1172 = vand.u32 2147483647, %v1171
    %v1173 = vadd.f32 %v1145, %v1172
    %v1174 = vadd.f32 %v1152, %v1159
    %v1175 = vadd.f32 %v1174, %v1166
    %v1176 = vadd.f32 %v1175, %v1173
    %v1177 = vrot.slane %v1176, 4
    %v1178 = vadd.f32 %v1176, %v1177
    %v1179 = vrot.slane %v1178, 2
    %v1180 = vadd.f32 %v1178, %v1179
    %v1181 = vrot.slane %v1180, 1
    %v1182 = vadd.f32 %v1180, %v1181
    %vm1183 = vcmp.lt.f32.partialorder %v1182, 2.0
    %vm1184 = vmand %vm1183, %vm75
    %v1185 = vsel %vm1184, 0.1, 0.0
    %1186 = vadd.xlane.f32.xlu0 %v1185
    %v1187 = vpop.xlane.xlu0 %1186
    %v1188 = vmul.f32 %v1060, %v1185
    %v1189 = vsel %vm264, %v1188, 0.0
    %1190 = vadd.xlane.f32.xlu0 %v1189
    %v1191 = vpop.xlane.xlu0 %1190
    %v1192 = vmul.f32 %v1060, %v1187
    %v1193 = vsub.f32 %v1191, %v1192
    %v1194 = vsel %vm75, %v1193, 0.0
    %v1195 = vmul.f32 %v1194, %v1194
    %v1196 = vsel %vm264, %v1195, 0.0
    %1197 = vadd.xlane.f32.xlu0 %v1196
    %v1198 = vpop.xlane.xlu0 %1197
    %v1199 = vrsqrt.pop %v1198
    %v1200 = vmul.f32 %v1199, %v1198
    %v1201 = vmul.f32 %v1200, %v1199
    %v1202 = vmul.f32 0.5, %v1201
    %v1203 = vsub.f32 1.5, %v1202
    %v1204 = vmul.f32 %v1199, %v1203
    %v1205 = vmul.f32 %v1198, %v1204
    %vm1206 = vcmp.eq.f32.partialorder %v1198, inf
    %v1207 = vsel %vm1206, %v1198, %v1205
    %vm1208 = vcmp.eq.f32.partialorder %v1198, 0.0
    %v1209 = vand.u32 %v1198, 2147483648
    %v1210 = vsel %vm1208, %v1209, %v1207
    %vm1211 = vcmp.eq.s32.totalorder %v74, 6
    %v1212 = vsel %vm1211, %v1210, 0.0
    %v1213 = vadd.f32 %v1059, %v1212
    %v1214 = vld [vmem:[#allocation3 + $0x7] sm:$0x1]
    %v1215 = vperm.slane %v1214, 0
    %1216 = vset.pattern.permute.xlu0 7
    %1217 = vperm.xlu0 %1216, %v78
    %v1218 = vpop.permute.xlu0 %1217
    %v1220 = vsub.f32 %v1218, %v1215
    %v1221 = vand.u32 2147483647, %v1220
    %v1222 = vadd.f32 %v1221, 0.0
    %1223 = vset.pattern.permute.xlu0 7
    %1224 = vperm.xlu0 %1223, %v89
    %v1225 = vpop.permute.xlu0 %1224
    %v1227 = vsub.f32 %v1225, %v1215
    %v1228 = vand.u32 2147483647, %v1227
    %v1229 = vadd.f32 %v1228, 0.0
    %1230 = vset.pattern.permute.xlu0 7
    %1231 = vperm.xlu0 %1230, %v100
    %v1232 = vpop.permute.xlu0 %1231
    %v1234 = vsub.f32 %v1232, %v1215
    %v1235 = vand.u32 2147483647, %v1234
    %v1236 = vadd.f32 %v1235, 0.0
    %1237 = vset.pattern.permute.xlu0 7
    %1238 = vperm.xlu0 %1237, %v111
    %v1239 = vpop.permute.xlu0 %1238
    %v1241 = vsub.f32 %v1239, %v1215
    %v1242 = vand.u32 2147483647, %v1241
    %v1243 = vadd.f32 %v1242, 0.0
    %1244 = vset.pattern.permute.xlu0 7
    %1245 = vperm.xlu0 %1244, %v121
    %v1246 = vpop.permute.xlu0 %1245
    %v1248 = vsub.f32 %v1246, %v1215
    %v1249 = vand.u32 2147483647, %v1248
    %v1250 = vadd.f32 %v1222, %v1249
    %1251 = vset.pattern.permute.xlu0 7
    %1252 = vperm.xlu0 %1251, %v132
    %v1253 = vpop.permute.xlu0 %1252
    %v1255 = vsub.f32 %v1253, %v1215
    %v1256 = vand.u32 2147483647, %v1255
    %v1257 = vadd.f32 %v1229, %v1256
    %1258 = vset.pattern.permute.xlu0 7
    %1259 = vperm.xlu0 %1258, %v143
    %v1260 = vpop.permute.xlu0 %1259
    %v1262 = vsub.f32 %v1260, %v1215
    %v1263 = vand.u32 2147483647, %v1262
    %v1264 = vadd.f32 %v1236, %v1263
    %1265 = vset.pattern.permute.xlu0 7
    %1266 = vperm.xlu0 %1265, %v154
    %v1267 = vpop.permute.xlu0 %1266
    %v1269 = vsub.f32 %v1267, %v1215
    %v1270 = vand.u32 2147483647, %v1269
    %v1271 = vadd.f32 %v1243, %v1270
    %1272 = vset.pattern.permute.xlu0 7
    %1273 = vperm.xlu0 %1272, %v164
    %v1274 = vpop.permute.xlu0 %1273
    %v1276 = vsub.f32 %v1274, %v1215
    %v1277 = vand.u32 2147483647, %v1276
    %v1278 = vadd.f32 %v1250, %v1277
    %1279 = vset.pattern.permute.xlu0 7
    %1280 = vperm.xlu0 %1279, %v175
    %v1281 = vpop.permute.xlu0 %1280
    %v1283 = vsub.f32 %v1281, %v1215
    %v1284 = vand.u32 2147483647, %v1283
    %v1285 = vadd.f32 %v1257, %v1284
    %1286 = vset.pattern.permute.xlu0 7
    %1287 = vperm.xlu0 %1286, %v186
    %v1288 = vpop.permute.xlu0 %1287
    %v1290 = vsub.f32 %v1288, %v1215
    %v1291 = vand.u32 2147483647, %v1290
    %v1292 = vadd.f32 %v1264, %v1291
    %1293 = vset.pattern.permute.xlu0 7
    %1294 = vperm.xlu0 %1293, %v197
    %v1295 = vpop.permute.xlu0 %1294
    %v1297 = vsub.f32 %v1295, %v1215
    %v1298 = vand.u32 2147483647, %v1297
    %v1299 = vadd.f32 %v1271, %v1298
    %1300 = vset.pattern.permute.xlu0 7
    %1301 = vperm.xlu0 %1300, %v207
    %v1302 = vpop.permute.xlu0 %1301
    %v1304 = vsub.f32 %v1302, %v1215
    %v1305 = vand.u32 2147483647, %v1304
    %v1306 = vadd.f32 %v1278, %v1305
    %1307 = vset.pattern.permute.xlu0 7
    %1308 = vperm.xlu0 %1307, %v218
    %v1309 = vpop.permute.xlu0 %1308
    %v1311 = vsub.f32 %v1309, %v1215
    %v1312 = vand.u32 2147483647, %v1311
    %v1313 = vadd.f32 %v1285, %v1312
    %1314 = vset.pattern.permute.xlu0 7
    %1315 = vperm.xlu0 %1314, %v229
    %v1316 = vpop.permute.xlu0 %1315
    %v1318 = vsub.f32 %v1316, %v1215
    %v1319 = vand.u32 2147483647, %v1318
    %v1320 = vadd.f32 %v1292, %v1319
    %1321 = vset.pattern.permute.xlu0 7
    %1322 = vperm.xlu0 %1321, %v240
    %v1323 = vpop.permute.xlu0 %1322
    %v1325 = vsub.f32 %v1323, %v1215
    %v1326 = vand.u32 2147483647, %v1325
    %v1327 = vadd.f32 %v1299, %v1326
    %v1328 = vadd.f32 %v1306, %v1313
    %v1329 = vadd.f32 %v1328, %v1320
    %v1330 = vadd.f32 %v1329, %v1327
    %v1331 = vrot.slane %v1330, 4
    %v1332 = vadd.f32 %v1330, %v1331
    %v1333 = vrot.slane %v1332, 2
    %v1334 = vadd.f32 %v1332, %v1333
    %v1335 = vrot.slane %v1334, 1
    %v1336 = vadd.f32 %v1334, %v1335
    %vm1337 = vcmp.lt.f32.partialorder %v1336, 2.0
    %vm1338 = vmand %vm1337, %vm75
    %v1339 = vsel %vm1338, 0.1, 0.0
    %1340 = vadd.xlane.f32.xlu0 %v1339
    %v1341 = vpop.xlane.xlu0 %1340
    %v1342 = vmul.f32 %v1214, %v1339
    %v1343 = vsel %vm264, %v1342, 0.0
    %1344 = vadd.xlane.f32.xlu0 %v1343
    %v1345 = vpop.xlane.xlu0 %1344
    %v1346 = vmul.f32 %v1214, %v1341
    %v1347 = vsub.f32 %v1345, %v1346
    %v1348 = vsel %vm75, %v1347, 0.0
    %v1349 = vmul.f32 %v1348, %v1348
    %v1350 = vsel %vm264, %v1349, 0.0
    %1351 = vadd.xlane.f32.xlu0 %v1350
    %v1352 = vpop.xlane.xlu0 %1351
    %v1353 = vrsqrt.pop %v1352
    %v1354 = vmul.f32 %v1353, %v1352
    %v1355 = vmul.f32 %v1354, %v1353
    %v1356 = vmul.f32 0.5, %v1355
    %v1357 = vsub.f32 1.5, %v1356
    %v1358 = vmul.f32 %v1353, %v1357
    %v1359 = vmul.f32 %v1352, %v1358
    %vm1360 = vcmp.eq.f32.partialorder %v1352, inf
    %v1361 = vsel %vm1360, %v1352, %v1359
    %vm1362 = vcmp.eq.f32.partialorder %v1352, 0.0
    %v1363 = vand.u32 %v1352, 2147483648
    %v1364 = vsel %vm1362, %v1363, %v1361
    %vm1365 = vcmp.eq.s32.totalorder %v74, 7
    %v1366 = vsel %vm1365, %v1364, 0.0
    %v1367 = vadd.f32 %v1213, %v1366
    %vm1368 = vcmask 57344
    %1369 = vst.msk [vmem:[#allocation6] sm:$0x1] %vm1368, %v1367
    // Predicated region
    $region10: #{tpu_custom_call.1} parent=1 // pred_check
      _
    $region11: #{tpu_custom_call.1} parent=1 // pred_check_branch
      %1371 = sbr.rel (0) target = $region13
    $region12: #{tpu_custom_call.1} parent=1 // pred_region
      %1373 = vsyncadd [#allocation5], 0
      %s1375 = sshll.u32 [#allocation6], 4
      %s1376 = int_to_ptr.vmem [resolvable:$true] %s1375
      %s1377 = sshll.u32 %s1, 4
      %s1378 = int_to_ptr.hbm [resolvable:$true] %s1377
      %1380 = dma.vmem_to_hbm [thread:$0]  %s1376, 16, %s1378, [#allocation5]
    $region13: #{tpu_custom_call.1} parent=1 // pred_fallthru
      _
    // Predicated region
    $region14: #{tpu_custom_call.1} parent=1 // pred_check
      _
    $region15: #{tpu_custom_call.1} parent=1 // pred_check_branch
      %1382 = sbr.rel (0) target = $region17
    $region16: #{tpu_custom_call.1} parent=1 // pred_region
      %1384 = dma.done [#allocation5], 16
    $region17: #{tpu_custom_call.1} parent=1 // pred_fallthru
      _
    %1385 = vsyncpa [#allocation4], 1
    %1386 = vsyncpa [#allocation5], 1

</llo_original>
